<compile_context>
chip_gen: v5e
topology: v5e:2x2
jax: 0.10.0
libtpu: 0.0.40
codegen_flags: <defaults>
</compile_context>

<pallas_src>
import jax
import jax.numpy as jnp
from jax import lax
from jax.experimental import pallas as pl
from jax.experimental.pallas import tpu as pltpu

EPS = 1e-5

# MXU input dtype. f32 keeps the tiny-C test tolerance tight; switch to
# jnp.bfloat16 for realistic channel counts on v6e/v7x (accumulation stays
# f32 via preferred_element_type).
MXU_DTYPE = jnp.float32
# Dtype of the inter-pass intermediates y1/y2 (each makes one HBM round trip).
# bf16 halves that traffic on v6e/v7x; kept f32 here for the 1e-3 check.
INTER_DTYPE = jnp.float32

_TAPS = tuple((dh, dw) for dh in (-1, 0, 1) for dw in (-1, 0, 1))


def _compiler_params():
    # 32 MiB is safe on all of v5e / v6e / v7x (v7x has only 64 MiB physical);
    # raise toward 64 MiB on v6e if the per-step blocks are enlarged.
    return pltpu.CompilerParams(
        dimension_semantics=("parallel",),
        vmem_limit_bytes=32 * 1024 * 1024,
    )


def _pick_nb(n_images, per_image_bytes, target_bytes=2 << 20):
    """Largest divisor of n_images whose block stays under ~2 MiB.

    Bigger blocks amortize the ~0.35us per-grid-step overhead and give the
    DMA pipeline real tiles; the 2 MiB cap keeps double-buffered blocks far
    inside v7x's 64 MiB VMEM (at production N this still leaves >=4 parallel
    steps per v7x TensorCore; at the tiny test shape the grid degenerates).
    """
    nb = 1
    for d in range(1, n_images + 1):
        if n_images % d == 0 and d * per_image_bytes <= target_bytes:
            nb = d
    return nb


def _pick_rows(total_rows, row_bytes, target_bytes=2 << 20):
    """Largest multiple-of-8 divisor of total_rows under the byte target."""
    best = None
    for rb in range(8, total_rows + 1, 8):
        if total_rows % rb == 0 and rb * row_bytes <= target_bytes:
            best = rb
    return best if best is not None else total_rows


def _make_tap_mask(mb, H, W, cin, dtype):
    """(MB, 9*Cin) {0,1} border-validity mask, hoisted out of the kernel.

    Column t*Cin + c carries the validity of conv tap t = (dh+1)*3 + (dw+1)
    at each flattened pixel (identical for all channels / images in a block).
    Precomputing it on the host removes the per-step in-kernel iota, integer
    divide and compare chain.
    """
    HW = H * W
    pos = jnp.arange(mb, dtype=jnp.int32) % HW
    h = pos // W
    w = pos % W
    cols = []
    for dh, dw in _TAPS:
        m = jnp.ones((mb,), dtype=jnp.bool_)
        if dh == -1:
            m = m & (h >= 1)
        elif dh == 1:
            m = m & (h <= H - 2)
        if dw == -1:
            m = m & (w >= 1)
        elif dw == 1:
            m = m & (w <= W - 2)
        cols.append(m)
    mask9 = jnp.stack(cols, axis=1)                        # (MB, 9)
    return jnp.repeat(mask9, cin, axis=1).astype(dtype)    # (MB, 9*Cin)


def _make_conv_bn_stats_kernel(W, mb, pre_scale_relu):
    """im2col 3x3 'same' conv on one flattened (MB, Cin) block of images.

    The 9 taps are sublane rolls (XLU) of the input, concatenated along the
    channel axis, masked with the precomputed {0,1} matrix, and contracted in
    a single MXU dot (K = 9*Cin).  y_ref is written exactly once; BN sum /
    sum-of-squares come from the live value.  If `pre_scale_relu`, the input
    is first transformed with the folded BN of the previous stage:
    x <- relu(x * scale + shift).
    """
    def kernel(*refs):
        if pre_scale_relu:
            x_ref, w_ref, mask_ref, scale_ref, shift_ref, y_ref, stats_ref = refs
            x = jnp.maximum(x_ref[...] * scale_ref[...] + shift_ref[...], 0.0)
        else:
            x_ref, w_ref, mask_ref, y_ref, stats_ref = refs
            x = x_ref[...]
        x = x.astype(MXU_DTYPE)          # cast once (no per-tap casts)

        # Rolls that cross image boundaries inside a multi-image block only
        # land on rows the border mask zeroes, so flattening Nb images into
        # one (MB, Cin) slab is exact.
        taps = []
        for dh, dw in _TAPS:
            s = dh * W + dw              # want tap[p] == x[p + s]
            taps.append(x if s == 0 else pltpu.roll(x, shift=(-s) % mb, axis=0))
        lhs = jnp.concatenate(taps, axis=-1) * mask_ref[...]   # (MB, 9*Cin)

        y = jnp.dot(lhs, w_ref[...], preferred_element_type=jnp.float32)
        y_ref[...] = y.astype(y_ref.dtype)

        # Per-block BN statistics, stacked and written with a single store.
        stats_ref[...] = jnp.concatenate(
            [jnp.sum(y, axis=0, keepdims=True),
             jnp.sum(y * y, axis=0, keepdims=True)], axis=0)

    return kernel


def _conv_bn_stats_call(x2d, w, H, W, mask, scale=None, shift=None):
    """Conv (+ optional folded-BN/ReLU pre-activation) pass, tiled over blocks."""
    NHW, cin = x2d.shape
    cout = w.shape[3]
    mb = mask.shape[0]
    g = NHW // mb
    pre = scale is not None

    kernel = _make_conv_bn_stats_kernel(W, mb, pre_scale_relu=pre)
    # Host-side im2col weight: (3,3,Cin,Cout) -> (9*Cin, Cout), cast once.
    w_flat = w.reshape(9 * cin, cout).astype(MXU_DTYPE)

    x_spec = pl.BlockSpec((mb, cin), lambda n: (n, 0))
    w_spec = pl.BlockSpec((9 * cin, cout), lambda n: (0, 0))
    m_spec = pl.BlockSpec((mb, 9 * cin), lambda n: (0, 0))
    y_spec = pl.BlockSpec((mb, cout), lambda n: (n, 0))
    s_spec = pl.BlockSpec((None, 2, cout), lambda n: (n, 0, 0))

    in_specs = [x_spec, w_spec, m_spec]
    args = [x2d, w_flat, mask]
    if pre:
        vec_spec = pl.BlockSpec((1, cin), lambda n: (0, 0))
        in_specs += [vec_spec, vec_spec]
        args += [scale.reshape(1, cin), shift.reshape(1, cin)]

    y, stats = pl.pallas_call(
        kernel,
        grid=(g,),
        in_specs=in_specs,
        out_specs=(y_spec, s_spec),
        out_shape=(jax.ShapeDtypeStruct((NHW, cout), INTER_DTYPE),
                   jax.ShapeDtypeStruct((g, 2, cout), jnp.float32)),
        compiler_params=_compiler_params(),
    )(*args)
    return y, stats


def _fold_bn(stats, gamma, beta, count):
    """Fold batch statistics + affine params into per-channel scale/shift."""
    s = jnp.sum(stats[:, 0, :], axis=0)
    ss = jnp.sum(stats[:, 1, :], axis=0)
    mean = s / count
    var = jnp.maximum(ss / count - mean * mean, 0.0)   # biased (training-mode)
    scale = gamma.astype(jnp.float32) * lax.rsqrt(var + EPS)
    shift = beta.astype(jnp.float32) - mean * scale
    return scale, shift


def _bn_add_relu_kernel(y_ref, idn_ref, scale_ref, shift_ref, out_ref):
    out_ref[...] = jnp.maximum(
        y_ref[...] * scale_ref[...] + shift_ref[...] + idn_ref[...], 0.0)


def _bn_add_relu_call(y2, x2d, scale, shift, N, H, W, C):
    """bn2 (folded) + residual add + ReLU on a lane-dense (N*H, W*C) view."""
    WC = W * C
    NH = N * H
    y2_l = y2.reshape(NH, WC).astype(jnp.float32)
    x_l = x2d.reshape(NH, WC)
    scale_p = jnp.tile(scale, W).reshape(1, WC)    # lane index w*C + c -> scale[c]
    shift_p = jnp.tile(shift, W).reshape(1, WC)

    rb = _pick_rows(NH, 3 * WC * 4)                # ~2 MiB row blocks
    row_spec = pl.BlockSpec((rb, WC), lambda n: (n, 0))
    vec_spec = pl.BlockSpec((1, WC), lambda n: (0, 0))

    out = pl.pallas_call(
        _bn_add_relu_kernel,
        grid=(NH // rb,),
        in_specs=[row_spec, row_spec, vec_spec, vec_spec],
        out_specs=row_spec,
        out_shape=jax.ShapeDtypeStruct((NH, WC), jnp.float32),
        compiler_params=_compiler_params(),
    )(y2_l, x_l, scale_p, shift_p)
    return out.reshape(N, H, W, C)


def basic_block_pallas(x_nchw, w1, g1, b1, w2, g2, b2):
    """x_nchw: (N, C, H, W) f32. Conv weights HWIO (3,3,Cin,Cout). Returns NCHW."""
    N, C, H, W = x_nchw.shape
    cout = w1.shape[3]
    assert cout == C, "identity residual requires inplanes == planes"
    # TODO(synk): stride>1 / downsample branch not implemented (module defaults
    # stride=1, downsample=None, groups=1, dilation=1 are what is covered).

    HW = H * W
    x2d = jnp.transpose(x_nchw, (0, 2, 3, 1)).astype(jnp.float32)
    x2d = x2d.reshape(N * HW, C)            # NHWC, pixels-on-sublanes view

    # Block sizing: dominant per-image VMEM is the im2col LHS + in/out slabs.
    mxu_b = jnp.dtype(MXU_DTYPE).itemsize
    inter_b = jnp.dtype(INTER_DTYPE).itemsize
    per_image = HW * (9 * C * mxu_b + C * inter_b + C * 4)
    nb = _pick_nb(N, per_image)
    if (nb * HW) % 8 != 0:                  # keep sublane alignment of blocks
        nb = N
    mask = _make_tap_mask(nb * HW, H, W, C, MXU_DTYPE)

    # conv1 + BN1 statistics
    y1, s1 = _conv_bn_stats_call(x2d, w1, H, W, mask)
    scale1, shift1 = _fold_bn(s1, g1, b1, count=N * HW)

    # bn1 + relu + conv2 + BN2 statistics
    y2, s2 = _conv_bn_stats_call(y1, w2, H, W, mask, scale=scale1, shift=shift1)
    scale2, shift2 = _fold_bn(s2, g2, b2, count=N * HW)

    # bn2 + residual + relu (lane-dense final pass)
    out_nhwc = _bn_add_relu_call(y2, x2d, scale2, shift2, N, H, W, C)
    return jnp.transpose(out_nhwc, (0, 3, 1, 2))


def basic_block_ref(x_nchw, w1, g1, b1, w2, g2, b2):
    """Pure-JAX reference (same semantics) for the correctness check."""
    x = jnp.transpose(x_nchw, (0, 2, 3, 1))

    def conv(y, w):
        return lax.conv_general_dilated(
            y, w, window_strides=(1, 1), padding=((1, 1), (1, 1)),
            dimension_numbers=('NHWC', 'HWIO', 'NHWC'))

    def bn(y, g, b):
        m = jnp.mean(y, axis=(0, 1, 2), keepdims=True)
        v = jnp.mean((y - m) ** 2, axis=(0, 1, 2), keepdims=True)
        return (y - m) * lax.rsqrt(v + EPS) * g.reshape(1, 1, 1, -1) \
            + b.reshape(1, 1, 1, -1)

    out = jax.nn.relu(bn(conv(x, w1), g1, b1))
    out = bn(conv(out, w2), g2, b2) + x
    out = jax.nn.relu(out)
    return jnp.transpose(out, (0, 3, 1, 2))


if __name__ == "__main__":
    # Shapes consistent with BasicBlock(inplanes=8, planes=8, stride=1);
    # W*C = 128 makes the final pass lane-dense.
    N, C, H, W = 2, 8, 16, 16

    key = jax.random.PRNGKey(0)
    kx, kw1, kw2, kg1, kb1, kg2, kb2 = jax.random.split(key, 7)

    x = jax.random.normal(kx, (N, C, H, W), jnp.float32)

    # conv weights in HWIO = (3, 3, Cin, Cout)
    w1 = jax.random.normal(kw1, (3, 3, C, C), jnp.float32) * 0.1
    w2 = jax.random.normal(kw2, (3, 3, C, C), jnp.float32) * 0.1

    # BN affine parameters
    g1 = 1.0 + 0.1 * jax.random.normal(kg1, (C,), jnp.float32)
    b1 = 0.1 * jax.random.normal(kb1, (C,), jnp.float32)
    g2 = 1.0 + 0.1 * jax.random.normal(kg2, (C,), jnp.float32)
    b2 = 0.1 * jax.random.normal(kb2, (C,), jnp.float32)

    out = jax.jit(basic_block_pallas)(x, w1, g1, b1, w2, g2, b2)
    out = jax.block_until_ready(out)

    ref = jax.block_until_ready(basic_block_ref(x, w1, g1, b1, w2, g2, b2))
    assert out.shape == (N, C, H, W)
    assert jnp.allclose(out, ref, atol=1e-3, rtol=1e-3), \
        float(jnp.max(jnp.abs(out - ref)))

    print("KERNEL_OK")
</pallas_src>

<mosaic_0001>
module attributes {stable_mosaic.version = 11 : i64} {
  func.func @kernel(%arg0: i32, %arg1: memref<512x8xf32, #tpu.memory_space<vmem>>, %arg2: memref<72x8xf32, #tpu.memory_space<vmem>>, %arg3: memref<512x72xf32, #tpu.memory_space<vmem>>, %arg4: memref<1x8xf32, #tpu.memory_space<vmem>>, %arg5: memref<1x8xf32, #tpu.memory_space<vmem>>, %arg6: memref<512x8xf32, #tpu.memory_space<vmem>>, %arg7: memref<1x2x8xf32, #tpu.memory_space<vmem>>) attributes {dimension_semantics = [#tpu.dimension_semantics<parallel>], iteration_bounds = array<i64: 1>, scalar_prefetch = 0 : i64, scratch_operands = 0 : i64, tpu.core_type = #tpu.core_type<tc>, window_params = [{transform_indices = @transform_0, window_bounds = array<i64: 512, 8>}, {pipeline_mode = #tpu.pipeline_mode<synchronous>, transform_indices = @transform_1, window_bounds = array<i64: 72, 8>}, {pipeline_mode = #tpu.pipeline_mode<synchronous>, transform_indices = @transform_2, window_bounds = array<i64: 512, 72>}, {pipeline_mode = #tpu.pipeline_mode<synchronous>, transform_indices = @transform_3, window_bounds = array<i64: 1, 8>}, {pipeline_mode = #tpu.pipeline_mode<synchronous>, transform_indices = @transform_4, window_bounds = array<i64: 1, 8>}, {transform_indices = @transform_5, window_bounds = array<i64: 512, 8>}, {transform_indices = @transform_6, window_bounds = array<i64: 1, 2, 8>}]} {
    %c0 = arith.constant 0 : index
    %c0_0 = arith.constant 0 : index
    %0 = vector.load %arg1[%c0, %c0_0] : memref<512x8xf32, #tpu.memory_space<vmem>>, vector<512x8xf32>
    %c0_1 = arith.constant 0 : index
    %c0_2 = arith.constant 0 : index
    %1 = vector.load %arg4[%c0_1, %c0_2] : memref<1x8xf32, #tpu.memory_space<vmem>>, vector<1x8xf32>
    %2 = vector.broadcast %1 : vector<1x8xf32> to vector<512x8xf32>
    %3 = arith.mulf %0, %2 : vector<512x8xf32>
    %c0_3 = arith.constant 0 : index
    %c0_4 = arith.constant 0 : index
    %4 = vector.load %arg5[%c0_3, %c0_4] : memref<1x8xf32, #tpu.memory_space<vmem>>, vector<1x8xf32>
    %5 = vector.broadcast %4 : vector<1x8xf32> to vector<512x8xf32>
    %6 = arith.addf %3, %5 : vector<512x8xf32>
    %cst = arith.constant 0.000000e+00 : f32
    %7 = vector.broadcast %cst : f32 to vector<512x8xf32>
    %8 = arith.maximumf %6, %7 : vector<512x8xf32>
    %c17_i32 = arith.constant 17 : i32
    %9 = tpu.dynamic_rotate %8 by %c17_i32 dim 0 : vector<512x8xf32>, i32 -> vector<512x8xf32>
    %c16_i32 = arith.constant 16 : i32
    %10 = tpu.dynamic_rotate %8 by %c16_i32 dim 0 : vector<512x8xf32>, i32 -> vector<512x8xf32>
    %c15_i32 = arith.constant 15 : i32
    %11 = tpu.dynamic_rotate %8 by %c15_i32 dim 0 : vector<512x8xf32>, i32 -> vector<512x8xf32>
    %c1_i32 = arith.constant 1 : i32
    %12 = tpu.dynamic_rotate %8 by %c1_i32 dim 0 : vector<512x8xf32>, i32 -> vector<512x8xf32>
    %c511_i32 = arith.constant 511 : i32
    %13 = tpu.dynamic_rotate %8 by %c511_i32 dim 0 : vector<512x8xf32>, i32 -> vector<512x8xf32>
    %c497_i32 = arith.constant 497 : i32
    %14 = tpu.dynamic_rotate %8 by %c497_i32 dim 0 : vector<512x8xf32>, i32 -> vector<512x8xf32>
    %c496_i32 = arith.constant 496 : i32
    %15 = tpu.dynamic_rotate %8 by %c496_i32 dim 0 : vector<512x8xf32>, i32 -> vector<512x8xf32>
    %c495_i32 = arith.constant 495 : i32
    %16 = tpu.dynamic_rotate %8 by %c495_i32 dim 0 : vector<512x8xf32>, i32 -> vector<512x8xf32>
    %17 = tpu.concatenate %9, %10, %11, %12, %8, %13, %14, %15, %16 in 1 : vector<512x8xf32>, vector<512x8xf32>, vector<512x8xf32>, vector<512x8xf32>, vector<512x8xf32>, vector<512x8xf32>, vector<512x8xf32>, vector<512x8xf32>, vector<512x8xf32> -> vector<512x72xf32>
    %c0_5 = arith.constant 0 : index
    %c0_6 = arith.constant 0 : index
    %18 = vector.load %arg3[%c0_5, %c0_6] : memref<512x72xf32, #tpu.memory_space<vmem>>, vector<512x72xf32>
    %19 = arith.mulf %17, %18 : vector<512x72xf32>
    %c0_7 = arith.constant 0 : index
    %c0_8 = arith.constant 0 : index
    %20 = vector.load %arg2[%c0_7, %c0_8] : memref<72x8xf32, #tpu.memory_space<vmem>>, vector<72x8xf32>
    %cst_9 = arith.constant dense<0.000000e+00> : vector<512x8xf32>
    %21 = tpu.matmul %19, %20, %cst_9 {dimension_numbers = #tpu.dot_dimension_numbers<[1], [0], [0], [1], [0, 0, 1, 1], [], []>} : vector<512x72xf32>, vector<72x8xf32>, vector<512x8xf32> -> vector<512x8xf32>
    %c0_10 = arith.constant 0 : index
    %c0_11 = arith.constant 0 : index
    %22 = vector.load %arg6[%c0_10, %c0_11] : memref<512x8xf32, #tpu.memory_space<vmem>>, vector<512x8xf32>
    tpu.vector_store %arg6[%c0_10, %c0_11], %21 {strides = array<i32>} : memref<512x8xf32, #tpu.memory_space<vmem>>, vector<512x8xf32>,
    %cst_12 = arith.constant dense<0.000000e+00> : vector<8xf32>
    %23 = vector.multi_reduction <add>, %21, %cst_12 [0] : vector<512x8xf32> to vector<8xf32>
    %24 = vector.shape_cast %23 : vector<8xf32> to vector<1x8xf32>
    %25 = arith.mulf %21, %21 : vector<512x8xf32>
    %cst_13 = arith.constant dense<0.000000e+00> : vector<8xf32>
    %26 = vector.multi_reduction <add>, %25, %cst_13 [0] : vector<512x8xf32> to vector<8xf32>
    %27 = vector.shape_cast %26 : vector<8xf32> to vector<1x8xf32>
    %28 = tpu.concatenate %24, %27 in 0 : vector<1x8xf32>, vector<1x8xf32> -> vector<2x8xf32>
    %c0_14 = arith.constant 0 : index
    %c0_15 = arith.constant 0 : index
    %c0_16 = arith.constant 0 : index
    %29 = vector.load %arg7[%c0_14, %c0_15, %c0_16] : memref<1x2x8xf32, #tpu.memory_space<vmem>>, vector<1x2x8xf32>
    %30 = vector.shape_cast %29 : vector<1x2x8xf32> to vector<2x8xf32>
    %31 = vector.shape_cast %28 : vector<2x8xf32> to vector<1x2x8xf32>
    tpu.vector_store %arg7[%c0_14, %c0_15, %c0_16], %31 {strides = array<i32>} : memref<1x2x8xf32, #tpu.memory_space<vmem>>, vector<1x2x8xf32>,
    return
  }
  func.func @transform_0(%arg0: i32) -> (i32, i32) {
    %c0_i32 = arith.constant 0 : i32
    %c0_i32_0 = arith.constant 0 : i32
    return %arg0, %c0_i32 : i32, i32
  }
  func.func @transform_1(%arg0: i32) -> (i32, i32) {
    %c0_i32 = arith.constant 0 : i32
    %c0_i32_0 = arith.constant 0 : i32
    %c0_i32_1 = arith.constant 0 : i32
    return %c0_i32, %c0_i32_0 : i32, i32
  }
  func.func @transform_2(%arg0: i32) -> (i32, i32) {
    %c0_i32 = arith.constant 0 : i32
    %c0_i32_0 = arith.constant 0 : i32
    %c0_i32_1 = arith.constant 0 : i32
    return %c0_i32, %c0_i32_0 : i32, i32
  }
  func.func @transform_3(%arg0: i32) -> (i32, i32) {
    %c0_i32 = arith.constant 0 : i32
    %c0_i32_0 = arith.constant 0 : i32
    %c0_i32_1 = arith.constant 0 : i32
    return %c0_i32, %c0_i32_0 : i32, i32
  }
  func.func @transform_4(%arg0: i32) -> (i32, i32) {
    %c0_i32 = arith.constant 0 : i32
    %c0_i32_0 = arith.constant 0 : i32
    %c0_i32_1 = arith.constant 0 : i32
    return %c0_i32, %c0_i32_0 : i32, i32
  }
  func.func @transform_5(%arg0: i32) -> (i32, i32) {
    %c0_i32 = arith.constant 0 : i32
    %c0_i32_0 = arith.constant 0 : i32
    return %arg0, %c0_i32 : i32, i32
  }
  func.func @transform_6(%arg0: i32) -> (i32, i32, i32) {
    %c0_i32 = arith.constant 0 : i32
    %c0_i32_0 = arith.constant 0 : i32
    %c0_i32_1 = arith.constant 0 : i32
    return %arg0, %c0_i32, %c0_i32_0 : i32, i32, i32
  }
}

module attributes {stable_mosaic.version = 11 : i64} {
  func.func @kernel(%arg0: i32, %arg1: memref<512x8xf32, #tpu.memory_space<vmem>>, %arg2: memref<72x8xf32, #tpu.memory_space<vmem>>, %arg3: memref<512x72xf32, #tpu.memory_space<vmem>>, %arg4: memref<512x8xf32, #tpu.memory_space<vmem>>, %arg5: memref<1x2x8xf32, #tpu.memory_space<vmem>>) attributes {dimension_semantics = [#tpu.dimension_semantics<parallel>], iteration_bounds = array<i64: 1>, scalar_prefetch = 0 : i64, scratch_operands = 0 : i64, tpu.core_type = #tpu.core_type<tc>, window_params = [{transform_indices = @transform_0, window_bounds = array<i64: 512, 8>}, {pipeline_mode = #tpu.pipeline_mode<synchronous>, transform_indices = @transform_1, window_bounds = array<i64: 72, 8>}, {pipeline_mode = #tpu.pipeline_mode<synchronous>, transform_indices = @transform_2, window_bounds = array<i64: 512, 72>}, {transform_indices = @transform_3, window_bounds = array<i64: 512, 8>}, {transform_indices = @transform_4, window_bounds = array<i64: 1, 2, 8>}]} {
    %c0 = arith.constant 0 : index
    %c0_0 = arith.constant 0 : index
    %0 = vector.load %arg1[%c0, %c0_0] : memref<512x8xf32, #tpu.memory_space<vmem>>, vector<512x8xf32>
    %c17_i32 = arith.constant 17 : i32
    %1 = tpu.dynamic_rotate %0 by %c17_i32 dim 0 : vector<512x8xf32>, i32 -> vector<512x8xf32>
    %c16_i32 = arith.constant 16 : i32
    %2 = tpu.dynamic_rotate %0 by %c16_i32 dim 0 : vector<512x8xf32>, i32 -> vector<512x8xf32>
    %c15_i32 = arith.constant 15 : i32
    %3 = tpu.dynamic_rotate %0 by %c15_i32 dim 0 : vector<512x8xf32>, i32 -> vector<512x8xf32>
    %c1_i32 = arith.constant 1 : i32
    %4 = tpu.dynamic_rotate %0 by %c1_i32 dim 0 : vector<512x8xf32>, i32 -> vector<512x8xf32>
    %c511_i32 = arith.constant 511 : i32
    %5 = tpu.dynamic_rotate %0 by %c511_i32 dim 0 : vector<512x8xf32>, i32 -> vector<512x8xf32>
    %c497_i32 = arith.constant 497 : i32
    %6 = tpu.dynamic_rotate %0 by %c497_i32 dim 0 : vector<512x8xf32>, i32 -> vector<512x8xf32>
    %c496_i32 = arith.constant 496 : i32
    %7 = tpu.dynamic_rotate %0 by %c496_i32 dim 0 : vector<512x8xf32>, i32 -> vector<512x8xf32>
    %c495_i32 = arith.constant 495 : i32
    %8 = tpu.dynamic_rotate %0 by %c495_i32 dim 0 : vector<512x8xf32>, i32 -> vector<512x8xf32>
    %9 = tpu.concatenate %1, %2, %3, %4, %0, %5, %6, %7, %8 in 1 : vector<512x8xf32>, vector<512x8xf32>, vector<512x8xf32>, vector<512x8xf32>, vector<512x8xf32>, vector<512x8xf32>, vector<512x8xf32>, vector<512x8xf32>, vector<512x8xf32> -> vector<512x72xf32>
    %c0_1 = arith.constant 0 : index
    %c0_2 = arith.constant 0 : index
    %10 = vector.load %arg3[%c0_1, %c0_2] : memref<512x72xf32, #tpu.memory_space<vmem>>, vector<512x72xf32>
    %11 = arith.mulf %9, %10 : vector<512x72xf32>
    %c0_3 = arith.constant 0 : index
    %c0_4 = arith.constant 0 : index
    %12 = vector.load %arg2[%c0_3, %c0_4] : memref<72x8xf32, #tpu.memory_space<vmem>>, vector<72x8xf32>
    %cst = arith.constant dense<0.000000e+00> : vector<512x8xf32>
    %13 = tpu.matmul %11, %12, %cst {dimension_numbers = #tpu.dot_dimension_numbers<[1], [0], [0], [1], [0, 0, 1, 1], [], []>} : vector<512x72xf32>, vector<72x8xf32>, vector<512x8xf32> -> vector<512x8xf32>
    %c0_5 = arith.constant 0 : index
    %c0_6 = arith.constant 0 : index
    %14 = vector.load %arg4[%c0_5, %c0_6] : memref<512x8xf32, #tpu.memory_space<vmem>>, vector<512x8xf32>
    tpu.vector_store %arg4[%c0_5, %c0_6], %13 {strides = array<i32>} : memref<512x8xf32, #tpu.memory_space<vmem>>, vector<512x8xf32>,
    %cst_7 = arith.constant dense<0.000000e+00> : vector<8xf32>
    %15 = vector.multi_reduction <add>, %13, %cst_7 [0] : vector<512x8xf32> to vector<8xf32>
    %16 = vector.shape_cast %15 : vector<8xf32> to vector<1x8xf32>
    %17 = arith.mulf %13, %13 : vector<512x8xf32>
    %cst_8 = arith.constant dense<0.000000e+00> : vector<8xf32>
    %18 = vector.multi_reduction <add>, %17, %cst_8 [0] : vector<512x8xf32> to vector<8xf32>
    %19 = vector.shape_cast %18 : vector<8xf32> to vector<1x8xf32>
    %20 = tpu.concatenate %16, %19 in 0 : vector<1x8xf32>, vector<1x8xf32> -> vector<2x8xf32>
    %c0_9 = arith.constant 0 : index
    %c0_10 = arith.constant 0 : index
    %c0_11 = arith.constant 0 : index
    %21 = vector.load %arg5[%c0_9, %c0_10, %c0_11] : memref<1x2x8xf32, #tpu.memory_space<vmem>>, vector<1x2x8xf32>
    %22 = vector.shape_cast %21 : vector<1x2x8xf32> to vector<2x8xf32>
    %23 = vector.shape_cast %20 : vector<2x8xf32> to vector<1x2x8xf32>
    tpu.vector_store %arg5[%c0_9, %c0_10, %c0_11], %23 {strides = array<i32>} : memref<1x2x8xf32, #tpu.memory_space<vmem>>, vector<1x2x8xf32>,
    return
  }
  func.func @transform_0(%arg0: i32) -> (i32, i32) {
    %c0_i32 = arith.constant 0 : i32
    %c0_i32_0 = arith.constant 0 : i32
    return %arg0, %c0_i32 : i32, i32
  }
  func.func @transform_1(%arg0: i32) -> (i32, i32) {
    %c0_i32 = arith.constant 0 : i32
    %c0_i32_0 = arith.constant 0 : i32
    %c0_i32_1 = arith.constant 0 : i32
    return %c0_i32, %c0_i32_0 : i32, i32
  }
  func.func @transform_2(%arg0: i32) -> (i32, i32) {
    %c0_i32 = arith.constant 0 : i32
    %c0_i32_0 = arith.constant 0 : i32
    %c0_i32_1 = arith.constant 0 : i32
    return %c0_i32, %c0_i32_0 : i32, i32
  }
  func.func @transform_3(%arg0: i32) -> (i32, i32) {
    %c0_i32 = arith.constant 0 : i32
    %c0_i32_0 = arith.constant 0 : i32
    return %arg0, %c0_i32 : i32, i32
  }
  func.func @transform_4(%arg0: i32) -> (i32, i32, i32) {
    %c0_i32 = arith.constant 0 : i32
    %c0_i32_0 = arith.constant 0 : i32
    %c0_i32_1 = arith.constant 0 : i32
    return %arg0, %c0_i32, %c0_i32_0 : i32, i32, i32
  }
}

module attributes {stable_mosaic.version = 11 : i64} {
  func.func @_bn_add_relu_kernel(%arg0: i32, %arg1: memref<32x128xf32, #tpu.memory_space<vmem>>, %arg2: memref<32x128xf32, #tpu.memory_space<vmem>>, %arg3: memref<1x128xf32, #tpu.memory_space<vmem>>, %arg4: memref<1x128xf32, #tpu.memory_space<vmem>>, %arg5: memref<32x128xf32, #tpu.memory_space<vmem>>) attributes {dimension_semantics = [#tpu.dimension_semantics<parallel>], iteration_bounds = array<i64: 1>, scalar_prefetch = 0 : i64, scratch_operands = 0 : i64, tpu.core_type = #tpu.core_type<tc>, window_params = [{transform_indices = @transform_0, window_bounds = array<i64: 32, 128>}, {transform_indices = @transform_1, window_bounds = array<i64: 32, 128>}, {pipeline_mode = #tpu.pipeline_mode<synchronous>, transform_indices = @transform_2, window_bounds = array<i64: 1, 128>}, {pipeline_mode = #tpu.pipeline_mode<synchronous>, transform_indices = @transform_3, window_bounds = array<i64: 1, 128>}, {transform_indices = @transform_4, window_bounds = array<i64: 32, 128>}]} {
    %c0 = arith.constant 0 : index
    %c0_0 = arith.constant 0 : index
    %0 = vector.load %arg1[%c0, %c0_0] : memref<32x128xf32, #tpu.memory_space<vmem>>, vector<32x128xf32>
    %c0_1 = arith.constant 0 : index
    %c0_2 = arith.constant 0 : index
    %1 = vector.load %arg3[%c0_1, %c0_2] : memref<1x128xf32, #tpu.memory_space<vmem>>, vector<1x128xf32>
    %2 = vector.broadcast %1 : vector<1x128xf32> to vector<32x128xf32>
    %3 = arith.mulf %0, %2 : vector<32x128xf32>
    %c0_3 = arith.constant 0 : index
    %c0_4 = arith.constant 0 : index
    %4 = vector.load %arg4[%c0_3, %c0_4] : memref<1x128xf32, #tpu.memory_space<vmem>>, vector<1x128xf32>
    %5 = vector.broadcast %4 : vector<1x128xf32> to vector<32x128xf32>
    %6 = arith.addf %3, %5 : vector<32x128xf32>
    %c0_5 = arith.constant 0 : index
    %c0_6 = arith.constant 0 : index
    %7 = vector.load %arg2[%c0_5, %c0_6] : memref<32x128xf32, #tpu.memory_space<vmem>>, vector<32x128xf32>
    %8 = arith.addf %6, %7 : vector<32x128xf32>
    %cst = arith.constant 0.000000e+00 : f32
    %9 = vector.broadcast %cst : f32 to vector<32x128xf32>
    %10 = arith.maximumf %8, %9 : vector<32x128xf32>
    %c0_7 = arith.constant 0 : index
    %c0_8 = arith.constant 0 : index
    %11 = vector.load %arg5[%c0_7, %c0_8] : memref<32x128xf32, #tpu.memory_space<vmem>>, vector<32x128xf32>
    tpu.vector_store %arg5[%c0_7, %c0_8], %10 {strides = array<i32>} : memref<32x128xf32, #tpu.memory_space<vmem>>, vector<32x128xf32>,
    return
  }
  func.func @transform_0(%arg0: i32) -> (i32, i32) {
    %c0_i32 = arith.constant 0 : i32
    %c0_i32_0 = arith.constant 0 : i32
    return %arg0, %c0_i32 : i32, i32
  }
  func.func @transform_1(%arg0: i32) -> (i32, i32) {
    %c0_i32 = arith.constant 0 : i32
    %c0_i32_0 = arith.constant 0 : i32
    return %arg0, %c0_i32 : i32, i32
  }
  func.func @transform_2(%arg0: i32) -> (i32, i32) {
    %c0_i32 = arith.constant 0 : i32
    %c0_i32_0 = arith.constant 0 : i32
    %c0_i32_1 = arith.constant 0 : i32
    return %c0_i32, %c0_i32_0 : i32, i32
  }
  func.func @transform_3(%arg0: i32) -> (i32, i32) {
    %c0_i32 = arith.constant 0 : i32
    %c0_i32_0 = arith.constant 0 : i32
    %c0_i32_1 = arith.constant 0 : i32
    return %c0_i32, %c0_i32_0 : i32, i32
  }
  func.func @transform_4(%arg0: i32) -> (i32, i32) {
    %c0_i32 = arith.constant 0 : i32
    %c0_i32_0 = arith.constant 0 : i32
    return %arg0, %c0_i32 : i32, i32
  }
}

</mosaic_0001>

<llo_original>
// kernel: tile.13
$region0: #{tile.13}
  #allocation0 [shape = 's32[1]{0}', space=sflag, size = 0x4, scoped, tag = 'scoped memory for tile.13']
  %s0 = inlined_call_operand.vmem [shape: f32[8], index: 0, kind: input, shape index: {}]
  %s1 = inlined_call_operand.vmem [shape: f32[16,8], index: 1, kind: output, shape index: {}]
  // Predicated region
  $region2: #{tile.13} parent=0 // pred_check
    _
  $region3: #{tile.13} parent=0 // pred_check_branch
    %3 = sbr.rel (0) target = $region5
  $region4: #{tile.13} parent=0 // pred_region
    _
  $region5: #{tile.13} parent=0 // pred_fallthru
    _
  %v4 = vld [vmem:[%s0] ss:$0 sm:$0xff]
  %5 = vst [vmem:[%s1] sm:$0xff] %v4
  %s6 = scalar_lea.vmem %s1, 8
  %7 = vst [vmem:[%s6] sm:$0xff] %v4

// kernel: tile.14
$region0: #{tile.14}
  %s0 = inlined_call_operand.vmem [shape: f32[16,8], index: 0, kind: input, shape index: {}]
  %s1 = inlined_call_operand.vmem [shape: f32[1,128], index: 1, kind: output, shape index: {}]
  $region1: #{tile.14} parent=0
    #allocation0 [shape = 'u8[4096]{0}', space=vmem, size = 0x1000, scoped, tag = 'scoped mem for output reshape']
    %v2 = vld [vmem:[%s0] sm:$0x1]
    %vm3 = vcmask 64512
    %4 = vst.msk [vmem:[#allocation0] sm:$0x1] %vm3, %v2
    %s5 = scalar_lea.vmem %s0, 15
    %v6 = vld [vmem:[%s5] sm:$0x1]
    %7 = vrot.lane.b32.xlu0 %v6, 120
    %v8 = vpop.permute.xlu0 %7
    %vm9 = vcmask 1048512
    %10 = vst.msk [vmem:[#allocation0] sm:$0x1] %vm9, %v8
    %s11 = scalar_lea.vmem %s0, 14
    %v12 = vld [vmem:[%s11] sm:$0x1]
    %13 = vrot.lane.b32.xlu0 %v12, 112
    %v14 = vpop.permute.xlu0 %13
    %vm15 = vcmask 982912
    %16 = vst.msk [vmem:[#allocation0] sm:$0x1] %vm15, %v14
    %s17 = scalar_lea.vmem %s0, 13
    %v18 = vld [vmem:[%s17] sm:$0x1]
    %19 = vrot.lane.b32.xlu0 %v18, 104
    %v20 = vpop.permute.xlu0 %19
    %vm21 = vcmask 917312
    %22 = vst.msk [vmem:[#allocation0] sm:$0x1] %vm21, %v20
    %s23 = scalar_lea.vmem %s0, 12
    %v24 = vld [vmem:[%s23] sm:$0x1]
    %25 = vrot.lane.b32.xlu0 %v24, 96
    %v26 = vpop.permute.xlu0 %25
    %vm27 = vcmask 851712
    %28 = vst.msk [vmem:[#allocation0] sm:$0x1] %vm27, %v26
    %s29 = scalar_lea.vmem %s0, 11
    %v30 = vld [vmem:[%s29] sm:$0x1]
    %31 = vrot.lane.b32.xlu0 %v30, 88
    %v32 = vpop.permute.xlu0 %31
    %vm33 = vcmask 786112
    %34 = vst.msk [vmem:[#allocation0] sm:$0x1] %vm33, %v32
    %s35 = scalar_lea.vmem %s0, 10
    %v36 = vld [vmem:[%s35] sm:$0x1]
    %37 = vrot.lane.b32.xlu0 %v36, 80
    %v38 = vpop.permute.xlu0 %37
    %vm39 = vcmask 720512
    %40 = vst.msk [vmem:[#allocation0] sm:$0x1] %vm39, %v38
    %s41 = scalar_lea.vmem %s0, 9
    %v42 = vld [vmem:[%s41] sm:$0x1]
    %43 = vrot.lane.b32.xlu0 %v42, 72
    %v44 = vpop.permute.xlu0 %43
    %vm45 = vcmask 654912
    %46 = vst.msk [vmem:[#allocation0] sm:$0x1] %vm45, %v44
    %s47 = scalar_lea.vmem %s0, 8
    %v48 = vld [vmem:[%s47] sm:$0x1]
    %49 = vrot.lane.b32.xlu0 %v48, 64
    %v50 = vpop.permute.xlu0 %49
    %vm51 = vcmask 589312
    %52 = vst.msk [vmem:[#allocation0] sm:$0x1] %vm51, %v50
    %s53 = scalar_lea.vmem %s0, 7
    %v54 = vld [vmem:[%s53] sm:$0x1]
    %55 = vrot.lane.b32.xlu0 %v54, 56
    %v56 = vpop.permute.xlu0 %55
    %vm57 = vcmask 523712
    %58 = vst.msk [vmem:[#allocation0] sm:$0x1] %vm57, %v56
    %s59 = scalar_lea.vmem %s0, 6
    %v60 = vld [vmem:[%s59] sm:$0x1]
    %61 = vrot.lane.b32.xlu0 %v60, 48
    %v62 = vpop.permute.xlu0 %61
    %vm63 = vcmask 458112
    %64 = vst.msk [vmem:[#allocation0] sm:$0x1] %vm63, %v62
    %s65 = scalar_lea.vmem %s0, 5
    %v66 = vld [vmem:[%s65] sm:$0x1]
    %67 = vrot.lane.b32.xlu0 %v66, 40
    %v68 = vpop.permute.xlu0 %67
    %vm69 = vcmask 392512
    %70 = vst.msk [vmem:[#allocation0] sm:$0x1] %vm69, %v68
    %s71 = scalar_lea.vmem %s0, 4
    %v72 = vld [vmem:[%s71] sm:$0x1]
    %73 = vrot.lane.b32.xlu0 %v72, 32
    %v74 = vpop.permute.xlu0 %73
    %vm75 = vcmask 326912
    %76 = vst.msk [vmem:[#allocation0] sm:$0x1] %vm75, %v74
    %s77 = scalar_lea.vmem %s0, 3
    %v78 = vld [vmem:[%s77] sm:$0x1]
    %79 = vrot.lane.b32.xlu0 %v78, 24
    %v80 = vpop.permute.xlu0 %79
    %vm81 = vcmask 261312
    %82 = vst.msk [vmem:[#allocation0] sm:$0x1] %vm81, %v80
    %s83 = scalar_lea.vmem %s0, 2
    %v84 = vld [vmem:[%s83] sm:$0x1]
    %85 = vrot.lane.b32.xlu0 %v84, 16
    %v86 = vpop.permute.xlu0 %85
    %vm87 = vcmask 195712
    %88 = vst.msk [vmem:[#allocation0] sm:$0x1] %vm87, %v86
    %s89 = scalar_lea.vmem %s0, 1
    %v90 = vld [vmem:[%s89] sm:$0x1]
    %91 = vrot.lane.b32.xlu0 %v90, 8
    %v92 = vpop.permute.xlu0 %91
    %vm93 = vcmask 130112
    %94 = vst.msk [vmem:[#allocation0] sm:$0x1] %vm93, %v92
    %s96 = ssub.s32 2, 1
    %v97 = vld [vmem:[#allocation0] sm:%s96]
    %s99 = ssub.s32 2, 1
    %100 = vst [vmem:[%s1] sm:%s99] %v97

// kernel: basic_block_pallas.5
$region0: #{basic_block_pallas.5}
  #allocation0 [shape = 'u32[]', space=smem, size = 0x4, offset = 0x4, fixed_abs, tag = 'smem constant byte address 0x4 - core index']
  #allocation1 [shape = 'u32[72,128]{1,0:T(1,128)}', space=vmem, size = 0x9000, scoped, tag = 'internal scratch']
  %s0 = inlined_call_operand.vmem [shape: f32[32,128], index: 0, kind: input, shape index: {}]
  %s1 = inlined_call_operand.vmem [shape: f32[32,128], index: 1, kind: input, shape index: {}]
  %s2 = inlined_call_operand.vmem [shape: f32[1,128], index: 2, kind: input, shape index: {}]
  %s3 = inlined_call_operand.vmem [shape: f32[1,128], index: 3, kind: input, shape index: {}]
  %s4 = inlined_call_operand.vmem [shape: f32[32,128], index: 4, kind: output, shape index: {}]
  %s5 = sld [smem:[#allocation0]]
  $region26: #{basic_block_pallas.5} parent=0
    _
  %s7 = ssub.s32 1, %s5
  %s8 = scalar_select 0, %s7, %s5
  // Predicated region
  $region2: #{basic_block_pallas.5} parent=0 // pred_check
    _
  $region3: #{basic_block_pallas.5} parent=0 // pred_check_branch
    %10 = sbr.rel (0) target = $region5
  $region4: #{basic_block_pallas.5} parent=0 // pred_region
    _
  $region5: #{basic_block_pallas.5} parent=0 // pred_fallthru
    _
  // Predicated region
  $region6: #{basic_block_pallas.5} parent=0 // pred_check
    _
  $region7: #{basic_block_pallas.5} parent=0 // pred_check_branch
    %12 = sbr.rel (0) target = $region9
  $region8: #{basic_block_pallas.5} parent=0 // pred_region
    _
  $region9: #{basic_block_pallas.5} parent=0 // pred_fallthru
    _
  // Predicated region
  $region10: #{basic_block_pallas.5} parent=0 // pred_check
    _
  $region11: #{basic_block_pallas.5} parent=0 // pred_check_branch
    %14 = sbr.rel (0) target = $region13
  $region12: #{basic_block_pallas.5} parent=0 // pred_region
    _
  $region13: #{basic_block_pallas.5} parent=0 // pred_fallthru
    _
  // Predicated region
  $region14: #{basic_block_pallas.5} parent=0 // pred_check
    _
  $region15: #{basic_block_pallas.5} parent=0 // pred_check_branch
    %16 = sbr.rel (0) target = $region17
  $region16: #{basic_block_pallas.5} parent=0 // pred_region
    _
  $region17: #{basic_block_pallas.5} parent=0 // pred_fallthru
    _
  %v17 = vld [vmem:[%s0] sm:$0xff]
  %v18 = vld [vmem:[%s0 + $0x8] sm:$0xff]
  %v19 = vld [vmem:[%s0 + $0x10] sm:$0xff]
  %v20 = vld [vmem:[%s0 + $0x18] sm:$0xff]
  %v21 = vld [vmem:[%s2] sm:$0x1]
  %v23 = vperm.slane %v21, 0
  %v25 = vmul.f32 %v17, %v23
  %v26 = vmul.f32 %v18, %v23
  %v27 = vmul.f32 %v19, %v23
  %v28 = vmul.f32 %v20, %v23
  %v29 = vld [vmem:[%s3] sm:$0x1]
  %v31 = vperm.slane %v29, 0
  %v33 = vadd.f32 %v25, %v31
  %v34 = vadd.f32 %v26, %v31
  %v35 = vadd.f32 %v27, %v31
  %v36 = vadd.f32 %v28, %v31
  %v37 = vld [vmem:[%s1] sm:$0xff]
  %v38 = vld [vmem:[%s1 + $0x8] sm:$0xff]
  %v39 = vld [vmem:[%s1 + $0x10] sm:$0xff]
  %v40 = vld [vmem:[%s1 + $0x18] sm:$0xff]
  %v41 = vadd.f32 %v33, %v37
  %v42 = vadd.f32 %v34, %v38
  %v43 = vadd.f32 %v35, %v39
  %v44 = vadd.f32 %v36, %v40
  %v45 = vmax.f32 %v41, 0.0
  %v46 = vmax.f32 %v42, 0.0
  %v47 = vmax.f32 %v43, 0.0
  %v48 = vmax.f32 %v44, 0.0
  %49 = vst [vmem:[%s4] sm:$0xff] %v45
  %50 = vst [vmem:[%s4 + $0x8] sm:$0xff] %v46
  %51 = vst [vmem:[%s4 + $0x10] sm:$0xff] %v47
  %52 = vst [vmem:[%s4 + $0x18] sm:$0xff] %v48
  // Predicated region
  $region18: #{basic_block_pallas.5} parent=0 // pred_check
    _
  $region19: #{basic_block_pallas.5} parent=0 // pred_check_branch
    %54 = sbr.rel (0) target = $region21
  $region20: #{basic_block_pallas.5} parent=0 // pred_region
    _
  $region21: #{basic_block_pallas.5} parent=0 // pred_fallthru
    _
  // Predicated region
  $region22: #{basic_block_pallas.5} parent=0 // pred_check
    _
  $region23: #{basic_block_pallas.5} parent=0 // pred_check_branch
    %56 = sbr.rel (0) target = $region25
  $region24: #{basic_block_pallas.5} parent=0 // pred_region
    _
  $region25: #{basic_block_pallas.5} parent=0 // pred_fallthru
    _

// kernel: basic_block_pallas.4
$region0: #{basic_block_pallas.4}
  #allocation0 [shape = 'u32[]', space=smem, size = 0x4, offset = 0x4, fixed_abs, tag = 'smem constant byte address 0x4 - core index']
  #allocation1 [shape = 'u32[72,128]{1,0:T(1,128)}', space=vmem, size = 0x9000, scoped, tag = 'internal scratch']
  %s0 = inlined_call_operand.vmem [shape: f32[512,8], index: 0, kind: input, shape index: {}]
  %s1 = inlined_call_operand.vmem [shape: f32[72,8], index: 1, kind: input, shape index: {}]
  %s2 = inlined_call_operand.vmem [shape: f32[512,72], index: 2, kind: input, shape index: {}]
  %s3 = inlined_call_operand.vmem [shape: f32[1,8], index: 3, kind: input, shape index: {}]
  %s4 = inlined_call_operand.vmem [shape: f32[1,8], index: 4, kind: input, shape index: {}]
  %s5 = inlined_call_operand.vmem [shape: f32[512,8], index: 5, kind: output, shape index: {0}]
  %s6 = inlined_call_operand.vmem [shape: f32[1,2,8], index: 6, kind: output, shape index: {1}]
  %7 = xla_tuple %s5, %s6
  %s8 = sld [smem:[#allocation0]]
  $region38: #{basic_block_pallas.4} parent=0
    _
  %s10 = ssub.s32 1, %s8
  %s11 = scalar_select 0, %s10, %s8
  // Predicated region
  $region2: #{basic_block_pallas.4} parent=0 // pred_check
    _
  $region3: #{basic_block_pallas.4} parent=0 // pred_check_branch
    %13 = sbr.rel (0) target = $region5
  $region4: #{basic_block_pallas.4} parent=0 // pred_region
    _
  $region5: #{basic_block_pallas.4} parent=0 // pred_fallthru
    _
  // Predicated region
  $region6: #{basic_block_pallas.4} parent=0 // pred_check
    _
  $region7: #{basic_block_pallas.4} parent=0 // pred_check_branch
    %15 = sbr.rel (0) target = $region9
  $region8: #{basic_block_pallas.4} parent=0 // pred_region
    _
  $region9: #{basic_block_pallas.4} parent=0 // pred_fallthru
    _
  // Predicated region
  $region10: #{basic_block_pallas.4} parent=0 // pred_check
    _
  $region11: #{basic_block_pallas.4} parent=0 // pred_check_branch
    %17 = sbr.rel (0) target = $region13
  $region12: #{basic_block_pallas.4} parent=0 // pred_region
    _
  $region13: #{basic_block_pallas.4} parent=0 // pred_fallthru
    _
  // Predicated region
  $region14: #{basic_block_pallas.4} parent=0 // pred_check
    _
  $region15: #{basic_block_pallas.4} parent=0 // pred_check_branch
    %19 = sbr.rel (0) target = $region17
  $region16: #{basic_block_pallas.4} parent=0 // pred_region
    _
  $region17: #{basic_block_pallas.4} parent=0 // pred_fallthru
    _
  // Predicated region
  $region18: #{basic_block_pallas.4} parent=0 // pred_check
    _
  $region19: #{basic_block_pallas.4} parent=0 // pred_check_branch
    %21 = sbr.rel (0) target = $region21
  $region20: #{basic_block_pallas.4} parent=0 // pred_region
    _
  $region21: #{basic_block_pallas.4} parent=0 // pred_fallthru
    _
  %v22 = vld [vmem:[%s0] sm:$0xff]
  %v23 = vld [vmem:[%s0 + $0x8] sm:$0xff]
  %v24 = vld [vmem:[%s0 + $0x10] sm:$0xff]
  %v25 = vld [vmem:[%s0 + $0x18] sm:$0xff]
  %v26 = vld [vmem:[%s0 + $0x20] sm:$0xff]
  %v27 = vld [vmem:[%s0 + $0x28] sm:$0xff]
  %v28 = vld [vmem:[%s0 + $0x30] sm:$0xff]
  %v29 = vld [vmem:[%s0 + $0x38] sm:$0xff]
  %v30 = vld [vmem:[%s0 + $0x40] sm:$0xff]
  %v31 = vld [vmem:[%s0 + $0x48] sm:$0xff]
  %v32 = vld [vmem:[%s0 + $0x50] sm:$0xff]
  %v33 = vld [vmem:[%s0 + $0x58] sm:$0xff]
  %v34 = vld [vmem:[%s0 + $0x60] sm:$0xff]
  %v35 = vld [vmem:[%s0 + $0x68] sm:$0xff]
  %v36 = vld [vmem:[%s0 + $0x70] sm:$0xff]
  %v37 = vld [vmem:[%s0 + $0x78] sm:$0xff]
  %v38 = vld [vmem:[%s0 + $0x80] sm:$0xff]
  %v39 = vld [vmem:[%s0 + $0x88] sm:$0xff]
  %v40 = vld [vmem:[%s0 + $0x90] sm:$0xff]
  %v41 = vld [vmem:[%s0 + $0x98] sm:$0xff]
  %v42 = vld [vmem:[%s0 + $0xa0] sm:$0xff]
  %v43 = vld [vmem:[%s0 + $0xa8] sm:$0xff]
  %v44 = vld [vmem:[%s0 + $0xb0] sm:$0xff]
  %v45 = vld [vmem:[%s0 + $0xb8] sm:$0xff]
  %v46 = vld [vmem:[%s0 + $0xc0] sm:$0xff]
  %v47 = vld [vmem:[%s0 + $0xc8] sm:$0xff]
  %v48 = vld [vmem:[%s0 + $0xd0] sm:$0xff]
  %v49 = vld [vmem:[%s0 + $0xd8] sm:$0xff]
  %v50 = vld [vmem:[%s0 + $0xe0] sm:$0xff]
  %v51 = vld [vmem:[%s0 + $0xe8] sm:$0xff]
  %v52 = vld [vmem:[%s0 + $0xf0] sm:$0xff]
  %v53 = vld [vmem:[%s0 + $0xf8] sm:$0xff]
  %v54 = vld [vmem:[%s0 + $0x100] sm:$0xff]
  %v55 = vld [vmem:[%s0 + $0x108] sm:$0xff]
  %v56 = vld [vmem:[%s0 + $0x110] sm:$0xff]
  %v57 = vld [vmem:[%s0 + $0x118] sm:$0xff]
  %v58 = vld [vmem:[%s0 + $0x120] sm:$0xff]
  %v59 = vld [vmem:[%s0 + $0x128] sm:$0xff]
  %v60 = vld [vmem:[%s0 + $0x130] sm:$0xff]
  %v61 = vld [vmem:[%s0 + $0x138] sm:$0xff]
  %v62 = vld [vmem:[%s0 + $0x140] sm:$0xff]
  %v63 = vld [vmem:[%s0 + $0x148] sm:$0xff]
  %v64 = vld [vmem:[%s0 + $0x150] sm:$0xff]
  %v65 = vld [vmem:[%s0 + $0x158] sm:$0xff]
  %v66 = vld [vmem:[%s0 + $0x160] sm:$0xff]
  %v67 = vld [vmem:[%s0 + $0x168] sm:$0xff]
  %v68 = vld [vmem:[%s0 + $0x170] sm:$0xff]
  %v69 = vld [vmem:[%s0 + $0x178] sm:$0xff]
  %v70 = vld [vmem:[%s0 + $0x180] sm:$0xff]
  %v71 = vld [vmem:[%s0 + $0x188] sm:$0xff]
  %v72 = vld [vmem:[%s0 + $0x190] sm:$0xff]
  %v73 = vld [vmem:[%s0 + $0x198] sm:$0xff]
  %v74 = vld [vmem:[%s0 + $0x1a0] sm:$0xff]
  %v75 = vld [vmem:[%s0 + $0x1a8] sm:$0xff]
  %v76 = vld [vmem:[%s0 + $0x1b0] sm:$0xff]
  %v77 = vld [vmem:[%s0 + $0x1b8] sm:$0xff]
  %v78 = vld [vmem:[%s0 + $0x1c0] sm:$0xff]
  %v79 = vld [vmem:[%s0 + $0x1c8] sm:$0xff]
  %v80 = vld [vmem:[%s0 + $0x1d0] sm:$0xff]
  %v81 = vld [vmem:[%s0 + $0x1d8] sm:$0xff]
  %v82 = vld [vmem:[%s0 + $0x1e0] sm:$0xff]
  %v83 = vld [vmem:[%s0 + $0x1e8] sm:$0xff]
  %v84 = vld [vmem:[%s0 + $0x1f0] sm:$0xff]
  %v85 = vld [vmem:[%s0 + $0x1f8] sm:$0xff]
  %v86 = vld [vmem:[%s3] sm:$0x1]
  %v88 = vperm.slane %v86, 0
  %v90 = vmul.f32 %v22, %v88
  %v91 = vmul.f32 %v23, %v88
  %v92 = vmul.f32 %v24, %v88
  %v93 = vmul.f32 %v25, %v88
  %v94 = vmul.f32 %v26, %v88
  %v95 = vmul.f32 %v27, %v88
  %v96 = vmul.f32 %v28, %v88
  %v97 = vmul.f32 %v29, %v88
  %v98 = vmul.f32 %v30, %v88
  %v99 = vmul.f32 %v31, %v88
  %v100 = vmul.f32 %v32, %v88
  %v101 = vmul.f32 %v33, %v88
  %v102 = vmul.f32 %v34, %v88
  %v103 = vmul.f32 %v35, %v88
  %v104 = vmul.f32 %v36, %v88
  %v105 = vmul.f32 %v37, %v88
  %v106 = vmul.f32 %v38, %v88
  %v107 = vmul.f32 %v39, %v88
  %v108 = vmul.f32 %v40, %v88
  %v109 = vmul.f32 %v41, %v88
  %v110 = vmul.f32 %v42, %v88
  %v111 = vmul.f32 %v43, %v88
  %v112 = vmul.f32 %v44, %v88
  %v113 = vmul.f32 %v45, %v88
  %v114 = vmul.f32 %v46, %v88
  %v115 = vmul.f32 %v47, %v88
  %v116 = vmul.f32 %v48, %v88
  %v117 = vmul.f32 %v49, %v88
  %v118 = vmul.f32 %v50, %v88
  %v119 = vmul.f32 %v51, %v88
  %v120 = vmul.f32 %v52, %v88
  %v121 = vmul.f32 %v53, %v88
  %v122 = vmul.f32 %v54, %v88
  %v123 = vmul.f32 %v55, %v88
  %v124 = vmul.f32 %v56, %v88
  %v125 = vmul.f32 %v57, %v88
  %v126 = vmul.f32 %v58, %v88
  %v127 = vmul.f32 %v59, %v88
  %v128 = vmul.f32 %v60, %v88
  %v129 = vmul.f32 %v61, %v88
  %v130 = vmul.f32 %v62, %v88
  %v131 = vmul.f32 %v63, %v88
  %v132 = vmul.f32 %v64, %v88
  %v133 = vmul.f32 %v65, %v88
  %v134 = vmul.f32 %v66, %v88
  %v135 = vmul.f32 %v67, %v88
  %v136 = vmul.f32 %v68, %v88
  %v137 = vmul.f32 %v69, %v88
  %v138 = vmul.f32 %v70, %v88
  %v139 = vmul.f32 %v71, %v88
  %v140 = vmul.f32 %v72, %v88
  %v141 = vmul.f32 %v73, %v88
  %v142 = vmul.f32 %v74, %v88
  %v143 = vmul.f32 %v75, %v88
  %v144 = vmul.f32 %v76, %v88
  %v145 = vmul.f32 %v77, %v88
  %v146 = vmul.f32 %v78, %v88
  %v147 = vmul.f32 %v79, %v88
  %v148 = vmul.f32 %v80, %v88
  %v149 = vmul.f32 %v81, %v88
  %v150 = vmul.f32 %v82, %v88
  %v151 = vmul.f32 %v83, %v88
  %v152 = vmul.f32 %v84, %v88
  %v153 = vmul.f32 %v85, %v88
  %v154 = vld [vmem:[%s4] sm:$0x1]
  %v156 = vperm.slane %v154, 0
  %v158 = vadd.f32 %v90, %v156
  %v159 = vadd.f32 %v91, %v156
  %v160 = vadd.f32 %v92, %v156
  %v161 = vadd.f32 %v93, %v156
  %v162 = vadd.f32 %v94, %v156
  %v163 = vadd.f32 %v95, %v156
  %v164 = vadd.f32 %v96, %v156
  %v165 = vadd.f32 %v97, %v156
  %v166 = vadd.f32 %v98, %v156
  %v167 = vadd.f32 %v99, %v156
  %v168 = vadd.f32 %v100, %v156
  %v169 = vadd.f32 %v101, %v156
  %v170 = vadd.f32 %v102, %v156
  %v171 = vadd.f32 %v103, %v156
  %v172 = vadd.f32 %v104, %v156
  %v173 = vadd.f32 %v105, %v156
  %v174 = vadd.f32 %v106, %v156
  %v175 = vadd.f32 %v107, %v156
  %v176 = vadd.f32 %v108, %v156
  %v177 = vadd.f32 %v109, %v156
  %v178 = vadd.f32 %v110, %v156
  %v179 = vadd.f32 %v111, %v156
  %v180 = vadd.f32 %v112, %v156
  %v181 = vadd.f32 %v113, %v156
  %v182 = vadd.f32 %v114, %v156
  %v183 = vadd.f32 %v115, %v156
  %v184 = vadd.f32 %v116, %v156
  %v185 = vadd.f32 %v117, %v156
  %v186 = vadd.f32 %v118, %v156
  %v187 = vadd.f32 %v119, %v156
  %v188 = vadd.f32 %v120, %v156
  %v189 = vadd.f32 %v121, %v156
  %v190 = vadd.f32 %v122, %v156
  %v191 = vadd.f32 %v123, %v156
  %v192 = vadd.f32 %v124, %v156
  %v193 = vadd.f32 %v125, %v156
  %v194 = vadd.f32 %v126, %v156
  %v195 = vadd.f32 %v127, %v156
  %v196 = vadd.f32 %v128, %v156
  %v197 = vadd.f32 %v129, %v156
  %v198 = vadd.f32 %v130, %v156
  %v199 = vadd.f32 %v131, %v156
  %v200 = vadd.f32 %v132, %v156
  %v201 = vadd.f32 %v133, %v156
  %v202 = vadd.f32 %v134, %v156
  %v203 = vadd.f32 %v135, %v156
  %v204 = vadd.f32 %v136, %v156
  %v205 = vadd.f32 %v137, %v156
  %v206 = vadd.f32 %v138, %v156
  %v207 = vadd.f32 %v139, %v156
  %v208 = vadd.f32 %v140, %v156
  %v209 = vadd.f32 %v141, %v156
  %v210 = vadd.f32 %v142, %v156
  %v211 = vadd.f32 %v143, %v156
  %v212 = vadd.f32 %v144, %v156
  %v213 = vadd.f32 %v145, %v156
  %v214 = vadd.f32 %v146, %v156
  %v215 = vadd.f32 %v147, %v156
  %v216 = vadd.f32 %v148, %v156
  %v217 = vadd.f32 %v149, %v156
  %v218 = vadd.f32 %v150, %v156
  %v219 = vadd.f32 %v151, %v156
  %v220 = vadd.f32 %v152, %v156
  %v221 = vadd.f32 %v153, %v156
  %v222 = vmax.f32 %v158, 0.0
  %v223 = vmax.f32 %v159, 0.0
  %v224 = vmax.f32 %v160, 0.0
  %v225 = vmax.f32 %v161, 0.0
  %v226 = vmax.f32 %v162, 0.0
  %v227 = vmax.f32 %v163, 0.0
  %v228 = vmax.f32 %v164, 0.0
  %v229 = vmax.f32 %v165, 0.0
  %v230 = vmax.f32 %v166, 0.0
  %v231 = vmax.f32 %v167, 0.0
  %v232 = vmax.f32 %v168, 0.0
  %v233 = vmax.f32 %v169, 0.0
  %v234 = vmax.f32 %v170, 0.0
  %v235 = vmax.f32 %v171, 0.0
  %v236 = vmax.f32 %v172, 0.0
  %v237 = vmax.f32 %v173, 0.0
  %v238 = vmax.f32 %v174, 0.0
  %v239 = vmax.f32 %v175, 0.0
  %v240 = vmax.f32 %v176, 0.0
  %v241 = vmax.f32 %v177, 0.0
  %v242 = vmax.f32 %v178, 0.0
  %v243 = vmax.f32 %v179, 0.0
  %v244 = vmax.f32 %v180, 0.0
  %v245 = vmax.f32 %v181, 0.0
  %v246 = vmax.f32 %v182, 0.0
  %v247 = vmax.f32 %v183, 0.0
  %v248 = vmax.f32 %v184, 0.0
  %v249 = vmax.f32 %v185, 0.0
  %v250 = vmax.f32 %v186, 0.0
  %v251 = vmax.f32 %v187, 0.0
  %v252 = vmax.f32 %v188, 0.0
  %v253 = vmax.f32 %v189, 0.0
  %v254 = vmax.f32 %v190, 0.0
  %v255 = vmax.f32 %v191, 0.0
  %v256 = vmax.f32 %v192, 0.0
  %v257 = vmax.f32 %v193, 0.0
  %v258 = vmax.f32 %v194, 0.0
  %v259 = vmax.f32 %v195, 0.0
  %v260 = vmax.f32 %v196, 0.0
  %v261 = vmax.f32 %v197, 0.0
  %v262 = vmax.f32 %v198, 0.0
  %v263 = vmax.f32 %v199, 0.0
  %v264 = vmax.f32 %v200, 0.0
  %v265 = vmax.f32 %v201, 0.0
  %v266 = vmax.f32 %v202, 0.0
  %v267 = vmax.f32 %v203, 0.0
  %v268 = vmax.f32 %v204, 0.0
  %v269 = vmax.f32 %v205, 0.0
  %v270 = vmax.f32 %v206, 0.0
  %v271 = vmax.f32 %v207, 0.0
  %v272 = vmax.f32 %v208, 0.0
  %v273 = vmax.f32 %v209, 0.0
  %v274 = vmax.f32 %v210, 0.0
  %v275 = vmax.f32 %v211, 0.0
  %v276 = vmax.f32 %v212, 0.0
  %v277 = vmax.f32 %v213, 0.0
  %v278 = vmax.f32 %v214, 0.0
  %v279 = vmax.f32 %v215, 0.0
  %v280 = vmax.f32 %v216, 0.0
  %v281 = vmax.f32 %v217, 0.0
  %v282 = vmax.f32 %v218, 0.0
  %v283 = vmax.f32 %v219, 0.0
  %v284 = vmax.f32 %v220, 0.0
  %v285 = vmax.f32 %v221, 0.0
  %v286 = vrot.slane %v222, 7
  %v287 = vrot.slane %v223, 7
  %v288 = vrot.slane %v224, 7
  %v289 = vrot.slane %v225, 7
  %v290 = vrot.slane %v226, 7
  %v291 = vrot.slane %v227, 7
  %v292 = vrot.slane %v228, 7
  %v293 = vrot.slane %v229, 7
  %v294 = vrot.slane %v230, 7
  %v295 = vrot.slane %v231, 7
  %v296 = vrot.slane %v232, 7
  %v297 = vrot.slane %v233, 7
  %v298 = vrot.slane %v234, 7
  %v299 = vrot.slane %v235, 7
  %v300 = vrot.slane %v236, 7
  %v301 = vrot.slane %v237, 7
  %v302 = vrot.slane %v238, 7
  %v303 = vrot.slane %v239, 7
  %v304 = vrot.slane %v240, 7
  %v305 = vrot.slane %v241, 7
  %v306 = vrot.slane %v242, 7
  %v307 = vrot.slane %v243, 7
  %v308 = vrot.slane %v244, 7
  %v309 = vrot.slane %v245, 7
  %v310 = vrot.slane %v246, 7
  %v311 = vrot.slane %v247, 7
  %v312 = vrot.slane %v248, 7
  %v313 = vrot.slane %v249, 7
  %v314 = vrot.slane %v250, 7
  %v315 = vrot.slane %v251, 7
  %v316 = vrot.slane %v252, 7
  %v317 = vrot.slane %v253, 7
  %v318 = vrot.slane %v254, 7
  %v319 = vrot.slane %v255, 7
  %v320 = vrot.slane %v256, 7
  %v321 = vrot.slane %v257, 7
  %v322 = vrot.slane %v258, 7
  %v323 = vrot.slane %v259, 7
  %v324 = vrot.slane %v260, 7
  %v325 = vrot.slane %v261, 7
  %v326 = vrot.slane %v262, 7
  %v327 = vrot.slane %v263, 7
  %v328 = vrot.slane %v264, 7
  %v329 = vrot.slane %v265, 7
  %v330 = vrot.slane %v266, 7
  %v331 = vrot.slane %v267, 7
  %v332 = vrot.slane %v268, 7
  %v333 = vrot.slane %v269, 7
  %v334 = vrot.slane %v270, 7
  %v335 = vrot.slane %v271, 7
  %v336 = vrot.slane %v272, 7
  %v337 = vrot.slane %v273, 7
  %v338 = vrot.slane %v274, 7
  %v339 = vrot.slane %v275, 7
  %v340 = vrot.slane %v276, 7
  %v341 = vrot.slane %v277, 7
  %v342 = vrot.slane %v278, 7
  %v343 = vrot.slane %v279, 7
  %v344 = vrot.slane %v280, 7
  %v345 = vrot.slane %v281, 7
  %v346 = vrot.slane %v282, 7
  %v347 = vrot.slane %v283, 7
  %v348 = vrot.slane %v284, 7
  %v349 = vrot.slane %v285, 7
  %v350 = vlaneseq
  %v351 = vshrl.u32 %v350, 7
  %vm352 = vcmp.lt.s32.totalorder %v351, 1
  %v353 = vsel %vm352, %v348, %v349
  %v354 = vsel %vm352, %v347, %v348
  %v355 = vsel %vm352, %v346, %v347
  %v356 = vsel %vm352, %v345, %v346
  %v357 = vsel %vm352, %v344, %v345
  %v358 = vsel %vm352, %v343, %v344
  %v359 = vsel %vm352, %v342, %v343
  %v360 = vsel %vm352, %v341, %v342
  %v361 = vsel %vm352, %v340, %v341
  %v362 = vsel %vm352, %v339, %v340
  %v363 = vsel %vm352, %v338, %v339
  %v364 = vsel %vm352, %v337, %v338
  %v365 = vsel %vm352, %v336, %v337
  %v366 = vsel %vm352, %v335, %v336
  %v367 = vsel %vm352, %v334, %v335
  %v368 = vsel %vm352, %v333, %v334
  %v369 = vsel %vm352, %v332, %v333
  %v370 = vsel %vm352, %v331, %v332
  %v371 = vsel %vm352, %v330, %v331
  %v372 = vsel %vm352, %v329, %v330
  %v373 = vsel %vm352, %v328, %v329
  %v374 = vsel %vm352, %v327, %v328
  %v375 = vsel %vm352, %v326, %v327
  %v376 = vsel %vm352, %v325, %v326
  %v377 = vsel %vm352, %v324, %v325
  %v378 = vsel %vm352, %v323, %v324
  %v379 = vsel %vm352, %v322, %v323
  %v380 = vsel %vm352, %v321, %v322
  %v381 = vsel %vm352, %v320, %v321
  %v382 = vsel %vm352, %v319, %v320
  %v383 = vsel %vm352, %v318, %v319
  %v384 = vsel %vm352, %v317, %v318
  %v385 = vsel %vm352, %v316, %v317
  %v386 = vsel %vm352, %v315, %v316
  %v387 = vsel %vm352, %v314, %v315
  %v388 = vsel %vm352, %v313, %v314
  %v389 = vsel %vm352, %v312, %v313
  %v390 = vsel %vm352, %v311, %v312
  %v391 = vsel %vm352, %v310, %v311
  %v392 = vsel %vm352, %v309, %v310
  %v393 = vsel %vm352, %v308, %v309
  %v394 = vsel %vm352, %v307, %v308
  %v395 = vsel %vm352, %v306, %v307
  %v396 = vsel %vm352, %v305, %v306
  %v397 = vsel %vm352, %v304, %v305
  %v398 = vsel %vm352, %v303, %v304
  %v399 = vsel %vm352, %v302, %v303
  %v400 = vsel %vm352, %v301, %v302
  %v401 = vsel %vm352, %v300, %v301
  %v402 = vsel %vm352, %v299, %v300
  %v403 = vsel %vm352, %v298, %v299
  %v404 = vsel %vm352, %v297, %v298
  %v405 = vsel %vm352, %v296, %v297
  %v406 = vsel %vm352, %v295, %v296
  %v407 = vsel %vm352, %v294, %v295
  %v408 = vsel %vm352, %v293, %v294
  %v409 = vsel %vm352, %v292, %v293
  %v410 = vsel %vm352, %v291, %v292
  %v411 = vsel %vm352, %v290, %v291
  %v412 = vsel %vm352, %v289, %v290
  %v413 = vsel %vm352, %v288, %v289
  %v414 = vsel %vm352, %v287, %v288
  %v415 = vsel %vm352, %v286, %v287
  %v416 = vsel %vm352, %v349, %v286
  %v417 = vrot.slane %v222, 1
  %v418 = vrot.slane %v223, 1
  %v419 = vrot.slane %v224, 1
  %v420 = vrot.slane %v225, 1
  %v421 = vrot.slane %v226, 1
  %v422 = vrot.slane %v227, 1
  %v423 = vrot.slane %v228, 1
  %v424 = vrot.slane %v229, 1
  %v425 = vrot.slane %v230, 1
  %v426 = vrot.slane %v231, 1
  %v427 = vrot.slane %v232, 1
  %v428 = vrot.slane %v233, 1
  %v429 = vrot.slane %v234, 1
  %v430 = vrot.slane %v235, 1
  %v431 = vrot.slane %v236, 1
  %v432 = vrot.slane %v237, 1
  %v433 = vrot.slane %v238, 1
  %v434 = vrot.slane %v239, 1
  %v435 = vrot.slane %v240, 1
  %v436 = vrot.slane %v241, 1
  %v437 = vrot.slane %v242, 1
  %v438 = vrot.slane %v243, 1
  %v439 = vrot.slane %v244, 1
  %v440 = vrot.slane %v245, 1
  %v441 = vrot.slane %v246, 1
  %v442 = vrot.slane %v247, 1
  %v443 = vrot.slane %v248, 1
  %v444 = vrot.slane %v249, 1
  %v445 = vrot.slane %v250, 1
  %v446 = vrot.slane %v251, 1
  %v447 = vrot.slane %v252, 1
  %v448 = vrot.slane %v253, 1
  %v449 = vrot.slane %v254, 1
  %v450 = vrot.slane %v255, 1
  %v451 = vrot.slane %v256, 1
  %v452 = vrot.slane %v257, 1
  %v453 = vrot.slane %v258, 1
  %v454 = vrot.slane %v259, 1
  %v455 = vrot.slane %v260, 1
  %v456 = vrot.slane %v261, 1
  %v457 = vrot.slane %v262, 1
  %v458 = vrot.slane %v263, 1
  %v459 = vrot.slane %v264, 1
  %v460 = vrot.slane %v265, 1
  %v461 = vrot.slane %v266, 1
  %v462 = vrot.slane %v267, 1
  %v463 = vrot.slane %v268, 1
  %v464 = vrot.slane %v269, 1
  %v465 = vrot.slane %v270, 1
  %v466 = vrot.slane %v271, 1
  %v467 = vrot.slane %v272, 1
  %v468 = vrot.slane %v273, 1
  %v469 = vrot.slane %v274, 1
  %v470 = vrot.slane %v275, 1
  %v471 = vrot.slane %v276, 1
  %v472 = vrot.slane %v277, 1
  %v473 = vrot.slane %v278, 1
  %v474 = vrot.slane %v279, 1
  %v475 = vrot.slane %v280, 1
  %v476 = vrot.slane %v281, 1
  %v477 = vrot.slane %v282, 1
  %v478 = vrot.slane %v283, 1
  %v479 = vrot.slane %v284, 1
  %v480 = vrot.slane %v285, 1
  %vm481 = vcmp.lt.s32.totalorder %v351, 7
  %v482 = vsel %vm481, %v479, %v480
  %v483 = vsel %vm481, %v478, %v479
  %v484 = vsel %vm481, %v477, %v478
  %v485 = vsel %vm481, %v476, %v477
  %v486 = vsel %vm481, %v475, %v476
  %v487 = vsel %vm481, %v474, %v475
  %v488 = vsel %vm481, %v473, %v474
  %v489 = vsel %vm481, %v472, %v473
  %v490 = vsel %vm481, %v471, %v472
  %v491 = vsel %vm481, %v470, %v471
  %v492 = vsel %vm481, %v469, %v470
  %v493 = vsel %vm481, %v468, %v469
  %v494 = vsel %vm481, %v467, %v468
  %v495 = vsel %vm481, %v466, %v467
  %v496 = vsel %vm481, %v465, %v466
  %v497 = vsel %vm481, %v464, %v465
  %v498 = vsel %vm481, %v463, %v464
  %v499 = vsel %vm481, %v462, %v463
  %v500 = vsel %vm481, %v461, %v462
  %v501 = vsel %vm481, %v460, %v461
  %v502 = vsel %vm481, %v459, %v460
  %v503 = vsel %vm481, %v458, %v459
  %v504 = vsel %vm481, %v457, %v458
  %v505 = vsel %vm481, %v456, %v457
  %v506 = vsel %vm481, %v455, %v456
  %v507 = vsel %vm481, %v454, %v455
  %v508 = vsel %vm481, %v453, %v454
  %v509 = vsel %vm481, %v452, %v453
  %v510 = vsel %vm481, %v451, %v452
  %v511 = vsel %vm481, %v450, %v451
  %v512 = vsel %vm481, %v449, %v450
  %v513 = vsel %vm481, %v448, %v449
  %v514 = vsel %vm481, %v447, %v448
  %v515 = vsel %vm481, %v446, %v447
  %v516 = vsel %vm481, %v445, %v446
  %v517 = vsel %vm481, %v444, %v445
  %v518 = vsel %vm481, %v443, %v444
  %v519 = vsel %vm481, %v442, %v443
  %v520 = vsel %vm481, %v441, %v442
  %v521 = vsel %vm481, %v440, %v441
  %v522 = vsel %vm481, %v439, %v440
  %v523 = vsel %vm481, %v438, %v439
  %v524 = vsel %vm481, %v437, %v438
  %v525 = vsel %vm481, %v436, %v437
  %v526 = vsel %vm481, %v435, %v436
  %v527 = vsel %vm481, %v434, %v435
  %v528 = vsel %vm481, %v433, %v434
  %v529 = vsel %vm481, %v432, %v433
  %v530 = vsel %vm481, %v431, %v432
  %v531 = vsel %vm481, %v430, %v431
  %v532 = vsel %vm481, %v429, %v430
  %v533 = vsel %vm481, %v428, %v429
  %v534 = vsel %vm481, %v427, %v428
  %v535 = vsel %vm481, %v426, %v427
  %v536 = vsel %vm481, %v425, %v426
  %v537 = vsel %vm481, %v424, %v425
  %v538 = vsel %vm481, %v423, %v424
  %v539 = vsel %vm481, %v422, %v423
  %v540 = vsel %vm481, %v421, %v422
  %v541 = vsel %vm481, %v420, %v421
  %v542 = vsel %vm481, %v419, %v420
  %v543 = vsel %vm481, %v418, %v419
  %v544 = vsel %vm481, %v417, %v418
  %v545 = vsel %vm481, %v480, %v417
  %610 = vrot.lane.b32.xlu0 %v284, 8
  %v611 = vpop.permute.xlu0 %610
  %612 = vrot.lane.b32.xlu0 %v285, 8
  %v613 = vpop.permute.xlu0 %612
  %614 = vrot.lane.b32.xlu0 %v222, 8
  %v615 = vpop.permute.xlu0 %614
  %616 = vrot.lane.b32.xlu0 %v223, 8
  %v617 = vpop.permute.xlu0 %616
  %618 = vrot.lane.b32.xlu0 %v224, 8
  %v619 = vpop.permute.xlu0 %618
  %620 = vrot.lane.b32.xlu0 %v225, 8
  %v621 = vpop.permute.xlu0 %620
  %622 = vrot.lane.b32.xlu0 %v226, 8
  %v623 = vpop.permute.xlu0 %622
  %624 = vrot.lane.b32.xlu0 %v227, 8
  %v625 = vpop.permute.xlu0 %624
  %626 = vrot.lane.b32.xlu0 %v228, 8
  %v627 = vpop.permute.xlu0 %626
  %628 = vrot.lane.b32.xlu0 %v229, 8
  %v629 = vpop.permute.xlu0 %628
  %630 = vrot.lane.b32.xlu0 %v230, 8
  %v631 = vpop.permute.xlu0 %630
  %632 = vrot.lane.b32.xlu0 %v231, 8
  %v633 = vpop.permute.xlu0 %632
  %634 = vrot.lane.b32.xlu0 %v232, 8
  %v635 = vpop.permute.xlu0 %634
  %636 = vrot.lane.b32.xlu0 %v233, 8
  %v637 = vpop.permute.xlu0 %636
  %638 = vrot.lane.b32.xlu0 %v234, 8
  %v639 = vpop.permute.xlu0 %638
  %640 = vrot.lane.b32.xlu0 %v235, 8
  %v641 = vpop.permute.xlu0 %640
  %642 = vrot.lane.b32.xlu0 %v236, 8
  %v643 = vpop.permute.xlu0 %642
  %644 = vrot.lane.b32.xlu0 %v237, 8
  %v645 = vpop.permute.xlu0 %644
  %646 = vrot.lane.b32.xlu0 %v238, 8
  %v647 = vpop.permute.xlu0 %646
  %648 = vrot.lane.b32.xlu0 %v239, 8
  %v649 = vpop.permute.xlu0 %648
  %650 = vrot.lane.b32.xlu0 %v240, 8
  %v651 = vpop.permute.xlu0 %650
  %652 = vrot.lane.b32.xlu0 %v241, 8
  %v653 = vpop.permute.xlu0 %652
  %654 = vrot.lane.b32.xlu0 %v242, 8
  %v655 = vpop.permute.xlu0 %654
  %656 = vrot.lane.b32.xlu0 %v243, 8
  %v657 = vpop.permute.xlu0 %656
  %658 = vrot.lane.b32.xlu0 %v244, 8
  %v659 = vpop.permute.xlu0 %658
  %660 = vrot.lane.b32.xlu0 %v245, 8
  %v661 = vpop.permute.xlu0 %660
  %662 = vrot.lane.b32.xlu0 %v246, 8
  %v663 = vpop.permute.xlu0 %662
  %664 = vrot.lane.b32.xlu0 %v247, 8
  %v665 = vpop.permute.xlu0 %664
  %666 = vrot.lane.b32.xlu0 %v248, 8
  %v667 = vpop.permute.xlu0 %666
  %668 = vrot.lane.b32.xlu0 %v249, 8
  %v669 = vpop.permute.xlu0 %668
  %670 = vrot.lane.b32.xlu0 %v250, 8
  %v671 = vpop.permute.xlu0 %670
  %672 = vrot.lane.b32.xlu0 %v251, 8
  %v673 = vpop.permute.xlu0 %672
  %674 = vrot.lane.b32.xlu0 %v252, 8
  %v675 = vpop.permute.xlu0 %674
  %676 = vrot.lane.b32.xlu0 %v253, 8
  %v677 = vpop.permute.xlu0 %676
  %678 = vrot.lane.b32.xlu0 %v254, 8
  %v679 = vpop.permute.xlu0 %678
  %680 = vrot.lane.b32.xlu0 %v255, 8
  %v681 = vpop.permute.xlu0 %680
  %682 = vrot.lane.b32.xlu0 %v256, 8
  %v683 = vpop.permute.xlu0 %682
  %684 = vrot.lane.b32.xlu0 %v257, 8
  %v685 = vpop.permute.xlu0 %684
  %686 = vrot.lane.b32.xlu0 %v258, 8
  %v687 = vpop.permute.xlu0 %686
  %688 = vrot.lane.b32.xlu0 %v259, 8
  %v689 = vpop.permute.xlu0 %688
  %690 = vrot.lane.b32.xlu0 %v260, 8
  %v691 = vpop.permute.xlu0 %690
  %692 = vrot.lane.b32.xlu0 %v261, 8
  %v693 = vpop.permute.xlu0 %692
  %694 = vrot.lane.b32.xlu0 %v262, 8
  %v695 = vpop.permute.xlu0 %694
  %696 = vrot.lane.b32.xlu0 %v263, 8
  %v697 = vpop.permute.xlu0 %696
  %698 = vrot.lane.b32.xlu0 %v264, 8
  %v699 = vpop.permute.xlu0 %698
  %700 = vrot.lane.b32.xlu0 %v265, 8
  %v701 = vpop.permute.xlu0 %700
  %702 = vrot.lane.b32.xlu0 %v266, 8
  %v703 = vpop.permute.xlu0 %702
  %704 = vrot.lane.b32.xlu0 %v267, 8
  %v705 = vpop.permute.xlu0 %704
  %706 = vrot.lane.b32.xlu0 %v268, 8
  %v707 = vpop.permute.xlu0 %706
  %708 = vrot.lane.b32.xlu0 %v269, 8
  %v709 = vpop.permute.xlu0 %708
  %710 = vrot.lane.b32.xlu0 %v270, 8
  %v711 = vpop.permute.xlu0 %710
  %712 = vrot.lane.b32.xlu0 %v271, 8
  %v713 = vpop.permute.xlu0 %712
  %714 = vrot.lane.b32.xlu0 %v272, 8
  %v715 = vpop.permute.xlu0 %714
  %716 = vrot.lane.b32.xlu0 %v273, 8
  %v717 = vpop.permute.xlu0 %716
  %718 = vrot.lane.b32.xlu0 %v274, 8
  %v719 = vpop.permute.xlu0 %718
  %720 = vrot.lane.b32.xlu0 %v275, 8
  %v721 = vpop.permute.xlu0 %720
  %722 = vrot.lane.b32.xlu0 %v276, 8
  %v723 = vpop.permute.xlu0 %722
  %724 = vrot.lane.b32.xlu0 %v277, 8
  %v725 = vpop.permute.xlu0 %724
  %726 = vrot.lane.b32.xlu0 %v278, 8
  %v727 = vpop.permute.xlu0 %726
  %728 = vrot.lane.b32.xlu0 %v279, 8
  %v729 = vpop.permute.xlu0 %728
  %730 = vrot.lane.b32.xlu0 %v280, 8
  %v731 = vpop.permute.xlu0 %730
  %732 = vrot.lane.b32.xlu0 %v281, 8
  %v733 = vpop.permute.xlu0 %732
  %734 = vrot.lane.b32.xlu0 %v282, 8
  %v735 = vpop.permute.xlu0 %734
  %736 = vrot.lane.b32.xlu0 %v283, 8
  %v737 = vpop.permute.xlu0 %736
  %866 = vrot.lane.b32.xlu0 %v482, 16
  %v867 = vpop.permute.xlu0 %866
  %868 = vrot.lane.b32.xlu0 %v545, 16
  %v869 = vpop.permute.xlu0 %868
  %870 = vrot.lane.b32.xlu0 %v544, 16
  %v871 = vpop.permute.xlu0 %870
  %872 = vrot.lane.b32.xlu0 %v543, 16
  %v873 = vpop.permute.xlu0 %872
  %874 = vrot.lane.b32.xlu0 %v542, 16
  %v875 = vpop.permute.xlu0 %874
  %876 = vrot.lane.b32.xlu0 %v541, 16
  %v877 = vpop.permute.xlu0 %876
  %878 = vrot.lane.b32.xlu0 %v540, 16
  %v879 = vpop.permute.xlu0 %878
  %880 = vrot.lane.b32.xlu0 %v539, 16
  %v881 = vpop.permute.xlu0 %880
  %882 = vrot.lane.b32.xlu0 %v538, 16
  %v883 = vpop.permute.xlu0 %882
  %884 = vrot.lane.b32.xlu0 %v537, 16
  %v885 = vpop.permute.xlu0 %884
  %886 = vrot.lane.b32.xlu0 %v536, 16
  %v887 = vpop.permute.xlu0 %886
  %888 = vrot.lane.b32.xlu0 %v535, 16
  %v889 = vpop.permute.xlu0 %888
  %890 = vrot.lane.b32.xlu0 %v534, 16
  %v891 = vpop.permute.xlu0 %890
  %892 = vrot.lane.b32.xlu0 %v533, 16
  %v893 = vpop.permute.xlu0 %892
  %894 = vrot.lane.b32.xlu0 %v532, 16
  %v895 = vpop.permute.xlu0 %894
  %896 = vrot.lane.b32.xlu0 %v531, 16
  %v897 = vpop.permute.xlu0 %896
  %898 = vrot.lane.b32.xlu0 %v530, 16
  %v899 = vpop.permute.xlu0 %898
  %900 = vrot.lane.b32.xlu0 %v529, 16
  %v901 = vpop.permute.xlu0 %900
  %902 = vrot.lane.b32.xlu0 %v528, 16
  %v903 = vpop.permute.xlu0 %902
  %904 = vrot.lane.b32.xlu0 %v527, 16
  %v905 = vpop.permute.xlu0 %904
  %906 = vrot.lane.b32.xlu0 %v526, 16
  %v907 = vpop.permute.xlu0 %906
  %908 = vrot.lane.b32.xlu0 %v525, 16
  %v909 = vpop.permute.xlu0 %908
  %910 = vrot.lane.b32.xlu0 %v524, 16
  %v911 = vpop.permute.xlu0 %910
  %912 = vrot.lane.b32.xlu0 %v523, 16
  %v913 = vpop.permute.xlu0 %912
  %914 = vrot.lane.b32.xlu0 %v522, 16
  %v915 = vpop.permute.xlu0 %914
  %916 = vrot.lane.b32.xlu0 %v521, 16
  %v917 = vpop.permute.xlu0 %916
  %918 = vrot.lane.b32.xlu0 %v520, 16
  %v919 = vpop.permute.xlu0 %918
  %920 = vrot.lane.b32.xlu0 %v519, 16
  %v921 = vpop.permute.xlu0 %920
  %922 = vrot.lane.b32.xlu0 %v518, 16
  %v923 = vpop.permute.xlu0 %922
  %924 = vrot.lane.b32.xlu0 %v517, 16
  %v925 = vpop.permute.xlu0 %924
  %926 = vrot.lane.b32.xlu0 %v516, 16
  %v927 = vpop.permute.xlu0 %926
  %928 = vrot.lane.b32.xlu0 %v515, 16
  %v929 = vpop.permute.xlu0 %928
  %930 = vrot.lane.b32.xlu0 %v514, 16
  %v931 = vpop.permute.xlu0 %930
  %932 = vrot.lane.b32.xlu0 %v513, 16
  %v933 = vpop.permute.xlu0 %932
  %934 = vrot.lane.b32.xlu0 %v512, 16
  %v935 = vpop.permute.xlu0 %934
  %936 = vrot.lane.b32.xlu0 %v511, 16
  %v937 = vpop.permute.xlu0 %936
  %938 = vrot.lane.b32.xlu0 %v510, 16
  %v939 = vpop.permute.xlu0 %938
  %940 = vrot.lane.b32.xlu0 %v509, 16
  %v941 = vpop.permute.xlu0 %940
  %942 = vrot.lane.b32.xlu0 %v508, 16
  %v943 = vpop.permute.xlu0 %942
  %944 = vrot.lane.b32.xlu0 %v507, 16
  %v945 = vpop.permute.xlu0 %944
  %946 = vrot.lane.b32.xlu0 %v506, 16
  %v947 = vpop.permute.xlu0 %946
  %948 = vrot.lane.b32.xlu0 %v505, 16
  %v949 = vpop.permute.xlu0 %948
  %950 = vrot.lane.b32.xlu0 %v504, 16
  %v951 = vpop.permute.xlu0 %950
  %952 = vrot.lane.b32.xlu0 %v503, 16
  %v953 = vpop.permute.xlu0 %952
  %954 = vrot.lane.b32.xlu0 %v502, 16
  %v955 = vpop.permute.xlu0 %954
  %956 = vrot.lane.b32.xlu0 %v501, 16
  %v957 = vpop.permute.xlu0 %956
  %958 = vrot.lane.b32.xlu0 %v500, 16
  %v959 = vpop.permute.xlu0 %958
  %960 = vrot.lane.b32.xlu0 %v499, 16
  %v961 = vpop.permute.xlu0 %960
  %962 = vrot.lane.b32.xlu0 %v498, 16
  %v963 = vpop.permute.xlu0 %962
  %964 = vrot.lane.b32.xlu0 %v497, 16
  %v965 = vpop.permute.xlu0 %964
  %966 = vrot.lane.b32.xlu0 %v496, 16
  %v967 = vpop.permute.xlu0 %966
  %968 = vrot.lane.b32.xlu0 %v495, 16
  %v969 = vpop.permute.xlu0 %968
  %970 = vrot.lane.b32.xlu0 %v494, 16
  %v971 = vpop.permute.xlu0 %970
  %972 = vrot.lane.b32.xlu0 %v493, 16
  %v973 = vpop.permute.xlu0 %972
  %974 = vrot.lane.b32.xlu0 %v492, 16
  %v975 = vpop.permute.xlu0 %974
  %976 = vrot.lane.b32.xlu0 %v491, 16
  %v977 = vpop.permute.xlu0 %976
  %978 = vrot.lane.b32.xlu0 %v490, 16
  %v979 = vpop.permute.xlu0 %978
  %980 = vrot.lane.b32.xlu0 %v489, 16
  %v981 = vpop.permute.xlu0 %980
  %982 = vrot.lane.b32.xlu0 %v488, 16
  %v983 = vpop.permute.xlu0 %982
  %984 = vrot.lane.b32.xlu0 %v487, 16
  %v985 = vpop.permute.xlu0 %984
  %986 = vrot.lane.b32.xlu0 %v486, 16
  %v987 = vpop.permute.xlu0 %986
  %988 = vrot.lane.b32.xlu0 %v485, 16
  %v989 = vpop.permute.xlu0 %988
  %990 = vrot.lane.b32.xlu0 %v484, 16
  %v991 = vpop.permute.xlu0 %990
  %992 = vrot.lane.b32.xlu0 %v483, 16
  %v993 = vpop.permute.xlu0 %992
  %1122 = vrot.lane.b32.xlu0 %v416, 24
  %v1123 = vpop.permute.xlu0 %1122
  %1124 = vrot.lane.b32.xlu0 %v415, 24
  %v1125 = vpop.permute.xlu0 %1124
  %1126 = vrot.lane.b32.xlu0 %v414, 24
  %v1127 = vpop.permute.xlu0 %1126
  %1128 = vrot.lane.b32.xlu0 %v413, 24
  %v1129 = vpop.permute.xlu0 %1128
  %1130 = vrot.lane.b32.xlu0 %v412, 24
  %v1131 = vpop.permute.xlu0 %1130
  %1132 = vrot.lane.b32.xlu0 %v411, 24
  %v1133 = vpop.permute.xlu0 %1132
  %1134 = vrot.lane.b32.xlu0 %v410, 24
  %v1135 = vpop.permute.xlu0 %1134
  %1136 = vrot.lane.b32.xlu0 %v409, 24
  %v1137 = vpop.permute.xlu0 %1136
  %1138 = vrot.lane.b32.xlu0 %v408, 24
  %v1139 = vpop.permute.xlu0 %1138
  %1140 = vrot.lane.b32.xlu0 %v407, 24
  %v1141 = vpop.permute.xlu0 %1140
  %1142 = vrot.lane.b32.xlu0 %v406, 24
  %v1143 = vpop.permute.xlu0 %1142
  %1144 = vrot.lane.b32.xlu0 %v405, 24
  %v1145 = vpop.permute.xlu0 %1144
  %1146 = vrot.lane.b32.xlu0 %v404, 24
  %v1147 = vpop.permute.xlu0 %1146
  %1148 = vrot.lane.b32.xlu0 %v403, 24
  %v1149 = vpop.permute.xlu0 %1148
  %1150 = vrot.lane.b32.xlu0 %v402, 24
  %v1151 = vpop.permute.xlu0 %1150
  %1152 = vrot.lane.b32.xlu0 %v401, 24
  %v1153 = vpop.permute.xlu0 %1152
  %1154 = vrot.lane.b32.xlu0 %v400, 24
  %v1155 = vpop.permute.xlu0 %1154
  %1156 = vrot.lane.b32.xlu0 %v399, 24
  %v1157 = vpop.permute.xlu0 %1156
  %1158 = vrot.lane.b32.xlu0 %v398, 24
  %v1159 = vpop.permute.xlu0 %1158
  %1160 = vrot.lane.b32.xlu0 %v397, 24
  %v1161 = vpop.permute.xlu0 %1160
  %1162 = vrot.lane.b32.xlu0 %v396, 24
  %v1163 = vpop.permute.xlu0 %1162
  %1164 = vrot.lane.b32.xlu0 %v395, 24
  %v1165 = vpop.permute.xlu0 %1164
  %1166 = vrot.lane.b32.xlu0 %v394, 24
  %v1167 = vpop.permute.xlu0 %1166
  %1168 = vrot.lane.b32.xlu0 %v393, 24
  %v1169 = vpop.permute.xlu0 %1168
  %1170 = vrot.lane.b32.xlu0 %v392, 24
  %v1171 = vpop.permute.xlu0 %1170
  %1172 = vrot.lane.b32.xlu0 %v391, 24
  %v1173 = vpop.permute.xlu0 %1172
  %1174 = vrot.lane.b32.xlu0 %v390, 24
  %v1175 = vpop.permute.xlu0 %1174
  %1176 = vrot.lane.b32.xlu0 %v389, 24
  %v1177 = vpop.permute.xlu0 %1176
  %1178 = vrot.lane.b32.xlu0 %v388, 24
  %v1179 = vpop.permute.xlu0 %1178
  %1180 = vrot.lane.b32.xlu0 %v387, 24
  %v1181 = vpop.permute.xlu0 %1180
  %1182 = vrot.lane.b32.xlu0 %v386, 24
  %v1183 = vpop.permute.xlu0 %1182
  %1184 = vrot.lane.b32.xlu0 %v385, 24
  %v1185 = vpop.permute.xlu0 %1184
  %1186 = vrot.lane.b32.xlu0 %v384, 24
  %v1187 = vpop.permute.xlu0 %1186
  %1188 = vrot.lane.b32.xlu0 %v383, 24
  %v1189 = vpop.permute.xlu0 %1188
  %1190 = vrot.lane.b32.xlu0 %v382, 24
  %v1191 = vpop.permute.xlu0 %1190
  %1192 = vrot.lane.b32.xlu0 %v381, 24
  %v1193 = vpop.permute.xlu0 %1192
  %1194 = vrot.lane.b32.xlu0 %v380, 24
  %v1195 = vpop.permute.xlu0 %1194
  %1196 = vrot.lane.b32.xlu0 %v379, 24
  %v1197 = vpop.permute.xlu0 %1196
  %1198 = vrot.lane.b32.xlu0 %v378, 24
  %v1199 = vpop.permute.xlu0 %1198
  %1200 = vrot.lane.b32.xlu0 %v377, 24
  %v1201 = vpop.permute.xlu0 %1200
  %1202 = vrot.lane.b32.xlu0 %v376, 24
  %v1203 = vpop.permute.xlu0 %1202
  %1204 = vrot.lane.b32.xlu0 %v375, 24
  %v1205 = vpop.permute.xlu0 %1204
  %1206 = vrot.lane.b32.xlu0 %v374, 24
  %v1207 = vpop.permute.xlu0 %1206
  %1208 = vrot.lane.b32.xlu0 %v373, 24
  %v1209 = vpop.permute.xlu0 %1208
  %1210 = vrot.lane.b32.xlu0 %v372, 24
  %v1211 = vpop.permute.xlu0 %1210
  %1212 = vrot.lane.b32.xlu0 %v371, 24
  %v1213 = vpop.permute.xlu0 %1212
  %1214 = vrot.lane.b32.xlu0 %v370, 24
  %v1215 = vpop.permute.xlu0 %1214
  %1216 = vrot.lane.b32.xlu0 %v369, 24
  %v1217 = vpop.permute.xlu0 %1216
  %1218 = vrot.lane.b32.xlu0 %v368, 24
  %v1219 = vpop.permute.xlu0 %1218
  %1220 = vrot.lane.b32.xlu0 %v367, 24
  %v1221 = vpop.permute.xlu0 %1220
  %1222 = vrot.lane.b32.xlu0 %v366, 24
  %v1223 = vpop.permute.xlu0 %1222
  %1224 = vrot.lane.b32.xlu0 %v365, 24
  %v1225 = vpop.permute.xlu0 %1224
  %1226 = vrot.lane.b32.xlu0 %v364, 24
  %v1227 = vpop.permute.xlu0 %1226
  %1228 = vrot.lane.b32.xlu0 %v363, 24
  %v1229 = vpop.permute.xlu0 %1228
  %1230 = vrot.lane.b32.xlu0 %v362, 24
  %v1231 = vpop.permute.xlu0 %1230
  %1232 = vrot.lane.b32.xlu0 %v361, 24
  %v1233 = vpop.permute.xlu0 %1232
  %1234 = vrot.lane.b32.xlu0 %v360, 24
  %v1235 = vpop.permute.xlu0 %1234
  %1236 = vrot.lane.b32.xlu0 %v359, 24
  %v1237 = vpop.permute.xlu0 %1236
  %1238 = vrot.lane.b32.xlu0 %v358, 24
  %v1239 = vpop.permute.xlu0 %1238
  %1240 = vrot.lane.b32.xlu0 %v357, 24
  %v1241 = vpop.permute.xlu0 %1240
  %1242 = vrot.lane.b32.xlu0 %v356, 24
  %v1243 = vpop.permute.xlu0 %1242
  %1244 = vrot.lane.b32.xlu0 %v355, 24
  %v1245 = vpop.permute.xlu0 %1244
  %1246 = vrot.lane.b32.xlu0 %v354, 24
  %v1247 = vpop.permute.xlu0 %1246
  %1248 = vrot.lane.b32.xlu0 %v353, 24
  %v1249 = vpop.permute.xlu0 %1248
  %1314 = vrot.lane.b32.xlu0 %v222, 32
  %v1315 = vpop.permute.xlu0 %1314
  %1316 = vrot.lane.b32.xlu0 %v223, 32
  %v1317 = vpop.permute.xlu0 %1316
  %1318 = vrot.lane.b32.xlu0 %v224, 32
  %v1319 = vpop.permute.xlu0 %1318
  %1320 = vrot.lane.b32.xlu0 %v225, 32
  %v1321 = vpop.permute.xlu0 %1320
  %1322 = vrot.lane.b32.xlu0 %v226, 32
  %v1323 = vpop.permute.xlu0 %1322
  %1324 = vrot.lane.b32.xlu0 %v227, 32
  %v1325 = vpop.permute.xlu0 %1324
  %1326 = vrot.lane.b32.xlu0 %v228, 32
  %v1327 = vpop.permute.xlu0 %1326
  %1328 = vrot.lane.b32.xlu0 %v229, 32
  %v1329 = vpop.permute.xlu0 %1328
  %1330 = vrot.lane.b32.xlu0 %v230, 32
  %v1331 = vpop.permute.xlu0 %1330
  %1332 = vrot.lane.b32.xlu0 %v231, 32
  %v1333 = vpop.permute.xlu0 %1332
  %1334 = vrot.lane.b32.xlu0 %v232, 32
  %v1335 = vpop.permute.xlu0 %1334
  %1336 = vrot.lane.b32.xlu0 %v233, 32
  %v1337 = vpop.permute.xlu0 %1336
  %1338 = vrot.lane.b32.xlu0 %v234, 32
  %v1339 = vpop.permute.xlu0 %1338
  %1340 = vrot.lane.b32.xlu0 %v235, 32
  %v1341 = vpop.permute.xlu0 %1340
  %1342 = vrot.lane.b32.xlu0 %v236, 32
  %v1343 = vpop.permute.xlu0 %1342
  %1344 = vrot.lane.b32.xlu0 %v237, 32
  %v1345 = vpop.permute.xlu0 %1344
  %1346 = vrot.lane.b32.xlu0 %v238, 32
  %v1347 = vpop.permute.xlu0 %1346
  %1348 = vrot.lane.b32.xlu0 %v239, 32
  %v1349 = vpop.permute.xlu0 %1348
  %1350 = vrot.lane.b32.xlu0 %v240, 32
  %v1351 = vpop.permute.xlu0 %1350
  %1352 = vrot.lane.b32.xlu0 %v241, 32
  %v1353 = vpop.permute.xlu0 %1352
  %1354 = vrot.lane.b32.xlu0 %v242, 32
  %v1355 = vpop.permute.xlu0 %1354
  %1356 = vrot.lane.b32.xlu0 %v243, 32
  %v1357 = vpop.permute.xlu0 %1356
  %1358 = vrot.lane.b32.xlu0 %v244, 32
  %v1359 = vpop.permute.xlu0 %1358
  %1360 = vrot.lane.b32.xlu0 %v245, 32
  %v1361 = vpop.permute.xlu0 %1360
  %1362 = vrot.lane.b32.xlu0 %v246, 32
  %v1363 = vpop.permute.xlu0 %1362
  %1364 = vrot.lane.b32.xlu0 %v247, 32
  %v1365 = vpop.permute.xlu0 %1364
  %1366 = vrot.lane.b32.xlu0 %v248, 32
  %v1367 = vpop.permute.xlu0 %1366
  %1368 = vrot.lane.b32.xlu0 %v249, 32
  %v1369 = vpop.permute.xlu0 %1368
  %1370 = vrot.lane.b32.xlu0 %v250, 32
  %v1371 = vpop.permute.xlu0 %1370
  %1372 = vrot.lane.b32.xlu0 %v251, 32
  %v1373 = vpop.permute.xlu0 %1372
  %1374 = vrot.lane.b32.xlu0 %v252, 32
  %v1375 = vpop.permute.xlu0 %1374
  %1376 = vrot.lane.b32.xlu0 %v253, 32
  %v1377 = vpop.permute.xlu0 %1376
  %1378 = vrot.lane.b32.xlu0 %v254, 32
  %v1379 = vpop.permute.xlu0 %1378
  %1380 = vrot.lane.b32.xlu0 %v255, 32
  %v1381 = vpop.permute.xlu0 %1380
  %1382 = vrot.lane.b32.xlu0 %v256, 32
  %v1383 = vpop.permute.xlu0 %1382
  %1384 = vrot.lane.b32.xlu0 %v257, 32
  %v1385 = vpop.permute.xlu0 %1384
  %1386 = vrot.lane.b32.xlu0 %v258, 32
  %v1387 = vpop.permute.xlu0 %1386
  %1388 = vrot.lane.b32.xlu0 %v259, 32
  %v1389 = vpop.permute.xlu0 %1388
  %1390 = vrot.lane.b32.xlu0 %v260, 32
  %v1391 = vpop.permute.xlu0 %1390
  %1392 = vrot.lane.b32.xlu0 %v261, 32
  %v1393 = vpop.permute.xlu0 %1392
  %1394 = vrot.lane.b32.xlu0 %v262, 32
  %v1395 = vpop.permute.xlu0 %1394
  %1396 = vrot.lane.b32.xlu0 %v263, 32
  %v1397 = vpop.permute.xlu0 %1396
  %1398 = vrot.lane.b32.xlu0 %v264, 32
  %v1399 = vpop.permute.xlu0 %1398
  %1400 = vrot.lane.b32.xlu0 %v265, 32
  %v1401 = vpop.permute.xlu0 %1400
  %1402 = vrot.lane.b32.xlu0 %v266, 32
  %v1403 = vpop.permute.xlu0 %1402
  %1404 = vrot.lane.b32.xlu0 %v267, 32
  %v1405 = vpop.permute.xlu0 %1404
  %1406 = vrot.lane.b32.xlu0 %v268, 32
  %v1407 = vpop.permute.xlu0 %1406
  %1408 = vrot.lane.b32.xlu0 %v269, 32
  %v1409 = vpop.permute.xlu0 %1408
  %1410 = vrot.lane.b32.xlu0 %v270, 32
  %v1411 = vpop.permute.xlu0 %1410
  %1412 = vrot.lane.b32.xlu0 %v271, 32
  %v1413 = vpop.permute.xlu0 %1412
  %1414 = vrot.lane.b32.xlu0 %v272, 32
  %v1415 = vpop.permute.xlu0 %1414
  %1416 = vrot.lane.b32.xlu0 %v273, 32
  %v1417 = vpop.permute.xlu0 %1416
  %1418 = vrot.lane.b32.xlu0 %v274, 32
  %v1419 = vpop.permute.xlu0 %1418
  %1420 = vrot.lane.b32.xlu0 %v275, 32
  %v1421 = vpop.permute.xlu0 %1420
  %1422 = vrot.lane.b32.xlu0 %v276, 32
  %v1423 = vpop.permute.xlu0 %1422
  %1424 = vrot.lane.b32.xlu0 %v277, 32
  %v1425 = vpop.permute.xlu0 %1424
  %1426 = vrot.lane.b32.xlu0 %v278, 32
  %v1427 = vpop.permute.xlu0 %1426
  %1428 = vrot.lane.b32.xlu0 %v279, 32
  %v1429 = vpop.permute.xlu0 %1428
  %1430 = vrot.lane.b32.xlu0 %v280, 32
  %v1431 = vpop.permute.xlu0 %1430
  %1432 = vrot.lane.b32.xlu0 %v281, 32
  %v1433 = vpop.permute.xlu0 %1432
  %1434 = vrot.lane.b32.xlu0 %v282, 32
  %v1435 = vpop.permute.xlu0 %1434
  %1436 = vrot.lane.b32.xlu0 %v283, 32
  %v1437 = vpop.permute.xlu0 %1436
  %1438 = vrot.lane.b32.xlu0 %v284, 32
  %v1439 = vpop.permute.xlu0 %1438
  %1440 = vrot.lane.b32.xlu0 %v285, 32
  %v1441 = vpop.permute.xlu0 %1440
  %1506 = vrot.lane.b32.xlu0 %v544, 40
  %v1507 = vpop.permute.xlu0 %1506
  %1508 = vrot.lane.b32.xlu0 %v543, 40
  %v1509 = vpop.permute.xlu0 %1508
  %1510 = vrot.lane.b32.xlu0 %v542, 40
  %v1511 = vpop.permute.xlu0 %1510
  %1512 = vrot.lane.b32.xlu0 %v541, 40
  %v1513 = vpop.permute.xlu0 %1512
  %1514 = vrot.lane.b32.xlu0 %v540, 40
  %v1515 = vpop.permute.xlu0 %1514
  %1516 = vrot.lane.b32.xlu0 %v539, 40
  %v1517 = vpop.permute.xlu0 %1516
  %1518 = vrot.lane.b32.xlu0 %v538, 40
  %v1519 = vpop.permute.xlu0 %1518
  %1520 = vrot.lane.b32.xlu0 %v537, 40
  %v1521 = vpop.permute.xlu0 %1520
  %1522 = vrot.lane.b32.xlu0 %v536, 40
  %v1523 = vpop.permute.xlu0 %1522
  %1524 = vrot.lane.b32.xlu0 %v535, 40
  %v1525 = vpop.permute.xlu0 %1524
  %1526 = vrot.lane.b32.xlu0 %v534, 40
  %v1527 = vpop.permute.xlu0 %1526
  %1528 = vrot.lane.b32.xlu0 %v533, 40
  %v1529 = vpop.permute.xlu0 %1528
  %1530 = vrot.lane.b32.xlu0 %v532, 40
  %v1531 = vpop.permute.xlu0 %1530
  %1532 = vrot.lane.b32.xlu0 %v531, 40
  %v1533 = vpop.permute.xlu0 %1532
  %1534 = vrot.lane.b32.xlu0 %v530, 40
  %v1535 = vpop.permute.xlu0 %1534
  %1536 = vrot.lane.b32.xlu0 %v529, 40
  %v1537 = vpop.permute.xlu0 %1536
  %1538 = vrot.lane.b32.xlu0 %v528, 40
  %v1539 = vpop.permute.xlu0 %1538
  %1540 = vrot.lane.b32.xlu0 %v527, 40
  %v1541 = vpop.permute.xlu0 %1540
  %1542 = vrot.lane.b32.xlu0 %v526, 40
  %v1543 = vpop.permute.xlu0 %1542
  %1544 = vrot.lane.b32.xlu0 %v525, 40
  %v1545 = vpop.permute.xlu0 %1544
  %1546 = vrot.lane.b32.xlu0 %v524, 40
  %v1547 = vpop.permute.xlu0 %1546
  %1548 = vrot.lane.b32.xlu0 %v523, 40
  %v1549 = vpop.permute.xlu0 %1548
  %1550 = vrot.lane.b32.xlu0 %v522, 40
  %v1551 = vpop.permute.xlu0 %1550
  %1552 = vrot.lane.b32.xlu0 %v521, 40
  %v1553 = vpop.permute.xlu0 %1552
  %1554 = vrot.lane.b32.xlu0 %v520, 40
  %v1555 = vpop.permute.xlu0 %1554
  %1556 = vrot.lane.b32.xlu0 %v519, 40
  %v1557 = vpop.permute.xlu0 %1556
  %1558 = vrot.lane.b32.xlu0 %v518, 40
  %v1559 = vpop.permute.xlu0 %1558
  %1560 = vrot.lane.b32.xlu0 %v517, 40
  %v1561 = vpop.permute.xlu0 %1560
  %1562 = vrot.lane.b32.xlu0 %v516, 40
  %v1563 = vpop.permute.xlu0 %1562
  %1564 = vrot.lane.b32.xlu0 %v515, 40
  %v1565 = vpop.permute.xlu0 %1564
  %1566 = vrot.lane.b32.xlu0 %v514, 40
  %v1567 = vpop.permute.xlu0 %1566
  %1568 = vrot.lane.b32.xlu0 %v513, 40
  %v1569 = vpop.permute.xlu0 %1568
  %1570 = vrot.lane.b32.xlu0 %v512, 40
  %v1571 = vpop.permute.xlu0 %1570
  %1572 = vrot.lane.b32.xlu0 %v511, 40
  %v1573 = vpop.permute.xlu0 %1572
  %1574 = vrot.lane.b32.xlu0 %v510, 40
  %v1575 = vpop.permute.xlu0 %1574
  %1576 = vrot.lane.b32.xlu0 %v509, 40
  %v1577 = vpop.permute.xlu0 %1576
  %1578 = vrot.lane.b32.xlu0 %v508, 40
  %v1579 = vpop.permute.xlu0 %1578
  %1580 = vrot.lane.b32.xlu0 %v507, 40
  %v1581 = vpop.permute.xlu0 %1580
  %1582 = vrot.lane.b32.xlu0 %v506, 40
  %v1583 = vpop.permute.xlu0 %1582
  %1584 = vrot.lane.b32.xlu0 %v505, 40
  %v1585 = vpop.permute.xlu0 %1584
  %1586 = vrot.lane.b32.xlu0 %v504, 40
  %v1587 = vpop.permute.xlu0 %1586
  %1588 = vrot.lane.b32.xlu0 %v503, 40
  %v1589 = vpop.permute.xlu0 %1588
  %1590 = vrot.lane.b32.xlu0 %v502, 40
  %v1591 = vpop.permute.xlu0 %1590
  %1592 = vrot.lane.b32.xlu0 %v501, 40
  %v1593 = vpop.permute.xlu0 %1592
  %1594 = vrot.lane.b32.xlu0 %v500, 40
  %v1595 = vpop.permute.xlu0 %1594
  %1596 = vrot.lane.b32.xlu0 %v499, 40
  %v1597 = vpop.permute.xlu0 %1596
  %1598 = vrot.lane.b32.xlu0 %v498, 40
  %v1599 = vpop.permute.xlu0 %1598
  %1600 = vrot.lane.b32.xlu0 %v497, 40
  %v1601 = vpop.permute.xlu0 %1600
  %1602 = vrot.lane.b32.xlu0 %v496, 40
  %v1603 = vpop.permute.xlu0 %1602
  %1604 = vrot.lane.b32.xlu0 %v495, 40
  %v1605 = vpop.permute.xlu0 %1604
  %1606 = vrot.lane.b32.xlu0 %v494, 40
  %v1607 = vpop.permute.xlu0 %1606
  %1608 = vrot.lane.b32.xlu0 %v493, 40
  %v1609 = vpop.permute.xlu0 %1608
  %1610 = vrot.lane.b32.xlu0 %v492, 40
  %v1611 = vpop.permute.xlu0 %1610
  %1612 = vrot.lane.b32.xlu0 %v491, 40
  %v1613 = vpop.permute.xlu0 %1612
  %1614 = vrot.lane.b32.xlu0 %v490, 40
  %v1615 = vpop.permute.xlu0 %1614
  %1616 = vrot.lane.b32.xlu0 %v489, 40
  %v1617 = vpop.permute.xlu0 %1616
  %1618 = vrot.lane.b32.xlu0 %v488, 40
  %v1619 = vpop.permute.xlu0 %1618
  %1620 = vrot.lane.b32.xlu0 %v487, 40
  %v1621 = vpop.permute.xlu0 %1620
  %1622 = vrot.lane.b32.xlu0 %v486, 40
  %v1623 = vpop.permute.xlu0 %1622
  %1624 = vrot.lane.b32.xlu0 %v485, 40
  %v1625 = vpop.permute.xlu0 %1624
  %1626 = vrot.lane.b32.xlu0 %v484, 40
  %v1627 = vpop.permute.xlu0 %1626
  %1628 = vrot.lane.b32.xlu0 %v483, 40
  %v1629 = vpop.permute.xlu0 %1628
  %1630 = vrot.lane.b32.xlu0 %v482, 40
  %v1631 = vpop.permute.xlu0 %1630
  %1632 = vrot.lane.b32.xlu0 %v545, 40
  %v1633 = vpop.permute.xlu0 %1632
  %1698 = vrot.lane.b32.xlu0 %v414, 48
  %v1699 = vpop.permute.xlu0 %1698
  %1700 = vrot.lane.b32.xlu0 %v413, 48
  %v1701 = vpop.permute.xlu0 %1700
  %1702 = vrot.lane.b32.xlu0 %v412, 48
  %v1703 = vpop.permute.xlu0 %1702
  %1704 = vrot.lane.b32.xlu0 %v411, 48
  %v1705 = vpop.permute.xlu0 %1704
  %1706 = vrot.lane.b32.xlu0 %v410, 48
  %v1707 = vpop.permute.xlu0 %1706
  %1708 = vrot.lane.b32.xlu0 %v409, 48
  %v1709 = vpop.permute.xlu0 %1708
  %1710 = vrot.lane.b32.xlu0 %v408, 48
  %v1711 = vpop.permute.xlu0 %1710
  %1712 = vrot.lane.b32.xlu0 %v407, 48
  %v1713 = vpop.permute.xlu0 %1712
  %1714 = vrot.lane.b32.xlu0 %v406, 48
  %v1715 = vpop.permute.xlu0 %1714
  %1716 = vrot.lane.b32.xlu0 %v405, 48
  %v1717 = vpop.permute.xlu0 %1716
  %1718 = vrot.lane.b32.xlu0 %v404, 48
  %v1719 = vpop.permute.xlu0 %1718
  %1720 = vrot.lane.b32.xlu0 %v403, 48
  %v1721 = vpop.permute.xlu0 %1720
  %1722 = vrot.lane.b32.xlu0 %v402, 48
  %v1723 = vpop.permute.xlu0 %1722
  %1724 = vrot.lane.b32.xlu0 %v401, 48
  %v1725 = vpop.permute.xlu0 %1724
  %1726 = vrot.lane.b32.xlu0 %v400, 48
  %v1727 = vpop.permute.xlu0 %1726
  %1728 = vrot.lane.b32.xlu0 %v399, 48
  %v1729 = vpop.permute.xlu0 %1728
  %1730 = vrot.lane.b32.xlu0 %v398, 48
  %v1731 = vpop.permute.xlu0 %1730
  %1732 = vrot.lane.b32.xlu0 %v397, 48
  %v1733 = vpop.permute.xlu0 %1732
  %1734 = vrot.lane.b32.xlu0 %v396, 48
  %v1735 = vpop.permute.xlu0 %1734
  %1736 = vrot.lane.b32.xlu0 %v395, 48
  %v1737 = vpop.permute.xlu0 %1736
  %1738 = vrot.lane.b32.xlu0 %v394, 48
  %v1739 = vpop.permute.xlu0 %1738
  %1740 = vrot.lane.b32.xlu0 %v393, 48
  %v1741 = vpop.permute.xlu0 %1740
  %1742 = vrot.lane.b32.xlu0 %v392, 48
  %v1743 = vpop.permute.xlu0 %1742
  %1744 = vrot.lane.b32.xlu0 %v391, 48
  %v1745 = vpop.permute.xlu0 %1744
  %1746 = vrot.lane.b32.xlu0 %v390, 48
  %v1747 = vpop.permute.xlu0 %1746
  %1748 = vrot.lane.b32.xlu0 %v389, 48
  %v1749 = vpop.permute.xlu0 %1748
  %1750 = vrot.lane.b32.xlu0 %v388, 48
  %v1751 = vpop.permute.xlu0 %1750
  %1752 = vrot.lane.b32.xlu0 %v387, 48
  %v1753 = vpop.permute.xlu0 %1752
  %1754 = vrot.lane.b32.xlu0 %v386, 48
  %v1755 = vpop.permute.xlu0 %1754
  %1756 = vrot.lane.b32.xlu0 %v385, 48
  %v1757 = vpop.permute.xlu0 %1756
  %1758 = vrot.lane.b32.xlu0 %v384, 48
  %v1759 = vpop.permute.xlu0 %1758
  %1760 = vrot.lane.b32.xlu0 %v383, 48
  %v1761 = vpop.permute.xlu0 %1760
  %1762 = vrot.lane.b32.xlu0 %v382, 48
  %v1763 = vpop.permute.xlu0 %1762
  %1764 = vrot.lane.b32.xlu0 %v381, 48
  %v1765 = vpop.permute.xlu0 %1764
  %1766 = vrot.lane.b32.xlu0 %v380, 48
  %v1767 = vpop.permute.xlu0 %1766
  %1768 = vrot.lane.b32.xlu0 %v379, 48
  %v1769 = vpop.permute.xlu0 %1768
  %1770 = vrot.lane.b32.xlu0 %v378, 48
  %v1771 = vpop.permute.xlu0 %1770
  %1772 = vrot.lane.b32.xlu0 %v377, 48
  %v1773 = vpop.permute.xlu0 %1772
  %1774 = vrot.lane.b32.xlu0 %v376, 48
  %v1775 = vpop.permute.xlu0 %1774
  %1776 = vrot.lane.b32.xlu0 %v375, 48
  %v1777 = vpop.permute.xlu0 %1776
  %1778 = vrot.lane.b32.xlu0 %v374, 48
  %v1779 = vpop.permute.xlu0 %1778
  %1780 = vrot.lane.b32.xlu0 %v373, 48
  %v1781 = vpop.permute.xlu0 %1780
  %1782 = vrot.lane.b32.xlu0 %v372, 48
  %v1783 = vpop.permute.xlu0 %1782
  %1784 = vrot.lane.b32.xlu0 %v371, 48
  %v1785 = vpop.permute.xlu0 %1784
  %1786 = vrot.lane.b32.xlu0 %v370, 48
  %v1787 = vpop.permute.xlu0 %1786
  %1788 = vrot.lane.b32.xlu0 %v369, 48
  %v1789 = vpop.permute.xlu0 %1788
  %1790 = vrot.lane.b32.xlu0 %v368, 48
  %v1791 = vpop.permute.xlu0 %1790
  %1792 = vrot.lane.b32.xlu0 %v367, 48
  %v1793 = vpop.permute.xlu0 %1792
  %1794 = vrot.lane.b32.xlu0 %v366, 48
  %v1795 = vpop.permute.xlu0 %1794
  %1796 = vrot.lane.b32.xlu0 %v365, 48
  %v1797 = vpop.permute.xlu0 %1796
  %1798 = vrot.lane.b32.xlu0 %v364, 48
  %v1799 = vpop.permute.xlu0 %1798
  %1800 = vrot.lane.b32.xlu0 %v363, 48
  %v1801 = vpop.permute.xlu0 %1800
  %1802 = vrot.lane.b32.xlu0 %v362, 48
  %v1803 = vpop.permute.xlu0 %1802
  %1804 = vrot.lane.b32.xlu0 %v361, 48
  %v1805 = vpop.permute.xlu0 %1804
  %1806 = vrot.lane.b32.xlu0 %v360, 48
  %v1807 = vpop.permute.xlu0 %1806
  %1808 = vrot.lane.b32.xlu0 %v359, 48
  %v1809 = vpop.permute.xlu0 %1808
  %1810 = vrot.lane.b32.xlu0 %v358, 48
  %v1811 = vpop.permute.xlu0 %1810
  %1812 = vrot.lane.b32.xlu0 %v357, 48
  %v1813 = vpop.permute.xlu0 %1812
  %1814 = vrot.lane.b32.xlu0 %v356, 48
  %v1815 = vpop.permute.xlu0 %1814
  %1816 = vrot.lane.b32.xlu0 %v355, 48
  %v1817 = vpop.permute.xlu0 %1816
  %1818 = vrot.lane.b32.xlu0 %v354, 48
  %v1819 = vpop.permute.xlu0 %1818
  %1820 = vrot.lane.b32.xlu0 %v353, 48
  %v1821 = vpop.permute.xlu0 %1820
  %1822 = vrot.lane.b32.xlu0 %v416, 48
  %v1823 = vpop.permute.xlu0 %1822
  %1824 = vrot.lane.b32.xlu0 %v415, 48
  %v1825 = vpop.permute.xlu0 %1824
  %1890 = vrot.lane.b32.xlu0 %v224, 56
  %v1891 = vpop.permute.xlu0 %1890
  %1892 = vrot.lane.b32.xlu0 %v225, 56
  %v1893 = vpop.permute.xlu0 %1892
  %1894 = vrot.lane.b32.xlu0 %v226, 56
  %v1895 = vpop.permute.xlu0 %1894
  %1896 = vrot.lane.b32.xlu0 %v227, 56
  %v1897 = vpop.permute.xlu0 %1896
  %1898 = vrot.lane.b32.xlu0 %v228, 56
  %v1899 = vpop.permute.xlu0 %1898
  %1900 = vrot.lane.b32.xlu0 %v229, 56
  %v1901 = vpop.permute.xlu0 %1900
  %1902 = vrot.lane.b32.xlu0 %v230, 56
  %v1903 = vpop.permute.xlu0 %1902
  %1904 = vrot.lane.b32.xlu0 %v231, 56
  %v1905 = vpop.permute.xlu0 %1904
  %1906 = vrot.lane.b32.xlu0 %v232, 56
  %v1907 = vpop.permute.xlu0 %1906
  %1908 = vrot.lane.b32.xlu0 %v233, 56
  %v1909 = vpop.permute.xlu0 %1908
  %1910 = vrot.lane.b32.xlu0 %v234, 56
  %v1911 = vpop.permute.xlu0 %1910
  %1912 = vrot.lane.b32.xlu0 %v235, 56
  %v1913 = vpop.permute.xlu0 %1912
  %1914 = vrot.lane.b32.xlu0 %v236, 56
  %v1915 = vpop.permute.xlu0 %1914
  %1916 = vrot.lane.b32.xlu0 %v237, 56
  %v1917 = vpop.permute.xlu0 %1916
  %1918 = vrot.lane.b32.xlu0 %v238, 56
  %v1919 = vpop.permute.xlu0 %1918
  %1920 = vrot.lane.b32.xlu0 %v239, 56
  %v1921 = vpop.permute.xlu0 %1920
  %1922 = vrot.lane.b32.xlu0 %v240, 56
  %v1923 = vpop.permute.xlu0 %1922
  %1924 = vrot.lane.b32.xlu0 %v241, 56
  %v1925 = vpop.permute.xlu0 %1924
  %1926 = vrot.lane.b32.xlu0 %v242, 56
  %v1927 = vpop.permute.xlu0 %1926
  %1928 = vrot.lane.b32.xlu0 %v243, 56
  %v1929 = vpop.permute.xlu0 %1928
  %1930 = vrot.lane.b32.xlu0 %v244, 56
  %v1931 = vpop.permute.xlu0 %1930
  %1932 = vrot.lane.b32.xlu0 %v245, 56
  %v1933 = vpop.permute.xlu0 %1932
  %1934 = vrot.lane.b32.xlu0 %v246, 56
  %v1935 = vpop.permute.xlu0 %1934
  %1936 = vrot.lane.b32.xlu0 %v247, 56
  %v1937 = vpop.permute.xlu0 %1936
  %1938 = vrot.lane.b32.xlu0 %v248, 56
  %v1939 = vpop.permute.xlu0 %1938
  %1940 = vrot.lane.b32.xlu0 %v249, 56
  %v1941 = vpop.permute.xlu0 %1940
  %1942 = vrot.lane.b32.xlu0 %v250, 56
  %v1943 = vpop.permute.xlu0 %1942
  %1944 = vrot.lane.b32.xlu0 %v251, 56
  %v1945 = vpop.permute.xlu0 %1944
  %1946 = vrot.lane.b32.xlu0 %v252, 56
  %v1947 = vpop.permute.xlu0 %1946
  %1948 = vrot.lane.b32.xlu0 %v253, 56
  %v1949 = vpop.permute.xlu0 %1948
  %1950 = vrot.lane.b32.xlu0 %v254, 56
  %v1951 = vpop.permute.xlu0 %1950
  %1952 = vrot.lane.b32.xlu0 %v255, 56
  %v1953 = vpop.permute.xlu0 %1952
  %1954 = vrot.lane.b32.xlu0 %v256, 56
  %v1955 = vpop.permute.xlu0 %1954
  %1956 = vrot.lane.b32.xlu0 %v257, 56
  %v1957 = vpop.permute.xlu0 %1956
  %1958 = vrot.lane.b32.xlu0 %v258, 56
  %v1959 = vpop.permute.xlu0 %1958
  %1960 = vrot.lane.b32.xlu0 %v259, 56
  %v1961 = vpop.permute.xlu0 %1960
  %1962 = vrot.lane.b32.xlu0 %v260, 56
  %v1963 = vpop.permute.xlu0 %1962
  %1964 = vrot.lane.b32.xlu0 %v261, 56
  %v1965 = vpop.permute.xlu0 %1964
  %1966 = vrot.lane.b32.xlu0 %v262, 56
  %v1967 = vpop.permute.xlu0 %1966
  %1968 = vrot.lane.b32.xlu0 %v263, 56
  %v1969 = vpop.permute.xlu0 %1968
  %1970 = vrot.lane.b32.xlu0 %v264, 56
  %v1971 = vpop.permute.xlu0 %1970
  %1972 = vrot.lane.b32.xlu0 %v265, 56
  %v1973 = vpop.permute.xlu0 %1972
  %1974 = vrot.lane.b32.xlu0 %v266, 56
  %v1975 = vpop.permute.xlu0 %1974
  %1976 = vrot.lane.b32.xlu0 %v267, 56
  %v1977 = vpop.permute.xlu0 %1976
  %1978 = vrot.lane.b32.xlu0 %v268, 56
  %v1979 = vpop.permute.xlu0 %1978
  %1980 = vrot.lane.b32.xlu0 %v269, 56
  %v1981 = vpop.permute.xlu0 %1980
  %1982 = vrot.lane.b32.xlu0 %v270, 56
  %v1983 = vpop.permute.xlu0 %1982
  %1984 = vrot.lane.b32.xlu0 %v271, 56
  %v1985 = vpop.permute.xlu0 %1984
  %1986 = vrot.lane.b32.xlu0 %v272, 56
  %v1987 = vpop.permute.xlu0 %1986
  %1988 = vrot.lane.b32.xlu0 %v273, 56
  %v1989 = vpop.permute.xlu0 %1988
  %1990 = vrot.lane.b32.xlu0 %v274, 56
  %v1991 = vpop.permute.xlu0 %1990
  %1992 = vrot.lane.b32.xlu0 %v275, 56
  %v1993 = vpop.permute.xlu0 %1992
  %1994 = vrot.lane.b32.xlu0 %v276, 56
  %v1995 = vpop.permute.xlu0 %1994
  %1996 = vrot.lane.b32.xlu0 %v277, 56
  %v1997 = vpop.permute.xlu0 %1996
  %1998 = vrot.lane.b32.xlu0 %v278, 56
  %v1999 = vpop.permute.xlu0 %1998
  %2000 = vrot.lane.b32.xlu0 %v279, 56
  %v2001 = vpop.permute.xlu0 %2000
  %2002 = vrot.lane.b32.xlu0 %v280, 56
  %v2003 = vpop.permute.xlu0 %2002
  %2004 = vrot.lane.b32.xlu0 %v281, 56
  %v2005 = vpop.permute.xlu0 %2004
  %2006 = vrot.lane.b32.xlu0 %v282, 56
  %v2007 = vpop.permute.xlu0 %2006
  %2008 = vrot.lane.b32.xlu0 %v283, 56
  %v2009 = vpop.permute.xlu0 %2008
  %2010 = vrot.lane.b32.xlu0 %v284, 56
  %v2011 = vpop.permute.xlu0 %2010
  %2012 = vrot.lane.b32.xlu0 %v285, 56
  %v2013 = vpop.permute.xlu0 %2012
  %2014 = vrot.lane.b32.xlu0 %v222, 56
  %v2015 = vpop.permute.xlu0 %2014
  %2016 = vrot.lane.b32.xlu0 %v223, 56
  %v2017 = vpop.permute.xlu0 %2016
  %2082 = vrot.lane.b32.xlu0 %v542, 64
  %v2083 = vpop.permute.xlu0 %2082
  %2084 = vrot.lane.b32.xlu0 %v541, 64
  %v2085 = vpop.permute.xlu0 %2084
  %2086 = vrot.lane.b32.xlu0 %v540, 64
  %v2087 = vpop.permute.xlu0 %2086
  %2088 = vrot.lane.b32.xlu0 %v539, 64
  %v2089 = vpop.permute.xlu0 %2088
  %2090 = vrot.lane.b32.xlu0 %v538, 64
  %v2091 = vpop.permute.xlu0 %2090
  %2092 = vrot.lane.b32.xlu0 %v537, 64
  %v2093 = vpop.permute.xlu0 %2092
  %2094 = vrot.lane.b32.xlu0 %v536, 64
  %v2095 = vpop.permute.xlu0 %2094
  %2096 = vrot.lane.b32.xlu0 %v535, 64
  %v2097 = vpop.permute.xlu0 %2096
  %2098 = vrot.lane.b32.xlu0 %v534, 64
  %v2099 = vpop.permute.xlu0 %2098
  %2100 = vrot.lane.b32.xlu0 %v533, 64
  %v2101 = vpop.permute.xlu0 %2100
  %2102 = vrot.lane.b32.xlu0 %v532, 64
  %v2103 = vpop.permute.xlu0 %2102
  %2104 = vrot.lane.b32.xlu0 %v531, 64
  %v2105 = vpop.permute.xlu0 %2104
  %2106 = vrot.lane.b32.xlu0 %v530, 64
  %v2107 = vpop.permute.xlu0 %2106
  %2108 = vrot.lane.b32.xlu0 %v529, 64
  %v2109 = vpop.permute.xlu0 %2108
  %2110 = vrot.lane.b32.xlu0 %v528, 64
  %v2111 = vpop.permute.xlu0 %2110
  %2112 = vrot.lane.b32.xlu0 %v527, 64
  %v2113 = vpop.permute.xlu0 %2112
  %2114 = vrot.lane.b32.xlu0 %v526, 64
  %v2115 = vpop.permute.xlu0 %2114
  %2116 = vrot.lane.b32.xlu0 %v525, 64
  %v2117 = vpop.permute.xlu0 %2116
  %2118 = vrot.lane.b32.xlu0 %v524, 64
  %v2119 = vpop.permute.xlu0 %2118
  %2120 = vrot.lane.b32.xlu0 %v523, 64
  %v2121 = vpop.permute.xlu0 %2120
  %2122 = vrot.lane.b32.xlu0 %v522, 64
  %v2123 = vpop.permute.xlu0 %2122
  %2124 = vrot.lane.b32.xlu0 %v521, 64
  %v2125 = vpop.permute.xlu0 %2124
  %2126 = vrot.lane.b32.xlu0 %v520, 64
  %v2127 = vpop.permute.xlu0 %2126
  %2128 = vrot.lane.b32.xlu0 %v519, 64
  %v2129 = vpop.permute.xlu0 %2128
  %2130 = vrot.lane.b32.xlu0 %v518, 64
  %v2131 = vpop.permute.xlu0 %2130
  %2132 = vrot.lane.b32.xlu0 %v517, 64
  %v2133 = vpop.permute.xlu0 %2132
  %2134 = vrot.lane.b32.xlu0 %v516, 64
  %v2135 = vpop.permute.xlu0 %2134
  %2136 = vrot.lane.b32.xlu0 %v515, 64
  %v2137 = vpop.permute.xlu0 %2136
  %2138 = vrot.lane.b32.xlu0 %v514, 64
  %v2139 = vpop.permute.xlu0 %2138
  %2140 = vrot.lane.b32.xlu0 %v513, 64
  %v2141 = vpop.permute.xlu0 %2140
  %2142 = vrot.lane.b32.xlu0 %v512, 64
  %v2143 = vpop.permute.xlu0 %2142
  %2144 = vrot.lane.b32.xlu0 %v511, 64
  %v2145 = vpop.permute.xlu0 %2144
  %2146 = vrot.lane.b32.xlu0 %v510, 64
  %v2147 = vpop.permute.xlu0 %2146
  %2148 = vrot.lane.b32.xlu0 %v509, 64
  %v2149 = vpop.permute.xlu0 %2148
  %2150 = vrot.lane.b32.xlu0 %v508, 64
  %v2151 = vpop.permute.xlu0 %2150
  %2152 = vrot.lane.b32.xlu0 %v507, 64
  %v2153 = vpop.permute.xlu0 %2152
  %2154 = vrot.lane.b32.xlu0 %v506, 64
  %v2155 = vpop.permute.xlu0 %2154
  %2156 = vrot.lane.b32.xlu0 %v505, 64
  %v2157 = vpop.permute.xlu0 %2156
  %2158 = vrot.lane.b32.xlu0 %v504, 64
  %v2159 = vpop.permute.xlu0 %2158
  %2160 = vrot.lane.b32.xlu0 %v503, 64
  %v2161 = vpop.permute.xlu0 %2160
  %2162 = vrot.lane.b32.xlu0 %v502, 64
  %v2163 = vpop.permute.xlu0 %2162
  %2164 = vrot.lane.b32.xlu0 %v501, 64
  %v2165 = vpop.permute.xlu0 %2164
  %2166 = vrot.lane.b32.xlu0 %v500, 64
  %v2167 = vpop.permute.xlu0 %2166
  %2168 = vrot.lane.b32.xlu0 %v499, 64
  %v2169 = vpop.permute.xlu0 %2168
  %2170 = vrot.lane.b32.xlu0 %v498, 64
  %v2171 = vpop.permute.xlu0 %2170
  %2172 = vrot.lane.b32.xlu0 %v497, 64
  %v2173 = vpop.permute.xlu0 %2172
  %2174 = vrot.lane.b32.xlu0 %v496, 64
  %v2175 = vpop.permute.xlu0 %2174
  %2176 = vrot.lane.b32.xlu0 %v495, 64
  %v2177 = vpop.permute.xlu0 %2176
  %2178 = vrot.lane.b32.xlu0 %v494, 64
  %v2179 = vpop.permute.xlu0 %2178
  %2180 = vrot.lane.b32.xlu0 %v493, 64
  %v2181 = vpop.permute.xlu0 %2180
  %2182 = vrot.lane.b32.xlu0 %v492, 64
  %v2183 = vpop.permute.xlu0 %2182
  %2184 = vrot.lane.b32.xlu0 %v491, 64
  %v2185 = vpop.permute.xlu0 %2184
  %2186 = vrot.lane.b32.xlu0 %v490, 64
  %v2187 = vpop.permute.xlu0 %2186
  %2188 = vrot.lane.b32.xlu0 %v489, 64
  %v2189 = vpop.permute.xlu0 %2188
  %2190 = vrot.lane.b32.xlu0 %v488, 64
  %v2191 = vpop.permute.xlu0 %2190
  %2192 = vrot.lane.b32.xlu0 %v487, 64
  %v2193 = vpop.permute.xlu0 %2192
  %2194 = vrot.lane.b32.xlu0 %v486, 64
  %v2195 = vpop.permute.xlu0 %2194
  %2196 = vrot.lane.b32.xlu0 %v485, 64
  %v2197 = vpop.permute.xlu0 %2196
  %2198 = vrot.lane.b32.xlu0 %v484, 64
  %v2199 = vpop.permute.xlu0 %2198
  %2200 = vrot.lane.b32.xlu0 %v483, 64
  %v2201 = vpop.permute.xlu0 %2200
  %2202 = vrot.lane.b32.xlu0 %v482, 64
  %v2203 = vpop.permute.xlu0 %2202
  %2204 = vrot.lane.b32.xlu0 %v545, 64
  %v2205 = vpop.permute.xlu0 %2204
  %2206 = vrot.lane.b32.xlu0 %v544, 64
  %v2207 = vpop.permute.xlu0 %2206
  %2208 = vrot.lane.b32.xlu0 %v543, 64
  %v2209 = vpop.permute.xlu0 %2208
  %vm2274 = vcmask 64512
  %v2275 = vsel %vm2274, %v354, %v611
  %v2276 = vsel %vm2274, %v353, %v613
  %v2277 = vsel %vm2274, %v416, %v615
  %v2278 = vsel %vm2274, %v415, %v617
  %v2279 = vsel %vm2274, %v414, %v619
  %v2280 = vsel %vm2274, %v413, %v621
  %v2281 = vsel %vm2274, %v412, %v623
  %v2282 = vsel %vm2274, %v411, %v625
  %v2283 = vsel %vm2274, %v410, %v627
  %v2284 = vsel %vm2274, %v409, %v629
  %v2285 = vsel %vm2274, %v408, %v631
  %v2286 = vsel %vm2274, %v407, %v633
  %v2287 = vsel %vm2274, %v406, %v635
  %v2288 = vsel %vm2274, %v405, %v637
  %v2289 = vsel %vm2274, %v404, %v639
  %v2290 = vsel %vm2274, %v403, %v641
  %v2291 = vsel %vm2274, %v402, %v643
  %v2292 = vsel %vm2274, %v401, %v645
  %v2293 = vsel %vm2274, %v400, %v647
  %v2294 = vsel %vm2274, %v399, %v649
  %v2295 = vsel %vm2274, %v398, %v651
  %v2296 = vsel %vm2274, %v397, %v653
  %v2297 = vsel %vm2274, %v396, %v655
  %v2298 = vsel %vm2274, %v395, %v657
  %v2299 = vsel %vm2274, %v394, %v659
  %v2300 = vsel %vm2274, %v393, %v661
  %v2301 = vsel %vm2274, %v392, %v663
  %v2302 = vsel %vm2274, %v391, %v665
  %v2303 = vsel %vm2274, %v390, %v667
  %v2304 = vsel %vm2274, %v389, %v669
  %v2305 = vsel %vm2274, %v388, %v671
  %v2306 = vsel %vm2274, %v387, %v673
  %v2307 = vsel %vm2274, %v386, %v675
  %v2308 = vsel %vm2274, %v385, %v677
  %v2309 = vsel %vm2274, %v384, %v679
  %v2310 = vsel %vm2274, %v383, %v681
  %v2311 = vsel %vm2274, %v382, %v683
  %v2312 = vsel %vm2274, %v381, %v685
  %v2313 = vsel %vm2274, %v380, %v687
  %v2314 = vsel %vm2274, %v379, %v689
  %v2315 = vsel %vm2274, %v378, %v691
  %v2316 = vsel %vm2274, %v377, %v693
  %v2317 = vsel %vm2274, %v376, %v695
  %v2318 = vsel %vm2274, %v375, %v697
  %v2319 = vsel %vm2274, %v374, %v699
  %v2320 = vsel %vm2274, %v373, %v701
  %v2321 = vsel %vm2274, %v372, %v703
  %v2322 = vsel %vm2274, %v371, %v705
  %v2323 = vsel %vm2274, %v370, %v707
  %v2324 = vsel %vm2274, %v369, %v709
  %v2325 = vsel %vm2274, %v368, %v711
  %v2326 = vsel %vm2274, %v367, %v713
  %v2327 = vsel %vm2274, %v366, %v715
  %v2328 = vsel %vm2274, %v365, %v717
  %v2329 = vsel %vm2274, %v364, %v719
  %v2330 = vsel %vm2274, %v363, %v721
  %v2331 = vsel %vm2274, %v362, %v723
  %v2332 = vsel %vm2274, %v361, %v725
  %v2333 = vsel %vm2274, %v360, %v727
  %v2334 = vsel %vm2274, %v359, %v729
  %v2335 = vsel %vm2274, %v358, %v731
  %v2336 = vsel %vm2274, %v357, %v733
  %v2337 = vsel %vm2274, %v356, %v735
  %v2338 = vsel %vm2274, %v355, %v737
  %vm2339 = vcmask 130048
  %v2340 = vsel %vm2339, %v2275, %v867
  %v2341 = vsel %vm2339, %v2276, %v869
  %v2342 = vsel %vm2339, %v2277, %v871
  %v2343 = vsel %vm2339, %v2278, %v873
  %v2344 = vsel %vm2339, %v2279, %v875
  %v2345 = vsel %vm2339, %v2280, %v877
  %v2346 = vsel %vm2339, %v2281, %v879
  %v2347 = vsel %vm2339, %v2282, %v881
  %v2348 = vsel %vm2339, %v2283, %v883
  %v2349 = vsel %vm2339, %v2284, %v885
  %v2350 = vsel %vm2339, %v2285, %v887
  %v2351 = vsel %vm2339, %v2286, %v889
  %v2352 = vsel %vm2339, %v2287, %v891
  %v2353 = vsel %vm2339, %v2288, %v893
  %v2354 = vsel %vm2339, %v2289, %v895
  %v2355 = vsel %vm2339, %v2290, %v897
  %v2356 = vsel %vm2339, %v2291, %v899
  %v2357 = vsel %vm2339, %v2292, %v901
  %v2358 = vsel %vm2339, %v2293, %v903
  %v2359 = vsel %vm2339, %v2294, %v905
  %v2360 = vsel %vm2339, %v2295, %v907
  %v2361 = vsel %vm2339, %v2296, %v909
  %v2362 = vsel %vm2339, %v2297, %v911
  %v2363 = vsel %vm2339, %v2298, %v913
  %v2364 = vsel %vm2339, %v2299, %v915
  %v2365 = vsel %vm2339, %v2300, %v917
  %v2366 = vsel %vm2339, %v2301, %v919
  %v2367 = vsel %vm2339, %v2302, %v921
  %v2368 = vsel %vm2339, %v2303, %v923
  %v2369 = vsel %vm2339, %v2304, %v925
  %v2370 = vsel %vm2339, %v2305, %v927
  %v2371 = vsel %vm2339, %v2306, %v929
  %v2372 = vsel %vm2339, %v2307, %v931
  %v2373 = vsel %vm2339, %v2308, %v933
  %v2374 = vsel %vm2339, %v2309, %v935
  %v2375 = vsel %vm2339, %v2310, %v937
  %v2376 = vsel %vm2339, %v2311, %v939
  %v2377 = vsel %vm2339, %v2312, %v941
  %v2378 = vsel %vm2339, %v2313, %v943
  %v2379 = vsel %vm2339, %v2314, %v945
  %v2380 = vsel %vm2339, %v2315, %v947
  %v2381 = vsel %vm2339, %v2316, %v949
  %v2382 = vsel %vm2339, %v2317, %v951
  %v2383 = vsel %vm2339, %v2318, %v953
  %v2384 = vsel %vm2339, %v2319, %v955
  %v2385 = vsel %vm2339, %v2320, %v957
  %v2386 = vsel %vm2339, %v2321, %v959
  %v2387 = vsel %vm2339, %v2322, %v961
  %v2388 = vsel %vm2339, %v2323, %v963
  %v2389 = vsel %vm2339, %v2324, %v965
  %v2390 = vsel %vm2339, %v2325, %v967
  %v2391 = vsel %vm2339, %v2326, %v969
  %v2392 = vsel %vm2339, %v2327, %v971
  %v2393 = vsel %vm2339, %v2328, %v973
  %v2394 = vsel %vm2339, %v2329, %v975
  %v2395 = vsel %vm2339, %v2330, %v977
  %v2396 = vsel %vm2339, %v2331, %v979
  %v2397 = vsel %vm2339, %v2332, %v981
  %v2398 = vsel %vm2339, %v2333, %v983
  %v2399 = vsel %vm2339, %v2334, %v985
  %v2400 = vsel %vm2339, %v2335, %v987
  %v2401 = vsel %vm2339, %v2336, %v989
  %v2402 = vsel %vm2339, %v2337, %v991
  %v2403 = vsel %vm2339, %v2338, %v993
  %vm2404 = vcmask 195584
  %v2405 = vsel %vm2404, %v2340, %v1123
  %v2406 = vsel %vm2404, %v2341, %v1125
  %v2407 = vsel %vm2404, %v2342, %v1127
  %v2408 = vsel %vm2404, %v2343, %v1129
  %v2409 = vsel %vm2404, %v2344, %v1131
  %v2410 = vsel %vm2404, %v2345, %v1133
  %v2411 = vsel %vm2404, %v2346, %v1135
  %v2412 = vsel %vm2404, %v2347, %v1137
  %v2413 = vsel %vm2404, %v2348, %v1139
  %v2414 = vsel %vm2404, %v2349, %v1141
  %v2415 = vsel %vm2404, %v2350, %v1143
  %v2416 = vsel %vm2404, %v2351, %v1145
  %v2417 = vsel %vm2404, %v2352, %v1147
  %v2418 = vsel %vm2404, %v2353, %v1149
  %v2419 = vsel %vm2404, %v2354, %v1151
  %v2420 = vsel %vm2404, %v2355, %v1153
  %v2421 = vsel %vm2404, %v2356, %v1155
  %v2422 = vsel %vm2404, %v2357, %v1157
  %v2423 = vsel %vm2404, %v2358, %v1159
  %v2424 = vsel %vm2404, %v2359, %v1161
  %v2425 = vsel %vm2404, %v2360, %v1163
  %v2426 = vsel %vm2404, %v2361, %v1165
  %v2427 = vsel %vm2404, %v2362, %v1167
  %v2428 = vsel %vm2404, %v2363, %v1169
  %v2429 = vsel %vm2404, %v2364, %v1171
  %v2430 = vsel %vm2404, %v2365, %v1173
  %v2431 = vsel %vm2404, %v2366, %v1175
  %v2432 = vsel %vm2404, %v2367, %v1177
  %v2433 = vsel %vm2404, %v2368, %v1179
  %v2434 = vsel %vm2404, %v2369, %v1181
  %v2435 = vsel %vm2404, %v2370, %v1183
  %v2436 = vsel %vm2404, %v2371, %v1185
  %v2437 = vsel %vm2404, %v2372, %v1187
  %v2438 = vsel %vm2404, %v2373, %v1189
  %v2439 = vsel %vm2404, %v2374, %v1191
  %v2440 = vsel %vm2404, %v2375, %v1193
  %v2441 = vsel %vm2404, %v2376, %v1195
  %v2442 = vsel %vm2404, %v2377, %v1197
  %v2443 = vsel %vm2404, %v2378, %v1199
  %v2444 = vsel %vm2404, %v2379, %v1201
  %v2445 = vsel %vm2404, %v2380, %v1203
  %v2446 = vsel %vm2404, %v2381, %v1205
  %v2447 = vsel %vm2404, %v2382, %v1207
  %v2448 = vsel %vm2404, %v2383, %v1209
  %v2449 = vsel %vm2404, %v2384, %v1211
  %v2450 = vsel %vm2404, %v2385, %v1213
  %v2451 = vsel %vm2404, %v2386, %v1215
  %v2452 = vsel %vm2404, %v2387, %v1217
  %v2453 = vsel %vm2404, %v2388, %v1219
  %v2454 = vsel %vm2404, %v2389, %v1221
  %v2455 = vsel %vm2404, %v2390, %v1223
  %v2456 = vsel %vm2404, %v2391, %v1225
  %v2457 = vsel %vm2404, %v2392, %v1227
  %v2458 = vsel %vm2404, %v2393, %v1229
  %v2459 = vsel %vm2404, %v2394, %v1231
  %v2460 = vsel %vm2404, %v2395, %v1233
  %v2461 = vsel %vm2404, %v2396, %v1235
  %v2462 = vsel %vm2404, %v2397, %v1237
  %v2463 = vsel %vm2404, %v2398, %v1239
  %v2464 = vsel %vm2404, %v2399, %v1241
  %v2465 = vsel %vm2404, %v2400, %v1243
  %v2466 = vsel %vm2404, %v2401, %v1245
  %v2467 = vsel %vm2404, %v2402, %v1247
  %v2468 = vsel %vm2404, %v2403, %v1249
  %vm2469 = vcmask 261120
  %v2470 = vsel %vm2469, %v2405, %v1315
  %v2471 = vsel %vm2469, %v2406, %v1317
  %v2472 = vsel %vm2469, %v2407, %v1319
  %v2473 = vsel %vm2469, %v2408, %v1321
  %v2474 = vsel %vm2469, %v2409, %v1323
  %v2475 = vsel %vm2469, %v2410, %v1325
  %v2476 = vsel %vm2469, %v2411, %v1327
  %v2477 = vsel %vm2469, %v2412, %v1329
  %v2478 = vsel %vm2469, %v2413, %v1331
  %v2479 = vsel %vm2469, %v2414, %v1333
  %v2480 = vsel %vm2469, %v2415, %v1335
  %v2481 = vsel %vm2469, %v2416, %v1337
  %v2482 = vsel %vm2469, %v2417, %v1339
  %v2483 = vsel %vm2469, %v2418, %v1341
  %v2484 = vsel %vm2469, %v2419, %v1343
  %v2485 = vsel %vm2469, %v2420, %v1345
  %v2486 = vsel %vm2469, %v2421, %v1347
  %v2487 = vsel %vm2469, %v2422, %v1349
  %v2488 = vsel %vm2469, %v2423, %v1351
  %v2489 = vsel %vm2469, %v2424, %v1353
  %v2490 = vsel %vm2469, %v2425, %v1355
  %v2491 = vsel %vm2469, %v2426, %v1357
  %v2492 = vsel %vm2469, %v2427, %v1359
  %v2493 = vsel %vm2469, %v2428, %v1361
  %v2494 = vsel %vm2469, %v2429, %v1363
  %v2495 = vsel %vm2469, %v2430, %v1365
  %v2496 = vsel %vm2469, %v2431, %v1367
  %v2497 = vsel %vm2469, %v2432, %v1369
  %v2498 = vsel %vm2469, %v2433, %v1371
  %v2499 = vsel %vm2469, %v2434, %v1373
  %v2500 = vsel %vm2469, %v2435, %v1375
  %v2501 = vsel %vm2469, %v2436, %v1377
  %v2502 = vsel %vm2469, %v2437, %v1379
  %v2503 = vsel %vm2469, %v2438, %v1381
  %v2504 = vsel %vm2469, %v2439, %v1383
  %v2505 = vsel %vm2469, %v2440, %v1385
  %v2506 = vsel %vm2469, %v2441, %v1387
  %v2507 = vsel %vm2469, %v2442, %v1389
  %v2508 = vsel %vm2469, %v2443, %v1391
  %v2509 = vsel %vm2469, %v2444, %v1393
  %v2510 = vsel %vm2469, %v2445, %v1395
  %v2511 = vsel %vm2469, %v2446, %v1397
  %v2512 = vsel %vm2469, %v2447, %v1399
  %v2513 = vsel %vm2469, %v2448, %v1401
  %v2514 = vsel %vm2469, %v2449, %v1403
  %v2515 = vsel %vm2469, %v2450, %v1405
  %v2516 = vsel %vm2469, %v2451, %v1407
  %v2517 = vsel %vm2469, %v2452, %v1409
  %v2518 = vsel %vm2469, %v2453, %v1411
  %v2519 = vsel %vm2469, %v2454, %v1413
  %v2520 = vsel %vm2469, %v2455, %v1415
  %v2521 = vsel %vm2469, %v2456, %v1417
  %v2522 = vsel %vm2469, %v2457, %v1419
  %v2523 = vsel %vm2469, %v2458, %v1421
  %v2524 = vsel %vm2469, %v2459, %v1423
  %v2525 = vsel %vm2469, %v2460, %v1425
  %v2526 = vsel %vm2469, %v2461, %v1427
  %v2527 = vsel %vm2469, %v2462, %v1429
  %v2528 = vsel %vm2469, %v2463, %v1431
  %v2529 = vsel %vm2469, %v2464, %v1433
  %v2530 = vsel %vm2469, %v2465, %v1435
  %v2531 = vsel %vm2469, %v2466, %v1437
  %v2532 = vsel %vm2469, %v2467, %v1439
  %v2533 = vsel %vm2469, %v2468, %v1441
  %vm2534 = vcmask 326656
  %v2535 = vsel %vm2534, %v2470, %v1507
  %v2536 = vsel %vm2534, %v2471, %v1509
  %v2537 = vsel %vm2534, %v2472, %v1511
  %v2538 = vsel %vm2534, %v2473, %v1513
  %v2539 = vsel %vm2534, %v2474, %v1515
  %v2540 = vsel %vm2534, %v2475, %v1517
  %v2541 = vsel %vm2534, %v2476, %v1519
  %v2542 = vsel %vm2534, %v2477, %v1521
  %v2543 = vsel %vm2534, %v2478, %v1523
  %v2544 = vsel %vm2534, %v2479, %v1525
  %v2545 = vsel %vm2534, %v2480, %v1527
  %v2546 = vsel %vm2534, %v2481, %v1529
  %v2547 = vsel %vm2534, %v2482, %v1531
  %v2548 = vsel %vm2534, %v2483, %v1533
  %v2549 = vsel %vm2534, %v2484, %v1535
  %v2550 = vsel %vm2534, %v2485, %v1537
  %v2551 = vsel %vm2534, %v2486, %v1539
  %v2552 = vsel %vm2534, %v2487, %v1541
  %v2553 = vsel %vm2534, %v2488, %v1543
  %v2554 = vsel %vm2534, %v2489, %v1545
  %v2555 = vsel %vm2534, %v2490, %v1547
  %v2556 = vsel %vm2534, %v2491, %v1549
  %v2557 = vsel %vm2534, %v2492, %v1551
  %v2558 = vsel %vm2534, %v2493, %v1553
  %v2559 = vsel %vm2534, %v2494, %v1555
  %v2560 = vsel %vm2534, %v2495, %v1557
  %v2561 = vsel %vm2534, %v2496, %v1559
  %v2562 = vsel %vm2534, %v2497, %v1561
  %v2563 = vsel %vm2534, %v2498, %v1563
  %v2564 = vsel %vm2534, %v2499, %v1565
  %v2565 = vsel %vm2534, %v2500, %v1567
  %v2566 = vsel %vm2534, %v2501, %v1569
  %v2567 = vsel %vm2534, %v2502, %v1571
  %v2568 = vsel %vm2534, %v2503, %v1573
  %v2569 = vsel %vm2534, %v2504, %v1575
  %v2570 = vsel %vm2534, %v2505, %v1577
  %v2571 = vsel %vm2534, %v2506, %v1579
  %v2572 = vsel %vm2534, %v2507, %v1581
  %v2573 = vsel %vm2534, %v2508, %v1583
  %v2574 = vsel %vm2534, %v2509, %v1585
  %v2575 = vsel %vm2534, %v2510, %v1587
  %v2576 = vsel %vm2534, %v2511, %v1589
  %v2577 = vsel %vm2534, %v2512, %v1591
  %v2578 = vsel %vm2534, %v2513, %v1593
  %v2579 = vsel %vm2534, %v2514, %v1595
  %v2580 = vsel %vm2534, %v2515, %v1597
  %v2581 = vsel %vm2534, %v2516, %v1599
  %v2582 = vsel %vm2534, %v2517, %v1601
  %v2583 = vsel %vm2534, %v2518, %v1603
  %v2584 = vsel %vm2534, %v2519, %v1605
  %v2585 = vsel %vm2534, %v2520, %v1607
  %v2586 = vsel %vm2534, %v2521, %v1609
  %v2587 = vsel %vm2534, %v2522, %v1611
  %v2588 = vsel %vm2534, %v2523, %v1613
  %v2589 = vsel %vm2534, %v2524, %v1615
  %v2590 = vsel %vm2534, %v2525, %v1617
  %v2591 = vsel %vm2534, %v2526, %v1619
  %v2592 = vsel %vm2534, %v2527, %v1621
  %v2593 = vsel %vm2534, %v2528, %v1623
  %v2594 = vsel %vm2534, %v2529, %v1625
  %v2595 = vsel %vm2534, %v2530, %v1627
  %v2596 = vsel %vm2534, %v2531, %v1629
  %v2597 = vsel %vm2534, %v2532, %v1631
  %v2598 = vsel %vm2534, %v2533, %v1633
  %vm2599 = vcmask 392192
  %v2600 = vsel %vm2599, %v2535, %v1699
  %v2601 = vsel %vm2599, %v2536, %v1701
  %v2602 = vsel %vm2599, %v2537, %v1703
  %v2603 = vsel %vm2599, %v2538, %v1705
  %v2604 = vsel %vm2599, %v2539, %v1707
  %v2605 = vsel %vm2599, %v2540, %v1709
  %v2606 = vsel %vm2599, %v2541, %v1711
  %v2607 = vsel %vm2599, %v2542, %v1713
  %v2608 = vsel %vm2599, %v2543, %v1715
  %v2609 = vsel %vm2599, %v2544, %v1717
  %v2610 = vsel %vm2599, %v2545, %v1719
  %v2611 = vsel %vm2599, %v2546, %v1721
  %v2612 = vsel %vm2599, %v2547, %v1723
  %v2613 = vsel %vm2599, %v2548, %v1725
  %v2614 = vsel %vm2599, %v2549, %v1727
  %v2615 = vsel %vm2599, %v2550, %v1729
  %v2616 = vsel %vm2599, %v2551, %v1731
  %v2617 = vsel %vm2599, %v2552, %v1733
  %v2618 = vsel %vm2599, %v2553, %v1735
  %v2619 = vsel %vm2599, %v2554, %v1737
  %v2620 = vsel %vm2599, %v2555, %v1739
  %v2621 = vsel %vm2599, %v2556, %v1741
  %v2622 = vsel %vm2599, %v2557, %v1743
  %v2623 = vsel %vm2599, %v2558, %v1745
  %v2624 = vsel %vm2599, %v2559, %v1747
  %v2625 = vsel %vm2599, %v2560, %v1749
  %v2626 = vsel %vm2599, %v2561, %v1751
  %v2627 = vsel %vm2599, %v2562, %v1753
  %v2628 = vsel %vm2599, %v2563, %v1755
  %v2629 = vsel %vm2599, %v2564, %v1757
  %v2630 = vsel %vm2599, %v2565, %v1759
  %v2631 = vsel %vm2599, %v2566, %v1761
  %v2632 = vsel %vm2599, %v2567, %v1763
  %v2633 = vsel %vm2599, %v2568, %v1765
  %v2634 = vsel %vm2599, %v2569, %v1767
  %v2635 = vsel %vm2599, %v2570, %v1769
  %v2636 = vsel %vm2599, %v2571, %v1771
  %v2637 = vsel %vm2599, %v2572, %v1773
  %v2638 = vsel %vm2599, %v2573, %v1775
  %v2639 = vsel %vm2599, %v2574, %v1777
  %v2640 = vsel %vm2599, %v2575, %v1779
  %v2641 = vsel %vm2599, %v2576, %v1781
  %v2642 = vsel %vm2599, %v2577, %v1783
  %v2643 = vsel %vm2599, %v2578, %v1785
  %v2644 = vsel %vm2599, %v2579, %v1787
  %v2645 = vsel %vm2599, %v2580, %v1789
  %v2646 = vsel %vm2599, %v2581, %v1791
  %v2647 = vsel %vm2599, %v2582, %v1793
  %v2648 = vsel %vm2599, %v2583, %v1795
  %v2649 = vsel %vm2599, %v2584, %v1797
  %v2650 = vsel %vm2599, %v2585, %v1799
  %v2651 = vsel %vm2599, %v2586, %v1801
  %v2652 = vsel %vm2599, %v2587, %v1803
  %v2653 = vsel %vm2599, %v2588, %v1805
  %v2654 = vsel %vm2599, %v2589, %v1807
  %v2655 = vsel %vm2599, %v2590, %v1809
  %v2656 = vsel %vm2599, %v2591, %v1811
  %v2657 = vsel %vm2599, %v2592, %v1813
  %v2658 = vsel %vm2599, %v2593, %v1815
  %v2659 = vsel %vm2599, %v2594, %v1817
  %v2660 = vsel %vm2599, %v2595, %v1819
  %v2661 = vsel %vm2599, %v2596, %v1821
  %v2662 = vsel %vm2599, %v2597, %v1823
  %v2663 = vsel %vm2599, %v2598, %v1825
  %vm2664 = vcmask 457728
  %v2665 = vsel %vm2664, %v2600, %v1891
  %v2666 = vsel %vm2664, %v2601, %v1893
  %v2667 = vsel %vm2664, %v2602, %v1895
  %v2668 = vsel %vm2664, %v2603, %v1897
  %v2669 = vsel %vm2664, %v2604, %v1899
  %v2670 = vsel %vm2664, %v2605, %v1901
  %v2671 = vsel %vm2664, %v2606, %v1903
  %v2672 = vsel %vm2664, %v2607, %v1905
  %v2673 = vsel %vm2664, %v2608, %v1907
  %v2674 = vsel %vm2664, %v2609, %v1909
  %v2675 = vsel %vm2664, %v2610, %v1911
  %v2676 = vsel %vm2664, %v2611, %v1913
  %v2677 = vsel %vm2664, %v2612, %v1915
  %v2678 = vsel %vm2664, %v2613, %v1917
  %v2679 = vsel %vm2664, %v2614, %v1919
  %v2680 = vsel %vm2664, %v2615, %v1921
  %v2681 = vsel %vm2664, %v2616, %v1923
  %v2682 = vsel %vm2664, %v2617, %v1925
  %v2683 = vsel %vm2664, %v2618, %v1927
  %v2684 = vsel %vm2664, %v2619, %v1929
  %v2685 = vsel %vm2664, %v2620, %v1931
  %v2686 = vsel %vm2664, %v2621, %v1933
  %v2687 = vsel %vm2664, %v2622, %v1935
  %v2688 = vsel %vm2664, %v2623, %v1937
  %v2689 = vsel %vm2664, %v2624, %v1939
  %v2690 = vsel %vm2664, %v2625, %v1941
  %v2691 = vsel %vm2664, %v2626, %v1943
  %v2692 = vsel %vm2664, %v2627, %v1945
  %v2693 = vsel %vm2664, %v2628, %v1947
  %v2694 = vsel %vm2664, %v2629, %v1949
  %v2695 = vsel %vm2664, %v2630, %v1951
  %v2696 = vsel %vm2664, %v2631, %v1953
  %v2697 = vsel %vm2664, %v2632, %v1955
  %v2698 = vsel %vm2664, %v2633, %v1957
  %v2699 = vsel %vm2664, %v2634, %v1959
  %v2700 = vsel %vm2664, %v2635, %v1961
  %v2701 = vsel %vm2664, %v2636, %v1963
  %v2702 = vsel %vm2664, %v2637, %v1965
  %v2703 = vsel %vm2664, %v2638, %v1967
  %v2704 = vsel %vm2664, %v2639, %v1969
  %v2705 = vsel %vm2664, %v2640, %v1971
  %v2706 = vsel %vm2664, %v2641, %v1973
  %v2707 = vsel %vm2664, %v2642, %v1975
  %v2708 = vsel %vm2664, %v2643, %v1977
  %v2709 = vsel %vm2664, %v2644, %v1979
  %v2710 = vsel %vm2664, %v2645, %v1981
  %v2711 = vsel %vm2664, %v2646, %v1983
  %v2712 = vsel %vm2664, %v2647, %v1985
  %v2713 = vsel %vm2664, %v2648, %v1987
  %v2714 = vsel %vm2664, %v2649, %v1989
  %v2715 = vsel %vm2664, %v2650, %v1991
  %v2716 = vsel %vm2664, %v2651, %v1993
  %v2717 = vsel %vm2664, %v2652, %v1995
  %v2718 = vsel %vm2664, %v2653, %v1997
  %v2719 = vsel %vm2664, %v2654, %v1999
  %v2720 = vsel %vm2664, %v2655, %v2001
  %v2721 = vsel %vm2664, %v2656, %v2003
  %v2722 = vsel %vm2664, %v2657, %v2005
  %v2723 = vsel %vm2664, %v2658, %v2007
  %v2724 = vsel %vm2664, %v2659, %v2009
  %v2725 = vsel %vm2664, %v2660, %v2011
  %v2726 = vsel %vm2664, %v2661, %v2013
  %v2727 = vsel %vm2664, %v2662, %v2015
  %v2728 = vsel %vm2664, %v2663, %v2017
  %vm2729 = vcmask 523264
  %v2730 = vsel %vm2729, %v2665, %v2083
  %v2731 = vsel %vm2729, %v2666, %v2085
  %v2732 = vsel %vm2729, %v2667, %v2087
  %v2733 = vsel %vm2729, %v2668, %v2089
  %v2734 = vsel %vm2729, %v2669, %v2091
  %v2735 = vsel %vm2729, %v2670, %v2093
  %v2736 = vsel %vm2729, %v2671, %v2095
  %v2737 = vsel %vm2729, %v2672, %v2097
  %v2738 = vsel %vm2729, %v2673, %v2099
  %v2739 = vsel %vm2729, %v2674, %v2101
  %v2740 = vsel %vm2729, %v2675, %v2103
  %v2741 = vsel %vm2729, %v2676, %v2105
  %v2742 = vsel %vm2729, %v2677, %v2107
  %v2743 = vsel %vm2729, %v2678, %v2109
  %v2744 = vsel %vm2729, %v2679, %v2111
  %v2745 = vsel %vm2729, %v2680, %v2113
  %v2746 = vsel %vm2729, %v2681, %v2115
  %v2747 = vsel %vm2729, %v2682, %v2117
  %v2748 = vsel %vm2729, %v2683, %v2119
  %v2749 = vsel %vm2729, %v2684, %v2121
  %v2750 = vsel %vm2729, %v2685, %v2123
  %v2751 = vsel %vm2729, %v2686, %v2125
  %v2752 = vsel %vm2729, %v2687, %v2127
  %v2753 = vsel %vm2729, %v2688, %v2129
  %v2754 = vsel %vm2729, %v2689, %v2131
  %v2755 = vsel %vm2729, %v2690, %v2133
  %v2756 = vsel %vm2729, %v2691, %v2135
  %v2757 = vsel %vm2729, %v2692, %v2137
  %v2758 = vsel %vm2729, %v2693, %v2139
  %v2759 = vsel %vm2729, %v2694, %v2141
  %v2760 = vsel %vm2729, %v2695, %v2143
  %v2761 = vsel %vm2729, %v2696, %v2145
  %v2762 = vsel %vm2729, %v2697, %v2147
  %v2763 = vsel %vm2729, %v2698, %v2149
  %v2764 = vsel %vm2729, %v2699, %v2151
  %v2765 = vsel %vm2729, %v2700, %v2153
  %v2766 = vsel %vm2729, %v2701, %v2155
  %v2767 = vsel %vm2729, %v2702, %v2157
  %v2768 = vsel %vm2729, %v2703, %v2159
  %v2769 = vsel %vm2729, %v2704, %v2161
  %v2770 = vsel %vm2729, %v2705, %v2163
  %v2771 = vsel %vm2729, %v2706, %v2165
  %v2772 = vsel %vm2729, %v2707, %v2167
  %v2773 = vsel %vm2729, %v2708, %v2169
  %v2774 = vsel %vm2729, %v2709, %v2171
  %v2775 = vsel %vm2729, %v2710, %v2173
  %v2776 = vsel %vm2729, %v2711, %v2175
  %v2777 = vsel %vm2729, %v2712, %v2177
  %v2778 = vsel %vm2729, %v2713, %v2179
  %v2779 = vsel %vm2729, %v2714, %v2181
  %v2780 = vsel %vm2729, %v2715, %v2183
  %v2781 = vsel %vm2729, %v2716, %v2185
  %v2782 = vsel %vm2729, %v2717, %v2187
  %v2783 = vsel %vm2729, %v2718, %v2189
  %v2784 = vsel %vm2729, %v2719, %v2191
  %v2785 = vsel %vm2729, %v2720, %v2193
  %v2786 = vsel %vm2729, %v2721, %v2195
  %v2787 = vsel %vm2729, %v2722, %v2197
  %v2788 = vsel %vm2729, %v2723, %v2199
  %v2789 = vsel %vm2729, %v2724, %v2201
  %v2790 = vsel %vm2729, %v2725, %v2203
  %v2791 = vsel %vm2729, %v2726, %v2205
  %v2792 = vsel %vm2729, %v2727, %v2207
  %v2793 = vsel %vm2729, %v2728, %v2209
  %v2794 = vld [vmem:[%s2] sm:$0xff]
  %v2795 = vld [vmem:[%s2 + $0x8] sm:$0xff]
  %v2796 = vld [vmem:[%s2 + $0x10] sm:$0xff]
  %v2797 = vld [vmem:[%s2 + $0x18] sm:$0xff]
  %v2798 = vld [vmem:[%s2 + $0x20] sm:$0xff]
  %v2799 = vld [vmem:[%s2 + $0x28] sm:$0xff]
  %v2800 = vld [vmem:[%s2 + $0x30] sm:$0xff]
  %v2801 = vld [vmem:[%s2 + $0x38] sm:$0xff]
  %v2802 = vld [vmem:[%s2 + $0x40] sm:$0xff]
  %v2803 = vld [vmem:[%s2 + $0x48] sm:$0xff]
  %v2804 = vld [vmem:[%s2 + $0x50] sm:$0xff]
  %v2805 = vld [vmem:[%s2 + $0x58] sm:$0xff]
  %v2806 = vld [vmem:[%s2 + $0x60] sm:$0xff]
  %v2807 = vld [vmem:[%s2 + $0x68] sm:$0xff]
  %v2808 = vld [vmem:[%s2 + $0x70] sm:$0xff]
  %v2809 = vld [vmem:[%s2 + $0x78] sm:$0xff]
  %v2810 = vld [vmem:[%s2 + $0x80] sm:$0xff]
  %v2811 = vld [vmem:[%s2 + $0x88] sm:$0xff]
  %v2812 = vld [vmem:[%s2 + $0x90] sm:$0xff]
  %v2813 = vld [vmem:[%s2 + $0x98] sm:$0xff]
  %v2814 = vld [vmem:[%s2 + $0xa0] sm:$0xff]
  %v2815 = vld [vmem:[%s2 + $0xa8] sm:$0xff]
  %v2816 = vld [vmem:[%s2 + $0xb0] sm:$0xff]
  %v2817 = vld [vmem:[%s2 + $0xb8] sm:$0xff]
  %v2818 = vld [vmem:[%s2 + $0xc0] sm:$0xff]
  %v2819 = vld [vmem:[%s2 + $0xc8] sm:$0xff]
  %v2820 = vld [vmem:[%s2 + $0xd0] sm:$0xff]
  %v2821 = vld [vmem:[%s2 + $0xd8] sm:$0xff]
  %v2822 = vld [vmem:[%s2 + $0xe0] sm:$0xff]
  %v2823 = vld [vmem:[%s2 + $0xe8] sm:$0xff]
  %v2824 = vld [vmem:[%s2 + $0xf0] sm:$0xff]
  %v2825 = vld [vmem:[%s2 + $0xf8] sm:$0xff]
  %v2826 = vld [vmem:[%s2 + $0x100] sm:$0xff]
  %v2827 = vld [vmem:[%s2 + $0x108] sm:$0xff]
  %v2828 = vld [vmem:[%s2 + $0x110] sm:$0xff]
  %v2829 = vld [vmem:[%s2 + $0x118] sm:$0xff]
  %v2830 = vld [vmem:[%s2 + $0x120] sm:$0xff]
  %v2831 = vld [vmem:[%s2 + $0x128] sm:$0xff]
  %v2832 = vld [vmem:[%s2 + $0x130] sm:$0xff]
  %v2833 = vld [vmem:[%s2 + $0x138] sm:$0xff]
  %v2834 = vld [vmem:[%s2 + $0x140] sm:$0xff]
  %v2835 = vld [vmem:[%s2 + $0x148] sm:$0xff]
  %v2836 = vld [vmem:[%s2 + $0x150] sm:$0xff]
  %v2837 = vld [vmem:[%s2 + $0x158] sm:$0xff]
  %v2838 = vld [vmem:[%s2 + $0x160] sm:$0xff]
  %v2839 = vld [vmem:[%s2 + $0x168] sm:$0xff]
  %v2840 = vld [vmem:[%s2 + $0x170] sm:$0xff]
  %v2841 = vld [vmem:[%s2 + $0x178] sm:$0xff]
  %v2842 = vld [vmem:[%s2 + $0x180] sm:$0xff]
  %v2843 = vld [vmem:[%s2 + $0x188] sm:$0xff]
  %v2844 = vld [vmem:[%s2 + $0x190] sm:$0xff]
  %v2845 = vld [vmem:[%s2 + $0x198] sm:$0xff]
  %v2846 = vld [vmem:[%s2 + $0x1a0] sm:$0xff]
  %v2847 = vld [vmem:[%s2 + $0x1a8] sm:$0xff]
  %v2848 = vld [vmem:[%s2 + $0x1b0] sm:$0xff]
  %v2849 = vld [vmem:[%s2 + $0x1b8] sm:$0xff]
  %v2850 = vld [vmem:[%s2 + $0x1c0] sm:$0xff]
  %v2851 = vld [vmem:[%s2 + $0x1c8] sm:$0xff]
  %v2852 = vld [vmem:[%s2 + $0x1d0] sm:$0xff]
  %v2853 = vld [vmem:[%s2 + $0x1d8] sm:$0xff]
  %v2854 = vld [vmem:[%s2 + $0x1e0] sm:$0xff]
  %v2855 = vld [vmem:[%s2 + $0x1e8] sm:$0xff]
  %v2856 = vld [vmem:[%s2 + $0x1f0] sm:$0xff]
  %v2857 = vld [vmem:[%s2 + $0x1f8] sm:$0xff]
  %v2858 = vmul.f32 %v2730, %v2794
  %v2859 = vmul.f32 %v2731, %v2795
  %v2860 = vmul.f32 %v2732, %v2796
  %v2861 = vmul.f32 %v2733, %v2797
  %v2862 = vmul.f32 %v2734, %v2798
  %v2863 = vmul.f32 %v2735, %v2799
  %v2864 = vmul.f32 %v2736, %v2800
  %v2865 = vmul.f32 %v2737, %v2801
  %v2866 = vmul.f32 %v2738, %v2802
  %v2867 = vmul.f32 %v2739, %v2803
  %v2868 = vmul.f32 %v2740, %v2804
  %v2869 = vmul.f32 %v2741, %v2805
  %v2870 = vmul.f32 %v2742, %v2806
  %v2871 = vmul.f32 %v2743, %v2807
  %v2872 = vmul.f32 %v2744, %v2808
  %v2873 = vmul.f32 %v2745, %v2809
  %v2874 = vmul.f32 %v2746, %v2810
  %v2875 = vmul.f32 %v2747, %v2811
  %v2876 = vmul.f32 %v2748, %v2812
  %v2877 = vmul.f32 %v2749, %v2813
  %v2878 = vmul.f32 %v2750, %v2814
  %v2879 = vmul.f32 %v2751, %v2815
  %v2880 = vmul.f32 %v2752, %v2816
  %v2881 = vmul.f32 %v2753, %v2817
  %v2882 = vmul.f32 %v2754, %v2818
  %v2883 = vmul.f32 %v2755, %v2819
  %v2884 = vmul.f32 %v2756, %v2820
  %v2885 = vmul.f32 %v2757, %v2821
  %v2886 = vmul.f32 %v2758, %v2822
  %v2887 = vmul.f32 %v2759, %v2823
  %v2888 = vmul.f32 %v2760, %v2824
  %v2889 = vmul.f32 %v2761, %v2825
  %v2890 = vmul.f32 %v2762, %v2826
  %v2891 = vmul.f32 %v2763, %v2827
  %v2892 = vmul.f32 %v2764, %v2828
  %v2893 = vmul.f32 %v2765, %v2829
  %v2894 = vmul.f32 %v2766, %v2830
  %v2895 = vmul.f32 %v2767, %v2831
  %v2896 = vmul.f32 %v2768, %v2832
  %v2897 = vmul.f32 %v2769, %v2833
  %v2898 = vmul.f32 %v2770, %v2834
  %v2899 = vmul.f32 %v2771, %v2835
  %v2900 = vmul.f32 %v2772, %v2836
  %v2901 = vmul.f32 %v2773, %v2837
  %v2902 = vmul.f32 %v2774, %v2838
  %v2903 = vmul.f32 %v2775, %v2839
  %v2904 = vmul.f32 %v2776, %v2840
  %v2905 = vmul.f32 %v2777, %v2841
  %v2906 = vmul.f32 %v2778, %v2842
  %v2907 = vmul.f32 %v2779, %v2843
  %v2908 = vmul.f32 %v2780, %v2844
  %v2909 = vmul.f32 %v2781, %v2845
  %v2910 = vmul.f32 %v2782, %v2846
  %v2911 = vmul.f32 %v2783, %v2847
  %v2912 = vmul.f32 %v2784, %v2848
  %v2913 = vmul.f32 %v2785, %v2849
  %v2914 = vmul.f32 %v2786, %v2850
  %v2915 = vmul.f32 %v2787, %v2851
  %v2916 = vmul.f32 %v2788, %v2852
  %v2917 = vmul.f32 %v2789, %v2853
  %v2918 = vmul.f32 %v2790, %v2854
  %v2919 = vmul.f32 %v2791, %v2855
  %v2920 = vmul.f32 %v2792, %v2856
  %v2921 = vmul.f32 %v2793, %v2857
  %v2922 = vld [vmem:[%s1] sm:$0xff]
  %v2923 = vld [vmem:[%s1 + $0x8] sm:$0xff]
  %v2924 = vld [vmem:[%s1 + $0x10] sm:$0xff]
  %v2925 = vld [vmem:[%s1 + $0x18] sm:$0xff]
  %v2926 = vld [vmem:[%s1 + $0x20] sm:$0xff]
  %v2927 = vld [vmem:[%s1 + $0x28] sm:$0xff]
  %v2928 = vld [vmem:[%s1 + $0x30] sm:$0xff]
  %v2929 = vld [vmem:[%s1 + $0x38] sm:$0xff]
  %v2930 = vld [vmem:[%s1 + $0x40] sm:$0xff]
  %vm2931 = vcmask 588800
  %v2933 = vsel %vm2931, %v2858, 0
  %v2936 = vsel %vm2931, %v2859, 0
  %v2939 = vsel %vm2931, %v2860, 0
  %v2942 = vsel %vm2931, %v2861, 0
  %v2945 = vsel %vm2931, %v2862, 0
  %v2948 = vsel %vm2931, %v2863, 0
  %v2951 = vsel %vm2931, %v2864, 0
  %v2954 = vsel %vm2931, %v2865, 0
  %v2957 = vsel %vm2931, %v2866, 0
  %v2960 = vsel %vm2931, %v2867, 0
  %v2963 = vsel %vm2931, %v2868, 0
  %v2966 = vsel %vm2931, %v2869, 0
  %v2969 = vsel %vm2931, %v2870, 0
  %v2972 = vsel %vm2931, %v2871, 0
  %v2975 = vsel %vm2931, %v2872, 0
  %v2978 = vsel %vm2931, %v2873, 0
  %v2981 = vsel %vm2931, %v2874, 0
  %v2984 = vsel %vm2931, %v2875, 0
  %v2987 = vsel %vm2931, %v2876, 0
  %v2990 = vsel %vm2931, %v2877, 0
  %v2993 = vsel %vm2931, %v2878, 0
  %v2996 = vsel %vm2931, %v2879, 0
  %v2999 = vsel %vm2931, %v2880, 0
  %v3002 = vsel %vm2931, %v2881, 0
  %v3005 = vsel %vm2931, %v2882, 0
  %v3008 = vsel %vm2931, %v2883, 0
  %v3011 = vsel %vm2931, %v2884, 0
  %v3014 = vsel %vm2931, %v2885, 0
  %v3017 = vsel %vm2931, %v2886, 0
  %v3020 = vsel %vm2931, %v2887, 0
  %v3023 = vsel %vm2931, %v2888, 0
  %v3026 = vsel %vm2931, %v2889, 0
  %v3029 = vsel %vm2931, %v2890, 0
  %v3032 = vsel %vm2931, %v2891, 0
  %v3035 = vsel %vm2931, %v2892, 0
  %v3038 = vsel %vm2931, %v2893, 0
  %v3041 = vsel %vm2931, %v2894, 0
  %v3044 = vsel %vm2931, %v2895, 0
  %v3047 = vsel %vm2931, %v2896, 0
  %v3050 = vsel %vm2931, %v2897, 0
  %v3053 = vsel %vm2931, %v2898, 0
  %v3056 = vsel %vm2931, %v2899, 0
  %v3059 = vsel %vm2931, %v2900, 0
  %v3062 = vsel %vm2931, %v2901, 0
  %v3065 = vsel %vm2931, %v2902, 0
  %v3068 = vsel %vm2931, %v2903, 0
  %v3071 = vsel %vm2931, %v2904, 0
  %v3074 = vsel %vm2931, %v2905, 0
  %v3077 = vsel %vm2931, %v2906, 0
  %v3080 = vsel %vm2931, %v2907, 0
  %v3083 = vsel %vm2931, %v2908, 0
  %v3086 = vsel %vm2931, %v2909, 0
  %v3089 = vsel %vm2931, %v2910, 0
  %v3092 = vsel %vm2931, %v2911, 0
  %v3095 = vsel %vm2931, %v2912, 0
  %v3098 = vsel %vm2931, %v2913, 0
  %v3101 = vsel %vm2931, %v2914, 0
  %v3104 = vsel %vm2931, %v2915, 0
  %v3107 = vsel %vm2931, %v2916, 0
  %v3110 = vsel %vm2931, %v2917, 0
  %v3113 = vsel %vm2931, %v2918, 0
  %v3116 = vsel %vm2931, %v2919, 0
  %v3119 = vsel %vm2931, %v2920, 0
  %v3122 = vsel %vm2931, %v2921, 0
  %3124 = vmatpush.msra.mxu0 0.0
  %3125 = vmatpush.msra.mxu0 0.0
  %3126 = vmatpush.msra.mxu0 0.0
  %3127 = vmatpush.msra.mxu0 0.0
  %3128 = vmatpush.msra.mxu0 0.0
  %3129 = vmatpush.msra.mxu0 0.0
  %3130 = vmatpush.msra.mxu0 0.0
  %3131 = vmatpush.msra.mxu0 %v2930
  %3132 = vmatpush.msra.mxu0 %v2929
  %3133 = vmatpush.msra.mxu0 %v2928
  %3134 = vmatpush.msra.mxu0 %v2927
  %3135 = vmatpush.msra.mxu0 %v2926
  %3136 = vmatpush.msra.mxu0 %v2925
  %3137 = vmatpush.msra.mxu0 %v2924
  %3138 = vmatpush.msra.mxu0 %v2923
  %3139 = vmatpush.msra.mxu0 %v2922
  %3140 = vmatmul.f32.gmra.mxu0 %v2933
  %v3141 = vpop.f32.mrf.mxu0
  %v3142 = vadd.f32 0.0, %v3141
  %3143 = vmatmul.f32.gmra.mxu0 %v2936
  %v3144 = vpop.f32.mrf.mxu0
  %v3145 = vadd.f32 0.0, %v3144
  %3146 = vmatmul.f32.gmra.mxu0 %v2939
  %v3147 = vpop.f32.mrf.mxu0
  %v3148 = vadd.f32 0.0, %v3147
  %3149 = vmatmul.f32.gmra.mxu0 %v2942
  %v3150 = vpop.f32.mrf.mxu0
  %v3151 = vadd.f32 0.0, %v3150
  %3152 = vmatmul.f32.gmra.mxu0 %v2945
  %v3153 = vpop.f32.mrf.mxu0
  %v3154 = vadd.f32 0.0, %v3153
  %3155 = vmatmul.f32.gmra.mxu0 %v2948
  %v3156 = vpop.f32.mrf.mxu0
  %v3157 = vadd.f32 0.0, %v3156
  %3158 = vmatmul.f32.gmra.mxu0 %v2951
  %v3159 = vpop.f32.mrf.mxu0
  %v3160 = vadd.f32 0.0, %v3159
  %3161 = vmatmul.f32.gmra.mxu0 %v2954
  %v3162 = vpop.f32.mrf.mxu0
  %v3163 = vadd.f32 0.0, %v3162
  %3164 = vmatmul.f32.gmra.mxu0 %v2957
  %v3165 = vpop.f32.mrf.mxu0
  %v3166 = vadd.f32 0.0, %v3165
  %3167 = vmatmul.f32.gmra.mxu0 %v2960
  %v3168 = vpop.f32.mrf.mxu0
  %v3169 = vadd.f32 0.0, %v3168
  %3170 = vmatmul.f32.gmra.mxu0 %v2963
  %v3171 = vpop.f32.mrf.mxu0
  %v3172 = vadd.f32 0.0, %v3171
  %3173 = vmatmul.f32.gmra.mxu0 %v2966
  %v3174 = vpop.f32.mrf.mxu0
  %v3175 = vadd.f32 0.0, %v3174
  %3176 = vmatmul.f32.gmra.mxu0 %v2969
  %v3177 = vpop.f32.mrf.mxu0
  %v3178 = vadd.f32 0.0, %v3177
  %3179 = vmatmul.f32.gmra.mxu0 %v2972
  %v3180 = vpop.f32.mrf.mxu0
  %v3181 = vadd.f32 0.0, %v3180
  %3182 = vmatmul.f32.gmra.mxu0 %v2975
  %v3183 = vpop.f32.mrf.mxu0
  %v3184 = vadd.f32 0.0, %v3183
  %3185 = vmatmul.f32.gmra.mxu0 %v2978
  %v3186 = vpop.f32.mrf.mxu0
  %v3187 = vadd.f32 0.0, %v3186
  %3188 = vmatmul.f32.gmra.mxu0 %v2981
  %v3189 = vpop.f32.mrf.mxu0
  %v3190 = vadd.f32 0.0, %v3189
  %3191 = vmatmul.f32.gmra.mxu0 %v2984
  %v3192 = vpop.f32.mrf.mxu0
  %v3193 = vadd.f32 0.0, %v3192
  %3194 = vmatmul.f32.gmra.mxu0 %v2987
  %v3195 = vpop.f32.mrf.mxu0
  %v3196 = vadd.f32 0.0, %v3195
  %3197 = vmatmul.f32.gmra.mxu0 %v2990
  %v3198 = vpop.f32.mrf.mxu0
  %v3199 = vadd.f32 0.0, %v3198
  %3200 = vmatmul.f32.gmra.mxu0 %v2993
  %v3201 = vpop.f32.mrf.mxu0
  %v3202 = vadd.f32 0.0, %v3201
  %3203 = vmatmul.f32.gmra.mxu0 %v2996
  %v3204 = vpop.f32.mrf.mxu0
  %v3205 = vadd.f32 0.0, %v3204
  %3206 = vmatmul.f32.gmra.mxu0 %v2999
  %v3207 = vpop.f32.mrf.mxu0
  %v3208 = vadd.f32 0.0, %v3207
  %3209 = vmatmul.f32.gmra.mxu0 %v3002
  %v3210 = vpop.f32.mrf.mxu0
  %v3211 = vadd.f32 0.0, %v3210
  %3212 = vmatmul.f32.gmra.mxu0 %v3005
  %v3213 = vpop.f32.mrf.mxu0
  %v3214 = vadd.f32 0.0, %v3213
  %3215 = vmatmul.f32.gmra.mxu0 %v3008
  %v3216 = vpop.f32.mrf.mxu0
  %v3217 = vadd.f32 0.0, %v3216
  %3218 = vmatmul.f32.gmra.mxu0 %v3011
  %v3219 = vpop.f32.mrf.mxu0
  %v3220 = vadd.f32 0.0, %v3219
  %3221 = vmatmul.f32.gmra.mxu0 %v3014
  %v3222 = vpop.f32.mrf.mxu0
  %v3223 = vadd.f32 0.0, %v3222
  %3224 = vmatmul.f32.gmra.mxu0 %v3017
  %v3225 = vpop.f32.mrf.mxu0
  %v3226 = vadd.f32 0.0, %v3225
  %3227 = vmatmul.f32.gmra.mxu0 %v3020
  %v3228 = vpop.f32.mrf.mxu0
  %v3229 = vadd.f32 0.0, %v3228
  %3230 = vmatmul.f32.gmra.mxu0 %v3023
  %v3231 = vpop.f32.mrf.mxu0
  %v3232 = vadd.f32 0.0, %v3231
  %3233 = vmatmul.f32.gmra.mxu0 %v3026
  %v3234 = vpop.f32.mrf.mxu0
  %v3235 = vadd.f32 0.0, %v3234
  %3236 = vmatmul.f32.gmra.mxu0 %v3029
  %v3237 = vpop.f32.mrf.mxu0
  %v3238 = vadd.f32 0.0, %v3237
  %3239 = vmatmul.f32.gmra.mxu0 %v3032
  %v3240 = vpop.f32.mrf.mxu0
  %v3241 = vadd.f32 0.0, %v3240
  %3242 = vmatmul.f32.gmra.mxu0 %v3035
  %v3243 = vpop.f32.mrf.mxu0
  %v3244 = vadd.f32 0.0, %v3243
  %3245 = vmatmul.f32.gmra.mxu0 %v3038
  %v3246 = vpop.f32.mrf.mxu0
  %v3247 = vadd.f32 0.0, %v3246
  %3248 = vmatmul.f32.gmra.mxu0 %v3041
  %v3249 = vpop.f32.mrf.mxu0
  %v3250 = vadd.f32 0.0, %v3249
  %3251 = vmatmul.f32.gmra.mxu0 %v3044
  %v3252 = vpop.f32.mrf.mxu0
  %v3253 = vadd.f32 0.0, %v3252
  %3254 = vmatmul.f32.gmra.mxu0 %v3047
  %v3255 = vpop.f32.mrf.mxu0
  %v3256 = vadd.f32 0.0, %v3255
  %3257 = vmatmul.f32.gmra.mxu0 %v3050
  %v3258 = vpop.f32.mrf.mxu0
  %v3259 = vadd.f32 0.0, %v3258
  %3260 = vmatmul.f32.gmra.mxu0 %v3053
  %v3261 = vpop.f32.mrf.mxu0
  %v3262 = vadd.f32 0.0, %v3261
  %3263 = vmatmul.f32.gmra.mxu0 %v3056
  %v3264 = vpop.f32.mrf.mxu0
  %v3265 = vadd.f32 0.0, %v3264
  %3266 = vmatmul.f32.gmra.mxu0 %v3059
  %v3267 = vpop.f32.mrf.mxu0
  %v3268 = vadd.f32 0.0, %v3267
  %3269 = vmatmul.f32.gmra.mxu0 %v3062
  %v3270 = vpop.f32.mrf.mxu0
  %v3271 = vadd.f32 0.0, %v3270
  %3272 = vmatmul.f32.gmra.mxu0 %v3065
  %v3273 = vpop.f32.mrf.mxu0
  %v3274 = vadd.f32 0.0, %v3273
  %3275 = vmatmul.f32.gmra.mxu0 %v3068
  %v3276 = vpop.f32.mrf.mxu0
  %v3277 = vadd.f32 0.0, %v3276
  %3278 = vmatmul.f32.gmra.mxu0 %v3071
  %v3279 = vpop.f32.mrf.mxu0
  %v3280 = vadd.f32 0.0, %v3279
  %3281 = vmatmul.f32.gmra.mxu0 %v3074
  %v3282 = vpop.f32.mrf.mxu0
  %v3283 = vadd.f32 0.0, %v3282
  %3284 = vmatmul.f32.gmra.mxu0 %v3077
  %v3285 = vpop.f32.mrf.mxu0
  %v3286 = vadd.f32 0.0, %v3285
  %3287 = vmatmul.f32.gmra.mxu0 %v3080
  %v3288 = vpop.f32.mrf.mxu0
  %v3289 = vadd.f32 0.0, %v3288
  %3290 = vmatmul.f32.gmra.mxu0 %v3083
  %v3291 = vpop.f32.mrf.mxu0
  %v3292 = vadd.f32 0.0, %v3291
  %3293 = vmatmul.f32.gmra.mxu0 %v3086
  %v3294 = vpop.f32.mrf.mxu0
  %v3295 = vadd.f32 0.0, %v3294
  %3296 = vmatmul.f32.gmra.mxu0 %v3089
  %v3297 = vpop.f32.mrf.mxu0
  %v3298 = vadd.f32 0.0, %v3297
  %3299 = vmatmul.f32.gmra.mxu0 %v3092
  %v3300 = vpop.f32.mrf.mxu0
  %v3301 = vadd.f32 0.0, %v3300
  %3302 = vmatmul.f32.gmra.mxu0 %v3095
  %v3303 = vpop.f32.mrf.mxu0
  %v3304 = vadd.f32 0.0, %v3303
  %3305 = vmatmul.f32.gmra.mxu0 %v3098
  %v3306 = vpop.f32.mrf.mxu0
  %v3307 = vadd.f32 0.0, %v3306
  %3308 = vmatmul.f32.gmra.mxu0 %v3101
  %v3309 = vpop.f32.mrf.mxu0
  %v3310 = vadd.f32 0.0, %v3309
  %3311 = vmatmul.f32.gmra.mxu0 %v3104
  %v3312 = vpop.f32.mrf.mxu0
  %v3313 = vadd.f32 0.0, %v3312
  %3314 = vmatmul.f32.gmra.mxu0 %v3107
  %v3315 = vpop.f32.mrf.mxu0
  %v3316 = vadd.f32 0.0, %v3315
  %3317 = vmatmul.f32.gmra.mxu0 %v3110
  %v3318 = vpop.f32.mrf.mxu0
  %v3319 = vadd.f32 0.0, %v3318
  %3320 = vmatmul.f32.gmra.mxu0 %v3113
  %v3321 = vpop.f32.mrf.mxu0
  %v3322 = vadd.f32 0.0, %v3321
  %3323 = vmatmul.f32.gmra.mxu0 %v3116
  %v3324 = vpop.f32.mrf.mxu0
  %v3325 = vadd.f32 0.0, %v3324
  %3326 = vmatmul.f32.gmra.mxu0 %v3119
  %v3327 = vpop.f32.mrf.mxu0
  %v3328 = vadd.f32 0.0, %v3327
  %3329 = vmatmul.f32.gmra.mxu0 %v3122
  %v3330 = vpop.f32.mrf.mxu0
  %v3331 = vadd.f32 0.0, %v3330
  %3332 = vdwg.mxu0
  %3333 = vst.msk [vmem:[%s5] sm:$0xff] %vm2274, %v3142
  %3334 = vst.msk [vmem:[%s5 + $0x8] sm:$0xff] %vm2274, %v3145
  %3335 = vst.msk [vmem:[%s5 + $0x10] sm:$0xff] %vm2274, %v3148
  %3336 = vst.msk [vmem:[%s5 + $0x18] sm:$0xff] %vm2274, %v3151
  %3337 = vst.msk [vmem:[%s5 + $0x20] sm:$0xff] %vm2274, %v3154
  %3338 = vst.msk [vmem:[%s5 + $0x28] sm:$0xff] %vm2274, %v3157
  %3339 = vst.msk [vmem:[%s5 + $0x30] sm:$0xff] %vm2274, %v3160
  %3340 = vst.msk [vmem:[%s5 + $0x38] sm:$0xff] %vm2274, %v3163
  %3341 = vst.msk [vmem:[%s5 + $0x40] sm:$0xff] %vm2274, %v3166
  %3342 = vst.msk [vmem:[%s5 + $0x48] sm:$0xff] %vm2274, %v3169
  %3343 = vst.msk [vmem:[%s5 + $0x50] sm:$0xff] %vm2274, %v3172
  %3344 = vst.msk [vmem:[%s5 + $0x58] sm:$0xff] %vm2274, %v3175
  %3345 = vst.msk [vmem:[%s5 + $0x60] sm:$0xff] %vm2274, %v3178
  %3346 = vst.msk [vmem:[%s5 + $0x68] sm:$0xff] %vm2274, %v3181
  %3347 = vst.msk [vmem:[%s5 + $0x70] sm:$0xff] %vm2274, %v3184
  %3348 = vst.msk [vmem:[%s5 + $0x78] sm:$0xff] %vm2274, %v3187
  %3349 = vst.msk [vmem:[%s5 + $0x80] sm:$0xff] %vm2274, %v3190
  %3350 = vst.msk [vmem:[%s5 + $0x88] sm:$0xff] %vm2274, %v3193
  %3351 = vst.msk [vmem:[%s5 + $0x90] sm:$0xff] %vm2274, %v3196
  %3352 = vst.msk [vmem:[%s5 + $0x98] sm:$0xff] %vm2274, %v3199
  %3353 = vst.msk [vmem:[%s5 + $0xa0] sm:$0xff] %vm2274, %v3202
  %3354 = vst.msk [vmem:[%s5 + $0xa8] sm:$0xff] %vm2274, %v3205
  %3355 = vst.msk [vmem:[%s5 + $0xb0] sm:$0xff] %vm2274, %v3208
  %3356 = vst.msk [vmem:[%s5 + $0xb8] sm:$0xff] %vm2274, %v3211
  %3357 = vst.msk [vmem:[%s5 + $0xc0] sm:$0xff] %vm2274, %v3214
  %3358 = vst.msk [vmem:[%s5 + $0xc8] sm:$0xff] %vm2274, %v3217
  %3359 = vst.msk [vmem:[%s5 + $0xd0] sm:$0xff] %vm2274, %v3220
  %3360 = vst.msk [vmem:[%s5 + $0xd8] sm:$0xff] %vm2274, %v3223
  %3361 = vst.msk [vmem:[%s5 + $0xe0] sm:$0xff] %vm2274, %v3226
  %3362 = vst.msk [vmem:[%s5 + $0xe8] sm:$0xff] %vm2274, %v3229
  %3363 = vst.msk [vmem:[%s5 + $0xf0] sm:$0xff] %vm2274, %v3232
  %3364 = vst.msk [vmem:[%s5 + $0xf8] sm:$0xff] %vm2274, %v3235
  %3365 = vst.msk [vmem:[%s5 + $0x100] sm:$0xff] %vm2274, %v3238
  %3366 = vst.msk [vmem:[%s5 + $0x108] sm:$0xff] %vm2274, %v3241
  %3367 = vst.msk [vmem:[%s5 + $0x110] sm:$0xff] %vm2274, %v3244
  %3368 = vst.msk [vmem:[%s5 + $0x118] sm:$0xff] %vm2274, %v3247
  %3369 = vst.msk [vmem:[%s5 + $0x120] sm:$0xff] %vm2274, %v3250
  %3370 = vst.msk [vmem:[%s5 + $0x128] sm:$0xff] %vm2274, %v3253
  %3371 = vst.msk [vmem:[%s5 + $0x130] sm:$0xff] %vm2274, %v3256
  %3372 = vst.msk [vmem:[%s5 + $0x138] sm:$0xff] %vm2274, %v3259
  %3373 = vst.msk [vmem:[%s5 + $0x140] sm:$0xff] %vm2274, %v3262
  %3374 = vst.msk [vmem:[%s5 + $0x148] sm:$0xff] %vm2274, %v3265
  %3375 = vst.msk [vmem:[%s5 + $0x150] sm:$0xff] %vm2274, %v3268
  %3376 = vst.msk [vmem:[%s5 + $0x158] sm:$0xff] %vm2274, %v3271
  %3377 = vst.msk [vmem:[%s5 + $0x160] sm:$0xff] %vm2274, %v3274
  %3378 = vst.msk [vmem:[%s5 + $0x168] sm:$0xff] %vm2274, %v3277
  %3379 = vst.msk [vmem:[%s5 + $0x170] sm:$0xff] %vm2274, %v3280
  %3380 = vst.msk [vmem:[%s5 + $0x178] sm:$0xff] %vm2274, %v3283
  %3381 = vst.msk [vmem:[%s5 + $0x180] sm:$0xff] %vm2274, %v3286
  %3382 = vst.msk [vmem:[%s5 + $0x188] sm:$0xff] %vm2274, %v3289
  %3383 = vst.msk [vmem:[%s5 + $0x190] sm:$0xff] %vm2274, %v3292
  %3384 = vst.msk [vmem:[%s5 + $0x198] sm:$0xff] %vm2274, %v3295
  %3385 = vst.msk [vmem:[%s5 + $0x1a0] sm:$0xff] %vm2274, %v3298
  %3386 = vst.msk [vmem:[%s5 + $0x1a8] sm:$0xff] %vm2274, %v3301
  %3387 = vst.msk [vmem:[%s5 + $0x1b0] sm:$0xff] %vm2274, %v3304
  %3388 = vst.msk [vmem:[%s5 + $0x1b8] sm:$0xff] %vm2274, %v3307
  %3389 = vst.msk [vmem:[%s5 + $0x1c0] sm:$0xff] %vm2274, %v3310
  %3390 = vst.msk [vmem:[%s5 + $0x1c8] sm:$0xff] %vm2274, %v3313
  %3391 = vst.msk [vmem:[%s5 + $0x1d0] sm:$0xff] %vm2274, %v3316
  %3392 = vst.msk [vmem:[%s5 + $0x1d8] sm:$0xff] %vm2274, %v3319
  %3393 = vst.msk [vmem:[%s5 + $0x1e0] sm:$0xff] %vm2274, %v3322
  %3394 = vst.msk [vmem:[%s5 + $0x1e8] sm:$0xff] %vm2274, %v3325
  %3395 = vst.msk [vmem:[%s5 + $0x1f0] sm:$0xff] %vm2274, %v3328
  %3396 = vst.msk [vmem:[%s5 + $0x1f8] sm:$0xff] %vm2274, %v3331
  %v3397 = vsel %vm2274, %v3142, 0.0
  %v3398 = vsel %vm2274, %v3145, 0.0
  %v3399 = vadd.f32 %v3397, %v3398
  %v3400 = vsel %vm2274, %v3148, 0.0
  %v3401 = vadd.f32 %v3399, %v3400
  %v3402 = vsel %vm2274, %v3151, 0.0
  %v3403 = vadd.f32 %v3401, %v3402
  %v3404 = vsel %vm2274, %v3154, 0.0
  %v3405 = vadd.f32 %v3403, %v3404
  %v3406 = vsel %vm2274, %v3157, 0.0
  %v3407 = vadd.f32 %v3405, %v3406
  %v3408 = vsel %vm2274, %v3160, 0.0
  %v3409 = vadd.f32 %v3407, %v3408
  %v3410 = vsel %vm2274, %v3163, 0.0
  %v3411 = vadd.f32 %v3409, %v3410
  %v3412 = vsel %vm2274, %v3166, 0.0
  %v3413 = vadd.f32 %v3411, %v3412
  %v3414 = vsel %vm2274, %v3169, 0.0
  %v3415 = vadd.f32 %v3413, %v3414
  %v3416 = vsel %vm2274, %v3172, 0.0
  %v3417 = vadd.f32 %v3415, %v3416
  %v3418 = vsel %vm2274, %v3175, 0.0
  %v3419 = vadd.f32 %v3417, %v3418
  %v3420 = vsel %vm2274, %v3178, 0.0
  %v3421 = vadd.f32 %v3419, %v3420
  %v3422 = vsel %vm2274, %v3181, 0.0
  %v3423 = vadd.f32 %v3421, %v3422
  %v3424 = vsel %vm2274, %v3184, 0.0
  %v3425 = vadd.f32 %v3423, %v3424
  %v3426 = vsel %vm2274, %v3187, 0.0
  %v3427 = vadd.f32 %v3425, %v3426
  %v3428 = vsel %vm2274, %v3190, 0.0
  %v3429 = vadd.f32 %v3427, %v3428
  %v3430 = vsel %vm2274, %v3193, 0.0
  %v3431 = vadd.f32 %v3429, %v3430
  %v3432 = vsel %vm2274, %v3196, 0.0
  %v3433 = vadd.f32 %v3431, %v3432
  %v3434 = vsel %vm2274, %v3199, 0.0
  %v3435 = vadd.f32 %v3433, %v3434
  %v3436 = vsel %vm2274, %v3202, 0.0
  %v3437 = vadd.f32 %v3435, %v3436
  %v3438 = vsel %vm2274, %v3205, 0.0
  %v3439 = vadd.f32 %v3437, %v3438
  %v3440 = vsel %vm2274, %v3208, 0.0
  %v3441 = vadd.f32 %v3439, %v3440
  %v3442 = vsel %vm2274, %v3211, 0.0
  %v3443 = vadd.f32 %v3441, %v3442
  %v3444 = vsel %vm2274, %v3214, 0.0
  %v3445 = vadd.f32 %v3443, %v3444
  %v3446 = vsel %vm2274, %v3217, 0.0
  %v3447 = vadd.f32 %v3445, %v3446
  %v3448 = vsel %vm2274, %v3220, 0.0
  %v3449 = vadd.f32 %v3447, %v3448
  %v3450 = vsel %vm2274, %v3223, 0.0
  %v3451 = vadd.f32 %v3449, %v3450
  %v3452 = vsel %vm2274, %v3226, 0.0
  %v3453 = vadd.f32 %v3451, %v3452
  %v3454 = vsel %vm2274, %v3229, 0.0
  %v3455 = vadd.f32 %v3453, %v3454
  %v3456 = vsel %vm2274, %v3232, 0.0
  %v3457 = vadd.f32 %v3455, %v3456
  %v3458 = vsel %vm2274, %v3235, 0.0
  %v3459 = vadd.f32 %v3457, %v3458
  %v3460 = vsel %vm2274, %v3238, 0.0
  %v3461 = vadd.f32 %v3459, %v3460
  %v3462 = vsel %vm2274, %v3241, 0.0
  %v3463 = vadd.f32 %v3461, %v3462
  %v3464 = vsel %vm2274, %v3244, 0.0
  %v3465 = vadd.f32 %v3463, %v3464
  %v3466 = vsel %vm2274, %v3247, 0.0
  %v3467 = vadd.f32 %v3465, %v3466
  %v3468 = vsel %vm2274, %v3250, 0.0
  %v3469 = vadd.f32 %v3467, %v3468
  %v3470 = vsel %vm2274, %v3253, 0.0
  %v3471 = vadd.f32 %v3469, %v3470
  %v3472 = vsel %vm2274, %v3256, 0.0
  %v3473 = vadd.f32 %v3471, %v3472
  %v3474 = vsel %vm2274, %v3259, 0.0
  %v3475 = vadd.f32 %v3473, %v3474
  %v3476 = vsel %vm2274, %v3262, 0.0
  %v3477 = vadd.f32 %v3475, %v3476
  %v3478 = vsel %vm2274, %v3265, 0.0
  %v3479 = vadd.f32 %v3477, %v3478
  %v3480 = vsel %vm2274, %v3268, 0.0
  %v3481 = vadd.f32 %v3479, %v3480
  %v3482 = vsel %vm2274, %v3271, 0.0
  %v3483 = vadd.f32 %v3481, %v3482
  %v3484 = vsel %vm2274, %v3274, 0.0
  %v3485 = vadd.f32 %v3483, %v3484
  %v3486 = vsel %vm2274, %v3277, 0.0
  %v3487 = vadd.f32 %v3485, %v3486
  %v3488 = vsel %vm2274, %v3280, 0.0
  %v3489 = vadd.f32 %v3487, %v3488
  %v3490 = vsel %vm2274, %v3283, 0.0
  %v3491 = vadd.f32 %v3489, %v3490
  %v3492 = vsel %vm2274, %v3286, 0.0
  %v3493 = vadd.f32 %v3491, %v3492
  %v3494 = vsel %vm2274, %v3289, 0.0
  %v3495 = vadd.f32 %v3493, %v3494
  %v3496 = vsel %vm2274, %v3292, 0.0
  %v3497 = vadd.f32 %v3495, %v3496
  %v3498 = vsel %vm2274, %v3295, 0.0
  %v3499 = vadd.f32 %v3497, %v3498
  %v3500 = vsel %vm2274, %v3298, 0.0
  %v3501 = vadd.f32 %v3499, %v3500
  %v3502 = vsel %vm2274, %v3301, 0.0
  %v3503 = vadd.f32 %v3501, %v3502
  %v3504 = vsel %vm2274, %v3304, 0.0
  %v3505 = vadd.f32 %v3503, %v3504
  %v3506 = vsel %vm2274, %v3307, 0.0
  %v3507 = vadd.f32 %v3505, %v3506
  %v3508 = vsel %vm2274, %v3310, 0.0
  %v3509 = vadd.f32 %v3507, %v3508
  %v3510 = vsel %vm2274, %v3313, 0.0
  %v3511 = vadd.f32 %v3509, %v3510
  %v3512 = vsel %vm2274, %v3316, 0.0
  %v3513 = vadd.f32 %v3511, %v3512
  %v3514 = vsel %vm2274, %v3319, 0.0
  %v3515 = vadd.f32 %v3513, %v3514
  %v3516 = vsel %vm2274, %v3322, 0.0
  %v3517 = vadd.f32 %v3515, %v3516
  %v3518 = vsel %vm2274, %v3325, 0.0
  %v3519 = vadd.f32 %v3517, %v3518
  %v3520 = vsel %vm2274, %v3328, 0.0
  %v3521 = vadd.f32 %v3519, %v3520
  %v3522 = vsel %vm2274, %v3331, 0.0
  %v3523 = vadd.f32 %v3521, %v3522
  %v3524 = vrot.slane %v3523, 4
  %v3525 = vadd.f32 %v3523, %v3524
  %v3526 = vrot.slane %v3525, 2
  %v3527 = vadd.f32 %v3525, %v3526
  %v3528 = vrot.slane %v3527, 1
  %v3529 = vadd.f32 %v3527, %v3528
  %v3530 = vmul.f32 %v3142, %v3142
  %v3531 = vmul.f32 %v3145, %v3145
  %v3532 = vmul.f32 %v3148, %v3148
  %v3533 = vmul.f32 %v3151, %v3151
  %v3534 = vmul.f32 %v3154, %v3154
  %v3535 = vmul.f32 %v3157, %v3157
  %v3536 = vmul.f32 %v3160, %v3160
  %v3537 = vmul.f32 %v3163, %v3163
  %v3538 = vmul.f32 %v3166, %v3166
  %v3539 = vmul.f32 %v3169, %v3169
  %v3540 = vmul.f32 %v3172, %v3172
  %v3541 = vmul.f32 %v3175, %v3175
  %v3542 = vmul.f32 %v3178, %v3178
  %v3543 = vmul.f32 %v3181, %v3181
  %v3544 = vmul.f32 %v3184, %v3184
  %v3545 = vmul.f32 %v3187, %v3187
  %v3546 = vmul.f32 %v3190, %v3190
  %v3547 = vmul.f32 %v3193, %v3193
  %v3548 = vmul.f32 %v3196, %v3196
  %v3549 = vmul.f32 %v3199, %v3199
  %v3550 = vmul.f32 %v3202, %v3202
  %v3551 = vmul.f32 %v3205, %v3205
  %v3552 = vmul.f32 %v3208, %v3208
  %v3553 = vmul.f32 %v3211, %v3211
  %v3554 = vmul.f32 %v3214, %v3214
  %v3555 = vmul.f32 %v3217, %v3217
  %v3556 = vmul.f32 %v3220, %v3220
  %v3557 = vmul.f32 %v3223, %v3223
  %v3558 = vmul.f32 %v3226, %v3226
  %v3559 = vmul.f32 %v3229, %v3229
  %v3560 = vmul.f32 %v3232, %v3232
  %v3561 = vmul.f32 %v3235, %v3235
  %v3562 = vmul.f32 %v3238, %v3238
  %v3563 = vmul.f32 %v3241, %v3241
  %v3564 = vmul.f32 %v3244, %v3244
  %v3565 = vmul.f32 %v3247, %v3247
  %v3566 = vmul.f32 %v3250, %v3250
  %v3567 = vmul.f32 %v3253, %v3253
  %v3568 = vmul.f32 %v3256, %v3256
  %v3569 = vmul.f32 %v3259, %v3259
  %v3570 = vmul.f32 %v3262, %v3262
  %v3571 = vmul.f32 %v3265, %v3265
  %v3572 = vmul.f32 %v3268, %v3268
  %v3573 = vmul.f32 %v3271, %v3271
  %v3574 = vmul.f32 %v3274, %v3274
  %v3575 = vmul.f32 %v3277, %v3277
  %v3576 = vmul.f32 %v3280, %v3280
  %v3577 = vmul.f32 %v3283, %v3283
  %v3578 = vmul.f32 %v3286, %v3286
  %v3579 = vmul.f32 %v3289, %v3289
  %v3580 = vmul.f32 %v3292, %v3292
  %v3581 = vmul.f32 %v3295, %v3295
  %v3582 = vmul.f32 %v3298, %v3298
  %v3583 = vmul.f32 %v3301, %v3301
  %v3584 = vmul.f32 %v3304, %v3304
  %v3585 = vmul.f32 %v3307, %v3307
  %v3586 = vmul.f32 %v3310, %v3310
  %v3587 = vmul.f32 %v3313, %v3313
  %v3588 = vmul.f32 %v3316, %v3316
  %v3589 = vmul.f32 %v3319, %v3319
  %v3590 = vmul.f32 %v3322, %v3322
  %v3591 = vmul.f32 %v3325, %v3325
  %v3592 = vmul.f32 %v3328, %v3328
  %v3593 = vmul.f32 %v3331, %v3331
  %v3594 = vsel %vm2274, %v3530, 0.0
  %v3595 = vsel %vm2274, %v3531, 0.0
  %v3596 = vadd.f32 %v3594, %v3595
  %v3597 = vsel %vm2274, %v3532, 0.0
  %v3598 = vadd.f32 %v3596, %v3597
  %v3599 = vsel %vm2274, %v3533, 0.0
  %v3600 = vadd.f32 %v3598, %v3599
  %v3601 = vsel %vm2274, %v3534, 0.0
  %v3602 = vadd.f32 %v3600, %v3601
  %v3603 = vsel %vm2274, %v3535, 0.0
  %v3604 = vadd.f32 %v3602, %v3603
  %v3605 = vsel %vm2274, %v3536, 0.0
  %v3606 = vadd.f32 %v3604, %v3605
  %v3607 = vsel %vm2274, %v3537, 0.0
  %v3608 = vadd.f32 %v3606, %v3607
  %v3609 = vsel %vm2274, %v3538, 0.0
  %v3610 = vadd.f32 %v3608, %v3609
  %v3611 = vsel %vm2274, %v3539, 0.0
  %v3612 = vadd.f32 %v3610, %v3611
  %v3613 = vsel %vm2274, %v3540, 0.0
  %v3614 = vadd.f32 %v3612, %v3613
  %v3615 = vsel %vm2274, %v3541, 0.0
  %v3616 = vadd.f32 %v3614, %v3615
  %v3617 = vsel %vm2274, %v3542, 0.0
  %v3618 = vadd.f32 %v3616, %v3617
  %v3619 = vsel %vm2274, %v3543, 0.0
  %v3620 = vadd.f32 %v3618, %v3619
  %v3621 = vsel %vm2274, %v3544, 0.0
  %v3622 = vadd.f32 %v3620, %v3621
  %v3623 = vsel %vm2274, %v3545, 0.0
  %v3624 = vadd.f32 %v3622, %v3623
  %v3625 = vsel %vm2274, %v3546, 0.0
  %v3626 = vadd.f32 %v3624, %v3625
  %v3627 = vsel %vm2274, %v3547, 0.0
  %v3628 = vadd.f32 %v3626, %v3627
  %v3629 = vsel %vm2274, %v3548, 0.0
  %v3630 = vadd.f32 %v3628, %v3629
  %v3631 = vsel %vm2274, %v3549, 0.0
  %v3632 = vadd.f32 %v3630, %v3631
  %v3633 = vsel %vm2274, %v3550, 0.0
  %v3634 = vadd.f32 %v3632, %v3633
  %v3635 = vsel %vm2274, %v3551, 0.0
  %v3636 = vadd.f32 %v3634, %v3635
  %v3637 = vsel %vm2274, %v3552, 0.0
  %v3638 = vadd.f32 %v3636, %v3637
  %v3639 = vsel %vm2274, %v3553, 0.0
  %v3640 = vadd.f32 %v3638, %v3639
  %v3641 = vsel %vm2274, %v3554, 0.0
  %v3642 = vadd.f32 %v3640, %v3641
  %v3643 = vsel %vm2274, %v3555, 0.0
  %v3644 = vadd.f32 %v3642, %v3643
  %v3645 = vsel %vm2274, %v3556, 0.0
  %v3646 = vadd.f32 %v3644, %v3645
  %v3647 = vsel %vm2274, %v3557, 0.0
  %v3648 = vadd.f32 %v3646, %v3647
  %v3649 = vsel %vm2274, %v3558, 0.0
  %v3650 = vadd.f32 %v3648, %v3649
  %v3651 = vsel %vm2274, %v3559, 0.0
  %v3652 = vadd.f32 %v3650, %v3651
  %v3653 = vsel %vm2274, %v3560, 0.0
  %v3654 = vadd.f32 %v3652, %v3653
  %v3655 = vsel %vm2274, %v3561, 0.0
  %v3656 = vadd.f32 %v3654, %v3655
  %v3657 = vsel %vm2274, %v3562, 0.0
  %v3658 = vadd.f32 %v3656, %v3657
  %v3659 = vsel %vm2274, %v3563, 0.0
  %v3660 = vadd.f32 %v3658, %v3659
  %v3661 = vsel %vm2274, %v3564, 0.0
  %v3662 = vadd.f32 %v3660, %v3661
  %v3663 = vsel %vm2274, %v3565, 0.0
  %v3664 = vadd.f32 %v3662, %v3663
  %v3665 = vsel %vm2274, %v3566, 0.0
  %v3666 = vadd.f32 %v3664, %v3665
  %v3667 = vsel %vm2274, %v3567, 0.0
  %v3668 = vadd.f32 %v3666, %v3667
  %v3669 = vsel %vm2274, %v3568, 0.0
  %v3670 = vadd.f32 %v3668, %v3669
  %v3671 = vsel %vm2274, %v3569, 0.0
  %v3672 = vadd.f32 %v3670, %v3671
  %v3673 = vsel %vm2274, %v3570, 0.0
  %v3674 = vadd.f32 %v3672, %v3673
  %v3675 = vsel %vm2274, %v3571, 0.0
  %v3676 = vadd.f32 %v3674, %v3675
  %v3677 = vsel %vm2274, %v3572, 0.0
  %v3678 = vadd.f32 %v3676, %v3677
  %v3679 = vsel %vm2274, %v3573, 0.0
  %v3680 = vadd.f32 %v3678, %v3679
  %v3681 = vsel %vm2274, %v3574, 0.0
  %v3682 = vadd.f32 %v3680, %v3681
  %v3683 = vsel %vm2274, %v3575, 0.0
  %v3684 = vadd.f32 %v3682, %v3683
  %v3685 = vsel %vm2274, %v3576, 0.0
  %v3686 = vadd.f32 %v3684, %v3685
  %v3687 = vsel %vm2274, %v3577, 0.0
  %v3688 = vadd.f32 %v3686, %v3687
  %v3689 = vsel %vm2274, %v3578, 0.0
  %v3690 = vadd.f32 %v3688, %v3689
  %v3691 = vsel %vm2274, %v3579, 0.0
  %v3692 = vadd.f32 %v3690, %v3691
  %v3693 = vsel %vm2274, %v3580, 0.0
  %v3694 = vadd.f32 %v3692, %v3693
  %v3695 = vsel %vm2274, %v3581, 0.0
  %v3696 = vadd.f32 %v3694, %v3695
  %v3697 = vsel %vm2274, %v3582, 0.0
  %v3698 = vadd.f32 %v3696, %v3697
  %v3699 = vsel %vm2274, %v3583, 0.0
  %v3700 = vadd.f32 %v3698, %v3699
  %v3701 = vsel %vm2274, %v3584, 0.0
  %v3702 = vadd.f32 %v3700, %v3701
  %v3703 = vsel %vm2274, %v3585, 0.0
  %v3704 = vadd.f32 %v3702, %v3703
  %v3705 = vsel %vm2274, %v3586, 0.0
  %v3706 = vadd.f32 %v3704, %v3705
  %v3707 = vsel %vm2274, %v3587, 0.0
  %v3708 = vadd.f32 %v3706, %v3707
  %v3709 = vsel %vm2274, %v3588, 0.0
  %v3710 = vadd.f32 %v3708, %v3709
  %v3711 = vsel %vm2274, %v3589, 0.0
  %v3712 = vadd.f32 %v3710, %v3711
  %v3713 = vsel %vm2274, %v3590, 0.0
  %v3714 = vadd.f32 %v3712, %v3713
  %v3715 = vsel %vm2274, %v3591, 0.0
  %v3716 = vadd.f32 %v3714, %v3715
  %v3717 = vsel %vm2274, %v3592, 0.0
  %v3718 = vadd.f32 %v3716, %v3717
  %v3719 = vsel %vm2274, %v3593, 0.0
  %v3720 = vadd.f32 %v3718, %v3719
  %v3721 = vrot.slane %v3720, 4
  %v3722 = vadd.f32 %v3720, %v3721
  %v3723 = vrot.slane %v3722, 2
  %v3724 = vadd.f32 %v3722, %v3723
  %v3725 = vrot.slane %v3724, 1
  %v3726 = vadd.f32 %v3724, %v3725
  %vm3727 = vcmask 1040384
  %v3728 = vsel %vm3727, %v3529, %v3726
  %vm3729 = vcmask 58368
  %3730 = vst.msk [vmem:[%s6] sm:$0x3] %vm3729, %v3728
  // Predicated region
  $region22: #{basic_block_pallas.4} parent=0 // pred_check
    _
  $region23: #{basic_block_pallas.4} parent=0 // pred_check_branch
    %3732 = sbr.rel (0) target = $region25
  $region24: #{basic_block_pallas.4} parent=0 // pred_region
    _
  $region25: #{basic_block_pallas.4} parent=0 // pred_fallthru
    _
  // Predicated region
  $region26: #{basic_block_pallas.4} parent=0 // pred_check
    _
  $region27: #{basic_block_pallas.4} parent=0 // pred_check_branch
    %3734 = sbr.rel (0) target = $region29
  $region28: #{basic_block_pallas.4} parent=0 // pred_region
    _
  $region29: #{basic_block_pallas.4} parent=0 // pred_fallthru
    _
  // Predicated region
  $region30: #{basic_block_pallas.4} parent=0 // pred_check
    _
  $region31: #{basic_block_pallas.4} parent=0 // pred_check_branch
    %3736 = sbr.rel (0) target = $region33
  $region32: #{basic_block_pallas.4} parent=0 // pred_region
    _
  $region33: #{basic_block_pallas.4} parent=0 // pred_fallthru
    _
  // Predicated region
  $region34: #{basic_block_pallas.4} parent=0 // pred_check
    _
  $region35: #{basic_block_pallas.4} parent=0 // pred_check_branch
    %3738 = sbr.rel (0) target = $region37
  $region36: #{basic_block_pallas.4} parent=0 // pred_region
    _
  $region37: #{basic_block_pallas.4} parent=0 // pred_fallthru
    _

// kernel: basic_block_pallas.3
$region0: #{basic_block_pallas.3}
  #allocation0 [shape = 'u32[]', space=smem, size = 0x4, offset = 0x4, fixed_abs, tag = 'smem constant byte address 0x4 - core index']
  #allocation1 [shape = 'u32[72,128]{1,0:T(1,128)}', space=vmem, size = 0x9000, scoped, tag = 'internal scratch']
  %s0 = inlined_call_operand.vmem [shape: f32[512,8], index: 0, kind: input, shape index: {}]
  %s1 = inlined_call_operand.vmem [shape: f32[72,8], index: 1, kind: input, shape index: {}]
  %s2 = inlined_call_operand.vmem [shape: f32[512,72], index: 2, kind: input, shape index: {}]
  %s3 = inlined_call_operand.vmem [shape: f32[512,8], index: 3, kind: output, shape index: {0}]
  %s4 = inlined_call_operand.vmem [shape: f32[1,2,8], index: 4, kind: output, shape index: {1}]
  %5 = xla_tuple %s3, %s4
  %s6 = sld [smem:[#allocation0]]
  $region30: #{basic_block_pallas.3} parent=0
    _
  %s8 = ssub.s32 1, %s6
  %s9 = scalar_select 0, %s8, %s6
  // Predicated region
  $region2: #{basic_block_pallas.3} parent=0 // pred_check
    _
  $region3: #{basic_block_pallas.3} parent=0 // pred_check_branch
    %11 = sbr.rel (0) target = $region5
  $region4: #{basic_block_pallas.3} parent=0 // pred_region
    _
  $region5: #{basic_block_pallas.3} parent=0 // pred_fallthru
    _
  // Predicated region
  $region6: #{basic_block_pallas.3} parent=0 // pred_check
    _
  $region7: #{basic_block_pallas.3} parent=0 // pred_check_branch
    %13 = sbr.rel (0) target = $region9
  $region8: #{basic_block_pallas.3} parent=0 // pred_region
    _
  $region9: #{basic_block_pallas.3} parent=0 // pred_fallthru
    _
  // Predicated region
  $region10: #{basic_block_pallas.3} parent=0 // pred_check
    _
  $region11: #{basic_block_pallas.3} parent=0 // pred_check_branch
    %15 = sbr.rel (0) target = $region13
  $region12: #{basic_block_pallas.3} parent=0 // pred_region
    _
  $region13: #{basic_block_pallas.3} parent=0 // pred_fallthru
    _
  %v16 = vld [vmem:[%s0] sm:$0xff]
  %v17 = vld [vmem:[%s0 + $0x8] sm:$0xff]
  %v18 = vld [vmem:[%s0 + $0x10] sm:$0xff]
  %v19 = vld [vmem:[%s0 + $0x18] sm:$0xff]
  %v20 = vld [vmem:[%s0 + $0x20] sm:$0xff]
  %v21 = vld [vmem:[%s0 + $0x28] sm:$0xff]
  %v22 = vld [vmem:[%s0 + $0x30] sm:$0xff]
  %v23 = vld [vmem:[%s0 + $0x38] sm:$0xff]
  %v24 = vld [vmem:[%s0 + $0x40] sm:$0xff]
  %v25 = vld [vmem:[%s0 + $0x48] sm:$0xff]
  %v26 = vld [vmem:[%s0 + $0x50] sm:$0xff]
  %v27 = vld [vmem:[%s0 + $0x58] sm:$0xff]
  %v28 = vld [vmem:[%s0 + $0x60] sm:$0xff]
  %v29 = vld [vmem:[%s0 + $0x68] sm:$0xff]
  %v30 = vld [vmem:[%s0 + $0x70] sm:$0xff]
  %v31 = vld [vmem:[%s0 + $0x78] sm:$0xff]
  %v32 = vld [vmem:[%s0 + $0x80] sm:$0xff]
  %v33 = vld [vmem:[%s0 + $0x88] sm:$0xff]
  %v34 = vld [vmem:[%s0 + $0x90] sm:$0xff]
  %v35 = vld [vmem:[%s0 + $0x98] sm:$0xff]
  %v36 = vld [vmem:[%s0 + $0xa0] sm:$0xff]
  %v37 = vld [vmem:[%s0 + $0xa8] sm:$0xff]
  %v38 = vld [vmem:[%s0 + $0xb0] sm:$0xff]
  %v39 = vld [vmem:[%s0 + $0xb8] sm:$0xff]
  %v40 = vld [vmem:[%s0 + $0xc0] sm:$0xff]
  %v41 = vld [vmem:[%s0 + $0xc8] sm:$0xff]
  %v42 = vld [vmem:[%s0 + $0xd0] sm:$0xff]
  %v43 = vld [vmem:[%s0 + $0xd8] sm:$0xff]
  %v44 = vld [vmem:[%s0 + $0xe0] sm:$0xff]
  %v45 = vld [vmem:[%s0 + $0xe8] sm:$0xff]
  %v46 = vld [vmem:[%s0 + $0xf0] sm:$0xff]
  %v47 = vld [vmem:[%s0 + $0xf8] sm:$0xff]
  %v48 = vld [vmem:[%s0 + $0x100] sm:$0xff]
  %v49 = vld [vmem:[%s0 + $0x108] sm:$0xff]
  %v50 = vld [vmem:[%s0 + $0x110] sm:$0xff]
  %v51 = vld [vmem:[%s0 + $0x118] sm:$0xff]
  %v52 = vld [vmem:[%s0 + $0x120] sm:$0xff]
  %v53 = vld [vmem:[%s0 + $0x128] sm:$0xff]
  %v54 = vld [vmem:[%s0 + $0x130] sm:$0xff]
  %v55 = vld [vmem:[%s0 + $0x138] sm:$0xff]
  %v56 = vld [vmem:[%s0 + $0x140] sm:$0xff]
  %v57 = vld [vmem:[%s0 + $0x148] sm:$0xff]
  %v58 = vld [vmem:[%s0 + $0x150] sm:$0xff]
  %v59 = vld [vmem:[%s0 + $0x158] sm:$0xff]
  %v60 = vld [vmem:[%s0 + $0x160] sm:$0xff]
  %v61 = vld [vmem:[%s0 + $0x168] sm:$0xff]
  %v62 = vld [vmem:[%s0 + $0x170] sm:$0xff]
  %v63 = vld [vmem:[%s0 + $0x178] sm:$0xff]
  %v64 = vld [vmem:[%s0 + $0x180] sm:$0xff]
  %v65 = vld [vmem:[%s0 + $0x188] sm:$0xff]
  %v66 = vld [vmem:[%s0 + $0x190] sm:$0xff]
  %v67 = vld [vmem:[%s0 + $0x198] sm:$0xff]
  %v68 = vld [vmem:[%s0 + $0x1a0] sm:$0xff]
  %v69 = vld [vmem:[%s0 + $0x1a8] sm:$0xff]
  %v70 = vld [vmem:[%s0 + $0x1b0] sm:$0xff]
  %v71 = vld [vmem:[%s0 + $0x1b8] sm:$0xff]
  %v72 = vld [vmem:[%s0 + $0x1c0] sm:$0xff]
  %v73 = vld [vmem:[%s0 + $0x1c8] sm:$0xff]
  %v74 = vld [vmem:[%s0 + $0x1d0] sm:$0xff]
  %v75 = vld [vmem:[%s0 + $0x1d8] sm:$0xff]
  %v76 = vld [vmem:[%s0 + $0x1e0] sm:$0xff]
  %v77 = vld [vmem:[%s0 + $0x1e8] sm:$0xff]
  %v78 = vld [vmem:[%s0 + $0x1f0] sm:$0xff]
  %v79 = vld [vmem:[%s0 + $0x1f8] sm:$0xff]
  %v80 = vrot.slane %v16, 7
  %v81 = vrot.slane %v17, 7
  %v82 = vrot.slane %v18, 7
  %v83 = vrot.slane %v19, 7
  %v84 = vrot.slane %v20, 7
  %v85 = vrot.slane %v21, 7
  %v86 = vrot.slane %v22, 7
  %v87 = vrot.slane %v23, 7
  %v88 = vrot.slane %v24, 7
  %v89 = vrot.slane %v25, 7
  %v90 = vrot.slane %v26, 7
  %v91 = vrot.slane %v27, 7
  %v92 = vrot.slane %v28, 7
  %v93 = vrot.slane %v29, 7
  %v94 = vrot.slane %v30, 7
  %v95 = vrot.slane %v31, 7
  %v96 = vrot.slane %v32, 7
  %v97 = vrot.slane %v33, 7
  %v98 = vrot.slane %v34, 7
  %v99 = vrot.slane %v35, 7
  %v100 = vrot.slane %v36, 7
  %v101 = vrot.slane %v37, 7
  %v102 = vrot.slane %v38, 7
  %v103 = vrot.slane %v39, 7
  %v104 = vrot.slane %v40, 7
  %v105 = vrot.slane %v41, 7
  %v106 = vrot.slane %v42, 7
  %v107 = vrot.slane %v43, 7
  %v108 = vrot.slane %v44, 7
  %v109 = vrot.slane %v45, 7
  %v110 = vrot.slane %v46, 7
  %v111 = vrot.slane %v47, 7
  %v112 = vrot.slane %v48, 7
  %v113 = vrot.slane %v49, 7
  %v114 = vrot.slane %v50, 7
  %v115 = vrot.slane %v51, 7
  %v116 = vrot.slane %v52, 7
  %v117 = vrot.slane %v53, 7
  %v118 = vrot.slane %v54, 7
  %v119 = vrot.slane %v55, 7
  %v120 = vrot.slane %v56, 7
  %v121 = vrot.slane %v57, 7
  %v122 = vrot.slane %v58, 7
  %v123 = vrot.slane %v59, 7
  %v124 = vrot.slane %v60, 7
  %v125 = vrot.slane %v61, 7
  %v126 = vrot.slane %v62, 7
  %v127 = vrot.slane %v63, 7
  %v128 = vrot.slane %v64, 7
  %v129 = vrot.slane %v65, 7
  %v130 = vrot.slane %v66, 7
  %v131 = vrot.slane %v67, 7
  %v132 = vrot.slane %v68, 7
  %v133 = vrot.slane %v69, 7
  %v134 = vrot.slane %v70, 7
  %v135 = vrot.slane %v71, 7
  %v136 = vrot.slane %v72, 7
  %v137 = vrot.slane %v73, 7
  %v138 = vrot.slane %v74, 7
  %v139 = vrot.slane %v75, 7
  %v140 = vrot.slane %v76, 7
  %v141 = vrot.slane %v77, 7
  %v142 = vrot.slane %v78, 7
  %v143 = vrot.slane %v79, 7
  %v144 = vlaneseq
  %v145 = vshrl.u32 %v144, 7
  %vm146 = vcmp.lt.s32.totalorder %v145, 1
  %v147 = vsel %vm146, %v142, %v143
  %v148 = vsel %vm146, %v141, %v142
  %v149 = vsel %vm146, %v140, %v141
  %v150 = vsel %vm146, %v139, %v140
  %v151 = vsel %vm146, %v138, %v139
  %v152 = vsel %vm146, %v137, %v138
  %v153 = vsel %vm146, %v136, %v137
  %v154 = vsel %vm146, %v135, %v136
  %v155 = vsel %vm146, %v134, %v135
  %v156 = vsel %vm146, %v133, %v134
  %v157 = vsel %vm146, %v132, %v133
  %v158 = vsel %vm146, %v131, %v132
  %v159 = vsel %vm146, %v130, %v131
  %v160 = vsel %vm146, %v129, %v130
  %v161 = vsel %vm146, %v128, %v129
  %v162 = vsel %vm146, %v127, %v128
  %v163 = vsel %vm146, %v126, %v127
  %v164 = vsel %vm146, %v125, %v126
  %v165 = vsel %vm146, %v124, %v125
  %v166 = vsel %vm146, %v123, %v124
  %v167 = vsel %vm146, %v122, %v123
  %v168 = vsel %vm146, %v121, %v122
  %v169 = vsel %vm146, %v120, %v121
  %v170 = vsel %vm146, %v119, %v120
  %v171 = vsel %vm146, %v118, %v119
  %v172 = vsel %vm146, %v117, %v118
  %v173 = vsel %vm146, %v116, %v117
  %v174 = vsel %vm146, %v115, %v116
  %v175 = vsel %vm146, %v114, %v115
  %v176 = vsel %vm146, %v113, %v114
  %v177 = vsel %vm146, %v112, %v113
  %v178 = vsel %vm146, %v111, %v112
  %v179 = vsel %vm146, %v110, %v111
  %v180 = vsel %vm146, %v109, %v110
  %v181 = vsel %vm146, %v108, %v109
  %v182 = vsel %vm146, %v107, %v108
  %v183 = vsel %vm146, %v106, %v107
  %v184 = vsel %vm146, %v105, %v106
  %v185 = vsel %vm146, %v104, %v105
  %v186 = vsel %vm146, %v103, %v104
  %v187 = vsel %vm146, %v102, %v103
  %v188 = vsel %vm146, %v101, %v102
  %v189 = vsel %vm146, %v100, %v101
  %v190 = vsel %vm146, %v99, %v100
  %v191 = vsel %vm146, %v98, %v99
  %v192 = vsel %vm146, %v97, %v98
  %v193 = vsel %vm146, %v96, %v97
  %v194 = vsel %vm146, %v95, %v96
  %v195 = vsel %vm146, %v94, %v95
  %v196 = vsel %vm146, %v93, %v94
  %v197 = vsel %vm146, %v92, %v93
  %v198 = vsel %vm146, %v91, %v92
  %v199 = vsel %vm146, %v90, %v91
  %v200 = vsel %vm146, %v89, %v90
  %v201 = vsel %vm146, %v88, %v89
  %v202 = vsel %vm146, %v87, %v88
  %v203 = vsel %vm146, %v86, %v87
  %v204 = vsel %vm146, %v85, %v86
  %v205 = vsel %vm146, %v84, %v85
  %v206 = vsel %vm146, %v83, %v84
  %v207 = vsel %vm146, %v82, %v83
  %v208 = vsel %vm146, %v81, %v82
  %v209 = vsel %vm146, %v80, %v81
  %v210 = vsel %vm146, %v143, %v80
  %v211 = vrot.slane %v16, 1
  %v212 = vrot.slane %v17, 1
  %v213 = vrot.slane %v18, 1
  %v214 = vrot.slane %v19, 1
  %v215 = vrot.slane %v20, 1
  %v216 = vrot.slane %v21, 1
  %v217 = vrot.slane %v22, 1
  %v218 = vrot.slane %v23, 1
  %v219 = vrot.slane %v24, 1
  %v220 = vrot.slane %v25, 1
  %v221 = vrot.slane %v26, 1
  %v222 = vrot.slane %v27, 1
  %v223 = vrot.slane %v28, 1
  %v224 = vrot.slane %v29, 1
  %v225 = vrot.slane %v30, 1
  %v226 = vrot.slane %v31, 1
  %v227 = vrot.slane %v32, 1
  %v228 = vrot.slane %v33, 1
  %v229 = vrot.slane %v34, 1
  %v230 = vrot.slane %v35, 1
  %v231 = vrot.slane %v36, 1
  %v232 = vrot.slane %v37, 1
  %v233 = vrot.slane %v38, 1
  %v234 = vrot.slane %v39, 1
  %v235 = vrot.slane %v40, 1
  %v236 = vrot.slane %v41, 1
  %v237 = vrot.slane %v42, 1
  %v238 = vrot.slane %v43, 1
  %v239 = vrot.slane %v44, 1
  %v240 = vrot.slane %v45, 1
  %v241 = vrot.slane %v46, 1
  %v242 = vrot.slane %v47, 1
  %v243 = vrot.slane %v48, 1
  %v244 = vrot.slane %v49, 1
  %v245 = vrot.slane %v50, 1
  %v246 = vrot.slane %v51, 1
  %v247 = vrot.slane %v52, 1
  %v248 = vrot.slane %v53, 1
  %v249 = vrot.slane %v54, 1
  %v250 = vrot.slane %v55, 1
  %v251 = vrot.slane %v56, 1
  %v252 = vrot.slane %v57, 1
  %v253 = vrot.slane %v58, 1
  %v254 = vrot.slane %v59, 1
  %v255 = vrot.slane %v60, 1
  %v256 = vrot.slane %v61, 1
  %v257 = vrot.slane %v62, 1
  %v258 = vrot.slane %v63, 1
  %v259 = vrot.slane %v64, 1
  %v260 = vrot.slane %v65, 1
  %v261 = vrot.slane %v66, 1
  %v262 = vrot.slane %v67, 1
  %v263 = vrot.slane %v68, 1
  %v264 = vrot.slane %v69, 1
  %v265 = vrot.slane %v70, 1
  %v266 = vrot.slane %v71, 1
  %v267 = vrot.slane %v72, 1
  %v268 = vrot.slane %v73, 1
  %v269 = vrot.slane %v74, 1
  %v270 = vrot.slane %v75, 1
  %v271 = vrot.slane %v76, 1
  %v272 = vrot.slane %v77, 1
  %v273 = vrot.slane %v78, 1
  %v274 = vrot.slane %v79, 1
  %vm275 = vcmp.lt.s32.totalorder %v145, 7
  %v276 = vsel %vm275, %v273, %v274
  %v277 = vsel %vm275, %v272, %v273
  %v278 = vsel %vm275, %v271, %v272
  %v279 = vsel %vm275, %v270, %v271
  %v280 = vsel %vm275, %v269, %v270
  %v281 = vsel %vm275, %v268, %v269
  %v282 = vsel %vm275, %v267, %v268
  %v283 = vsel %vm275, %v266, %v267
  %v284 = vsel %vm275, %v265, %v266
  %v285 = vsel %vm275, %v264, %v265
  %v286 = vsel %vm275, %v263, %v264
  %v287 = vsel %vm275, %v262, %v263
  %v288 = vsel %vm275, %v261, %v262
  %v289 = vsel %vm275, %v260, %v261
  %v290 = vsel %vm275, %v259, %v260
  %v291 = vsel %vm275, %v258, %v259
  %v292 = vsel %vm275, %v257, %v258
  %v293 = vsel %vm275, %v256, %v257
  %v294 = vsel %vm275, %v255, %v256
  %v295 = vsel %vm275, %v254, %v255
  %v296 = vsel %vm275, %v253, %v254
  %v297 = vsel %vm275, %v252, %v253
  %v298 = vsel %vm275, %v251, %v252
  %v299 = vsel %vm275, %v250, %v251
  %v300 = vsel %vm275, %v249, %v250
  %v301 = vsel %vm275, %v248, %v249
  %v302 = vsel %vm275, %v247, %v248
  %v303 = vsel %vm275, %v246, %v247
  %v304 = vsel %vm275, %v245, %v246
  %v305 = vsel %vm275, %v244, %v245
  %v306 = vsel %vm275, %v243, %v244
  %v307 = vsel %vm275, %v242, %v243
  %v308 = vsel %vm275, %v241, %v242
  %v309 = vsel %vm275, %v240, %v241
  %v310 = vsel %vm275, %v239, %v240
  %v311 = vsel %vm275, %v238, %v239
  %v312 = vsel %vm275, %v237, %v238
  %v313 = vsel %vm275, %v236, %v237
  %v314 = vsel %vm275, %v235, %v236
  %v315 = vsel %vm275, %v234, %v235
  %v316 = vsel %vm275, %v233, %v234
  %v317 = vsel %vm275, %v232, %v233
  %v318 = vsel %vm275, %v231, %v232
  %v319 = vsel %vm275, %v230, %v231
  %v320 = vsel %vm275, %v229, %v230
  %v321 = vsel %vm275, %v228, %v229
  %v322 = vsel %vm275, %v227, %v228
  %v323 = vsel %vm275, %v226, %v227
  %v324 = vsel %vm275, %v225, %v226
  %v325 = vsel %vm275, %v224, %v225
  %v326 = vsel %vm275, %v223, %v224
  %v327 = vsel %vm275, %v222, %v223
  %v328 = vsel %vm275, %v221, %v222
  %v329 = vsel %vm275, %v220, %v221
  %v330 = vsel %vm275, %v219, %v220
  %v331 = vsel %vm275, %v218, %v219
  %v332 = vsel %vm275, %v217, %v218
  %v333 = vsel %vm275, %v216, %v217
  %v334 = vsel %vm275, %v215, %v216
  %v335 = vsel %vm275, %v214, %v215
  %v336 = vsel %vm275, %v213, %v214
  %v337 = vsel %vm275, %v212, %v213
  %v338 = vsel %vm275, %v211, %v212
  %v339 = vsel %vm275, %v274, %v211
  %404 = vrot.lane.b32.xlu0 %v78, 8
  %v405 = vpop.permute.xlu0 %404
  %406 = vrot.lane.b32.xlu0 %v79, 8
  %v407 = vpop.permute.xlu0 %406
  %408 = vrot.lane.b32.xlu0 %v16, 8
  %v409 = vpop.permute.xlu0 %408
  %410 = vrot.lane.b32.xlu0 %v17, 8
  %v411 = vpop.permute.xlu0 %410
  %412 = vrot.lane.b32.xlu0 %v18, 8
  %v413 = vpop.permute.xlu0 %412
  %414 = vrot.lane.b32.xlu0 %v19, 8
  %v415 = vpop.permute.xlu0 %414
  %416 = vrot.lane.b32.xlu0 %v20, 8
  %v417 = vpop.permute.xlu0 %416
  %418 = vrot.lane.b32.xlu0 %v21, 8
  %v419 = vpop.permute.xlu0 %418
  %420 = vrot.lane.b32.xlu0 %v22, 8
  %v421 = vpop.permute.xlu0 %420
  %422 = vrot.lane.b32.xlu0 %v23, 8
  %v423 = vpop.permute.xlu0 %422
  %424 = vrot.lane.b32.xlu0 %v24, 8
  %v425 = vpop.permute.xlu0 %424
  %426 = vrot.lane.b32.xlu0 %v25, 8
  %v427 = vpop.permute.xlu0 %426
  %428 = vrot.lane.b32.xlu0 %v26, 8
  %v429 = vpop.permute.xlu0 %428
  %430 = vrot.lane.b32.xlu0 %v27, 8
  %v431 = vpop.permute.xlu0 %430
  %432 = vrot.lane.b32.xlu0 %v28, 8
  %v433 = vpop.permute.xlu0 %432
  %434 = vrot.lane.b32.xlu0 %v29, 8
  %v435 = vpop.permute.xlu0 %434
  %436 = vrot.lane.b32.xlu0 %v30, 8
  %v437 = vpop.permute.xlu0 %436
  %438 = vrot.lane.b32.xlu0 %v31, 8
  %v439 = vpop.permute.xlu0 %438
  %440 = vrot.lane.b32.xlu0 %v32, 8
  %v441 = vpop.permute.xlu0 %440
  %442 = vrot.lane.b32.xlu0 %v33, 8
  %v443 = vpop.permute.xlu0 %442
  %444 = vrot.lane.b32.xlu0 %v34, 8
  %v445 = vpop.permute.xlu0 %444
  %446 = vrot.lane.b32.xlu0 %v35, 8
  %v447 = vpop.permute.xlu0 %446
  %448 = vrot.lane.b32.xlu0 %v36, 8
  %v449 = vpop.permute.xlu0 %448
  %450 = vrot.lane.b32.xlu0 %v37, 8
  %v451 = vpop.permute.xlu0 %450
  %452 = vrot.lane.b32.xlu0 %v38, 8
  %v453 = vpop.permute.xlu0 %452
  %454 = vrot.lane.b32.xlu0 %v39, 8
  %v455 = vpop.permute.xlu0 %454
  %456 = vrot.lane.b32.xlu0 %v40, 8
  %v457 = vpop.permute.xlu0 %456
  %458 = vrot.lane.b32.xlu0 %v41, 8
  %v459 = vpop.permute.xlu0 %458
  %460 = vrot.lane.b32.xlu0 %v42, 8
  %v461 = vpop.permute.xlu0 %460
  %462 = vrot.lane.b32.xlu0 %v43, 8
  %v463 = vpop.permute.xlu0 %462
  %464 = vrot.lane.b32.xlu0 %v44, 8
  %v465 = vpop.permute.xlu0 %464
  %466 = vrot.lane.b32.xlu0 %v45, 8
  %v467 = vpop.permute.xlu0 %466
  %468 = vrot.lane.b32.xlu0 %v46, 8
  %v469 = vpop.permute.xlu0 %468
  %470 = vrot.lane.b32.xlu0 %v47, 8
  %v471 = vpop.permute.xlu0 %470
  %472 = vrot.lane.b32.xlu0 %v48, 8
  %v473 = vpop.permute.xlu0 %472
  %474 = vrot.lane.b32.xlu0 %v49, 8
  %v475 = vpop.permute.xlu0 %474
  %476 = vrot.lane.b32.xlu0 %v50, 8
  %v477 = vpop.permute.xlu0 %476
  %478 = vrot.lane.b32.xlu0 %v51, 8
  %v479 = vpop.permute.xlu0 %478
  %480 = vrot.lane.b32.xlu0 %v52, 8
  %v481 = vpop.permute.xlu0 %480
  %482 = vrot.lane.b32.xlu0 %v53, 8
  %v483 = vpop.permute.xlu0 %482
  %484 = vrot.lane.b32.xlu0 %v54, 8
  %v485 = vpop.permute.xlu0 %484
  %486 = vrot.lane.b32.xlu0 %v55, 8
  %v487 = vpop.permute.xlu0 %486
  %488 = vrot.lane.b32.xlu0 %v56, 8
  %v489 = vpop.permute.xlu0 %488
  %490 = vrot.lane.b32.xlu0 %v57, 8
  %v491 = vpop.permute.xlu0 %490
  %492 = vrot.lane.b32.xlu0 %v58, 8
  %v493 = vpop.permute.xlu0 %492
  %494 = vrot.lane.b32.xlu0 %v59, 8
  %v495 = vpop.permute.xlu0 %494
  %496 = vrot.lane.b32.xlu0 %v60, 8
  %v497 = vpop.permute.xlu0 %496
  %498 = vrot.lane.b32.xlu0 %v61, 8
  %v499 = vpop.permute.xlu0 %498
  %500 = vrot.lane.b32.xlu0 %v62, 8
  %v501 = vpop.permute.xlu0 %500
  %502 = vrot.lane.b32.xlu0 %v63, 8
  %v503 = vpop.permute.xlu0 %502
  %504 = vrot.lane.b32.xlu0 %v64, 8
  %v505 = vpop.permute.xlu0 %504
  %506 = vrot.lane.b32.xlu0 %v65, 8
  %v507 = vpop.permute.xlu0 %506
  %508 = vrot.lane.b32.xlu0 %v66, 8
  %v509 = vpop.permute.xlu0 %508
  %510 = vrot.lane.b32.xlu0 %v67, 8
  %v511 = vpop.permute.xlu0 %510
  %512 = vrot.lane.b32.xlu0 %v68, 8
  %v513 = vpop.permute.xlu0 %512
  %514 = vrot.lane.b32.xlu0 %v69, 8
  %v515 = vpop.permute.xlu0 %514
  %516 = vrot.lane.b32.xlu0 %v70, 8
  %v517 = vpop.permute.xlu0 %516
  %518 = vrot.lane.b32.xlu0 %v71, 8
  %v519 = vpop.permute.xlu0 %518
  %520 = vrot.lane.b32.xlu0 %v72, 8
  %v521 = vpop.permute.xlu0 %520
  %522 = vrot.lane.b32.xlu0 %v73, 8
  %v523 = vpop.permute.xlu0 %522
  %524 = vrot.lane.b32.xlu0 %v74, 8
  %v525 = vpop.permute.xlu0 %524
  %526 = vrot.lane.b32.xlu0 %v75, 8
  %v527 = vpop.permute.xlu0 %526
  %528 = vrot.lane.b32.xlu0 %v76, 8
  %v529 = vpop.permute.xlu0 %528
  %530 = vrot.lane.b32.xlu0 %v77, 8
  %v531 = vpop.permute.xlu0 %530
  %660 = vrot.lane.b32.xlu0 %v276, 16
  %v661 = vpop.permute.xlu0 %660
  %662 = vrot.lane.b32.xlu0 %v339, 16
  %v663 = vpop.permute.xlu0 %662
  %664 = vrot.lane.b32.xlu0 %v338, 16
  %v665 = vpop.permute.xlu0 %664
  %666 = vrot.lane.b32.xlu0 %v337, 16
  %v667 = vpop.permute.xlu0 %666
  %668 = vrot.lane.b32.xlu0 %v336, 16
  %v669 = vpop.permute.xlu0 %668
  %670 = vrot.lane.b32.xlu0 %v335, 16
  %v671 = vpop.permute.xlu0 %670
  %672 = vrot.lane.b32.xlu0 %v334, 16
  %v673 = vpop.permute.xlu0 %672
  %674 = vrot.lane.b32.xlu0 %v333, 16
  %v675 = vpop.permute.xlu0 %674
  %676 = vrot.lane.b32.xlu0 %v332, 16
  %v677 = vpop.permute.xlu0 %676
  %678 = vrot.lane.b32.xlu0 %v331, 16
  %v679 = vpop.permute.xlu0 %678
  %680 = vrot.lane.b32.xlu0 %v330, 16
  %v681 = vpop.permute.xlu0 %680
  %682 = vrot.lane.b32.xlu0 %v329, 16
  %v683 = vpop.permute.xlu0 %682
  %684 = vrot.lane.b32.xlu0 %v328, 16
  %v685 = vpop.permute.xlu0 %684
  %686 = vrot.lane.b32.xlu0 %v327, 16
  %v687 = vpop.permute.xlu0 %686
  %688 = vrot.lane.b32.xlu0 %v326, 16
  %v689 = vpop.permute.xlu0 %688
  %690 = vrot.lane.b32.xlu0 %v325, 16
  %v691 = vpop.permute.xlu0 %690
  %692 = vrot.lane.b32.xlu0 %v324, 16
  %v693 = vpop.permute.xlu0 %692
  %694 = vrot.lane.b32.xlu0 %v323, 16
  %v695 = vpop.permute.xlu0 %694
  %696 = vrot.lane.b32.xlu0 %v322, 16
  %v697 = vpop.permute.xlu0 %696
  %698 = vrot.lane.b32.xlu0 %v321, 16
  %v699 = vpop.permute.xlu0 %698
  %700 = vrot.lane.b32.xlu0 %v320, 16
  %v701 = vpop.permute.xlu0 %700
  %702 = vrot.lane.b32.xlu0 %v319, 16
  %v703 = vpop.permute.xlu0 %702
  %704 = vrot.lane.b32.xlu0 %v318, 16
  %v705 = vpop.permute.xlu0 %704
  %706 = vrot.lane.b32.xlu0 %v317, 16
  %v707 = vpop.permute.xlu0 %706
  %708 = vrot.lane.b32.xlu0 %v316, 16
  %v709 = vpop.permute.xlu0 %708
  %710 = vrot.lane.b32.xlu0 %v315, 16
  %v711 = vpop.permute.xlu0 %710
  %712 = vrot.lane.b32.xlu0 %v314, 16
  %v713 = vpop.permute.xlu0 %712
  %714 = vrot.lane.b32.xlu0 %v313, 16
  %v715 = vpop.permute.xlu0 %714
  %716 = vrot.lane.b32.xlu0 %v312, 16
  %v717 = vpop.permute.xlu0 %716
  %718 = vrot.lane.b32.xlu0 %v311, 16
  %v719 = vpop.permute.xlu0 %718
  %720 = vrot.lane.b32.xlu0 %v310, 16
  %v721 = vpop.permute.xlu0 %720
  %722 = vrot.lane.b32.xlu0 %v309, 16
  %v723 = vpop.permute.xlu0 %722
  %724 = vrot.lane.b32.xlu0 %v308, 16
  %v725 = vpop.permute.xlu0 %724
  %726 = vrot.lane.b32.xlu0 %v307, 16
  %v727 = vpop.permute.xlu0 %726
  %728 = vrot.lane.b32.xlu0 %v306, 16
  %v729 = vpop.permute.xlu0 %728
  %730 = vrot.lane.b32.xlu0 %v305, 16
  %v731 = vpop.permute.xlu0 %730
  %732 = vrot.lane.b32.xlu0 %v304, 16
  %v733 = vpop.permute.xlu0 %732
  %734 = vrot.lane.b32.xlu0 %v303, 16
  %v735 = vpop.permute.xlu0 %734
  %736 = vrot.lane.b32.xlu0 %v302, 16
  %v737 = vpop.permute.xlu0 %736
  %738 = vrot.lane.b32.xlu0 %v301, 16
  %v739 = vpop.permute.xlu0 %738
  %740 = vrot.lane.b32.xlu0 %v300, 16
  %v741 = vpop.permute.xlu0 %740
  %742 = vrot.lane.b32.xlu0 %v299, 16
  %v743 = vpop.permute.xlu0 %742
  %744 = vrot.lane.b32.xlu0 %v298, 16
  %v745 = vpop.permute.xlu0 %744
  %746 = vrot.lane.b32.xlu0 %v297, 16
  %v747 = vpop.permute.xlu0 %746
  %748 = vrot.lane.b32.xlu0 %v296, 16
  %v749 = vpop.permute.xlu0 %748
  %750 = vrot.lane.b32.xlu0 %v295, 16
  %v751 = vpop.permute.xlu0 %750
  %752 = vrot.lane.b32.xlu0 %v294, 16
  %v753 = vpop.permute.xlu0 %752
  %754 = vrot.lane.b32.xlu0 %v293, 16
  %v755 = vpop.permute.xlu0 %754
  %756 = vrot.lane.b32.xlu0 %v292, 16
  %v757 = vpop.permute.xlu0 %756
  %758 = vrot.lane.b32.xlu0 %v291, 16
  %v759 = vpop.permute.xlu0 %758
  %760 = vrot.lane.b32.xlu0 %v290, 16
  %v761 = vpop.permute.xlu0 %760
  %762 = vrot.lane.b32.xlu0 %v289, 16
  %v763 = vpop.permute.xlu0 %762
  %764 = vrot.lane.b32.xlu0 %v288, 16
  %v765 = vpop.permute.xlu0 %764
  %766 = vrot.lane.b32.xlu0 %v287, 16
  %v767 = vpop.permute.xlu0 %766
  %768 = vrot.lane.b32.xlu0 %v286, 16
  %v769 = vpop.permute.xlu0 %768
  %770 = vrot.lane.b32.xlu0 %v285, 16
  %v771 = vpop.permute.xlu0 %770
  %772 = vrot.lane.b32.xlu0 %v284, 16
  %v773 = vpop.permute.xlu0 %772
  %774 = vrot.lane.b32.xlu0 %v283, 16
  %v775 = vpop.permute.xlu0 %774
  %776 = vrot.lane.b32.xlu0 %v282, 16
  %v777 = vpop.permute.xlu0 %776
  %778 = vrot.lane.b32.xlu0 %v281, 16
  %v779 = vpop.permute.xlu0 %778
  %780 = vrot.lane.b32.xlu0 %v280, 16
  %v781 = vpop.permute.xlu0 %780
  %782 = vrot.lane.b32.xlu0 %v279, 16
  %v783 = vpop.permute.xlu0 %782
  %784 = vrot.lane.b32.xlu0 %v278, 16
  %v785 = vpop.permute.xlu0 %784
  %786 = vrot.lane.b32.xlu0 %v277, 16
  %v787 = vpop.permute.xlu0 %786
  %916 = vrot.lane.b32.xlu0 %v210, 24
  %v917 = vpop.permute.xlu0 %916
  %918 = vrot.lane.b32.xlu0 %v209, 24
  %v919 = vpop.permute.xlu0 %918
  %920 = vrot.lane.b32.xlu0 %v208, 24
  %v921 = vpop.permute.xlu0 %920
  %922 = vrot.lane.b32.xlu0 %v207, 24
  %v923 = vpop.permute.xlu0 %922
  %924 = vrot.lane.b32.xlu0 %v206, 24
  %v925 = vpop.permute.xlu0 %924
  %926 = vrot.lane.b32.xlu0 %v205, 24
  %v927 = vpop.permute.xlu0 %926
  %928 = vrot.lane.b32.xlu0 %v204, 24
  %v929 = vpop.permute.xlu0 %928
  %930 = vrot.lane.b32.xlu0 %v203, 24
  %v931 = vpop.permute.xlu0 %930
  %932 = vrot.lane.b32.xlu0 %v202, 24
  %v933 = vpop.permute.xlu0 %932
  %934 = vrot.lane.b32.xlu0 %v201, 24
  %v935 = vpop.permute.xlu0 %934
  %936 = vrot.lane.b32.xlu0 %v200, 24
  %v937 = vpop.permute.xlu0 %936
  %938 = vrot.lane.b32.xlu0 %v199, 24
  %v939 = vpop.permute.xlu0 %938
  %940 = vrot.lane.b32.xlu0 %v198, 24
  %v941 = vpop.permute.xlu0 %940
  %942 = vrot.lane.b32.xlu0 %v197, 24
  %v943 = vpop.permute.xlu0 %942
  %944 = vrot.lane.b32.xlu0 %v196, 24
  %v945 = vpop.permute.xlu0 %944
  %946 = vrot.lane.b32.xlu0 %v195, 24
  %v947 = vpop.permute.xlu0 %946
  %948 = vrot.lane.b32.xlu0 %v194, 24
  %v949 = vpop.permute.xlu0 %948
  %950 = vrot.lane.b32.xlu0 %v193, 24
  %v951 = vpop.permute.xlu0 %950
  %952 = vrot.lane.b32.xlu0 %v192, 24
  %v953 = vpop.permute.xlu0 %952
  %954 = vrot.lane.b32.xlu0 %v191, 24
  %v955 = vpop.permute.xlu0 %954
  %956 = vrot.lane.b32.xlu0 %v190, 24
  %v957 = vpop.permute.xlu0 %956
  %958 = vrot.lane.b32.xlu0 %v189, 24
  %v959 = vpop.permute.xlu0 %958
  %960 = vrot.lane.b32.xlu0 %v188, 24
  %v961 = vpop.permute.xlu0 %960
  %962 = vrot.lane.b32.xlu0 %v187, 24
  %v963 = vpop.permute.xlu0 %962
  %964 = vrot.lane.b32.xlu0 %v186, 24
  %v965 = vpop.permute.xlu0 %964
  %966 = vrot.lane.b32.xlu0 %v185, 24
  %v967 = vpop.permute.xlu0 %966
  %968 = vrot.lane.b32.xlu0 %v184, 24
  %v969 = vpop.permute.xlu0 %968
  %970 = vrot.lane.b32.xlu0 %v183, 24
  %v971 = vpop.permute.xlu0 %970
  %972 = vrot.lane.b32.xlu0 %v182, 24
  %v973 = vpop.permute.xlu0 %972
  %974 = vrot.lane.b32.xlu0 %v181, 24
  %v975 = vpop.permute.xlu0 %974
  %976 = vrot.lane.b32.xlu0 %v180, 24
  %v977 = vpop.permute.xlu0 %976
  %978 = vrot.lane.b32.xlu0 %v179, 24
  %v979 = vpop.permute.xlu0 %978
  %980 = vrot.lane.b32.xlu0 %v178, 24
  %v981 = vpop.permute.xlu0 %980
  %982 = vrot.lane.b32.xlu0 %v177, 24
  %v983 = vpop.permute.xlu0 %982
  %984 = vrot.lane.b32.xlu0 %v176, 24
  %v985 = vpop.permute.xlu0 %984
  %986 = vrot.lane.b32.xlu0 %v175, 24
  %v987 = vpop.permute.xlu0 %986
  %988 = vrot.lane.b32.xlu0 %v174, 24
  %v989 = vpop.permute.xlu0 %988
  %990 = vrot.lane.b32.xlu0 %v173, 24
  %v991 = vpop.permute.xlu0 %990
  %992 = vrot.lane.b32.xlu0 %v172, 24
  %v993 = vpop.permute.xlu0 %992
  %994 = vrot.lane.b32.xlu0 %v171, 24
  %v995 = vpop.permute.xlu0 %994
  %996 = vrot.lane.b32.xlu0 %v170, 24
  %v997 = vpop.permute.xlu0 %996
  %998 = vrot.lane.b32.xlu0 %v169, 24
  %v999 = vpop.permute.xlu0 %998
  %1000 = vrot.lane.b32.xlu0 %v168, 24
  %v1001 = vpop.permute.xlu0 %1000
  %1002 = vrot.lane.b32.xlu0 %v167, 24
  %v1003 = vpop.permute.xlu0 %1002
  %1004 = vrot.lane.b32.xlu0 %v166, 24
  %v1005 = vpop.permute.xlu0 %1004
  %1006 = vrot.lane.b32.xlu0 %v165, 24
  %v1007 = vpop.permute.xlu0 %1006
  %1008 = vrot.lane.b32.xlu0 %v164, 24
  %v1009 = vpop.permute.xlu0 %1008
  %1010 = vrot.lane.b32.xlu0 %v163, 24
  %v1011 = vpop.permute.xlu0 %1010
  %1012 = vrot.lane.b32.xlu0 %v162, 24
  %v1013 = vpop.permute.xlu0 %1012
  %1014 = vrot.lane.b32.xlu0 %v161, 24
  %v1015 = vpop.permute.xlu0 %1014
  %1016 = vrot.lane.b32.xlu0 %v160, 24
  %v1017 = vpop.permute.xlu0 %1016
  %1018 = vrot.lane.b32.xlu0 %v159, 24
  %v1019 = vpop.permute.xlu0 %1018
  %1020 = vrot.lane.b32.xlu0 %v158, 24
  %v1021 = vpop.permute.xlu0 %1020
  %1022 = vrot.lane.b32.xlu0 %v157, 24
  %v1023 = vpop.permute.xlu0 %1022
  %1024 = vrot.lane.b32.xlu0 %v156, 24
  %v1025 = vpop.permute.xlu0 %1024
  %1026 = vrot.lane.b32.xlu0 %v155, 24
  %v1027 = vpop.permute.xlu0 %1026
  %1028 = vrot.lane.b32.xlu0 %v154, 24
  %v1029 = vpop.permute.xlu0 %1028
  %1030 = vrot.lane.b32.xlu0 %v153, 24
  %v1031 = vpop.permute.xlu0 %1030
  %1032 = vrot.lane.b32.xlu0 %v152, 24
  %v1033 = vpop.permute.xlu0 %1032
  %1034 = vrot.lane.b32.xlu0 %v151, 24
  %v1035 = vpop.permute.xlu0 %1034
  %1036 = vrot.lane.b32.xlu0 %v150, 24
  %v1037 = vpop.permute.xlu0 %1036
  %1038 = vrot.lane.b32.xlu0 %v149, 24
  %v1039 = vpop.permute.xlu0 %1038
  %1040 = vrot.lane.b32.xlu0 %v148, 24
  %v1041 = vpop.permute.xlu0 %1040
  %1042 = vrot.lane.b32.xlu0 %v147, 24
  %v1043 = vpop.permute.xlu0 %1042
  %1108 = vrot.lane.b32.xlu0 %v16, 32
  %v1109 = vpop.permute.xlu0 %1108
  %1110 = vrot.lane.b32.xlu0 %v17, 32
  %v1111 = vpop.permute.xlu0 %1110
  %1112 = vrot.lane.b32.xlu0 %v18, 32
  %v1113 = vpop.permute.xlu0 %1112
  %1114 = vrot.lane.b32.xlu0 %v19, 32
  %v1115 = vpop.permute.xlu0 %1114
  %1116 = vrot.lane.b32.xlu0 %v20, 32
  %v1117 = vpop.permute.xlu0 %1116
  %1118 = vrot.lane.b32.xlu0 %v21, 32
  %v1119 = vpop.permute.xlu0 %1118
  %1120 = vrot.lane.b32.xlu0 %v22, 32
  %v1121 = vpop.permute.xlu0 %1120
  %1122 = vrot.lane.b32.xlu0 %v23, 32
  %v1123 = vpop.permute.xlu0 %1122
  %1124 = vrot.lane.b32.xlu0 %v24, 32
  %v1125 = vpop.permute.xlu0 %1124
  %1126 = vrot.lane.b32.xlu0 %v25, 32
  %v1127 = vpop.permute.xlu0 %1126
  %1128 = vrot.lane.b32.xlu0 %v26, 32
  %v1129 = vpop.permute.xlu0 %1128
  %1130 = vrot.lane.b32.xlu0 %v27, 32
  %v1131 = vpop.permute.xlu0 %1130
  %1132 = vrot.lane.b32.xlu0 %v28, 32
  %v1133 = vpop.permute.xlu0 %1132
  %1134 = vrot.lane.b32.xlu0 %v29, 32
  %v1135 = vpop.permute.xlu0 %1134
  %1136 = vrot.lane.b32.xlu0 %v30, 32
  %v1137 = vpop.permute.xlu0 %1136
  %1138 = vrot.lane.b32.xlu0 %v31, 32
  %v1139 = vpop.permute.xlu0 %1138
  %1140 = vrot.lane.b32.xlu0 %v32, 32
  %v1141 = vpop.permute.xlu0 %1140
  %1142 = vrot.lane.b32.xlu0 %v33, 32
  %v1143 = vpop.permute.xlu0 %1142
  %1144 = vrot.lane.b32.xlu0 %v34, 32
  %v1145 = vpop.permute.xlu0 %1144
  %1146 = vrot.lane.b32.xlu0 %v35, 32
  %v1147 = vpop.permute.xlu0 %1146
  %1148 = vrot.lane.b32.xlu0 %v36, 32
  %v1149 = vpop.permute.xlu0 %1148
  %1150 = vrot.lane.b32.xlu0 %v37, 32
  %v1151 = vpop.permute.xlu0 %1150
  %1152 = vrot.lane.b32.xlu0 %v38, 32
  %v1153 = vpop.permute.xlu0 %1152
  %1154 = vrot.lane.b32.xlu0 %v39, 32
  %v1155 = vpop.permute.xlu0 %1154
  %1156 = vrot.lane.b32.xlu0 %v40, 32
  %v1157 = vpop.permute.xlu0 %1156
  %1158 = vrot.lane.b32.xlu0 %v41, 32
  %v1159 = vpop.permute.xlu0 %1158
  %1160 = vrot.lane.b32.xlu0 %v42, 32
  %v1161 = vpop.permute.xlu0 %1160
  %1162 = vrot.lane.b32.xlu0 %v43, 32
  %v1163 = vpop.permute.xlu0 %1162
  %1164 = vrot.lane.b32.xlu0 %v44, 32
  %v1165 = vpop.permute.xlu0 %1164
  %1166 = vrot.lane.b32.xlu0 %v45, 32
  %v1167 = vpop.permute.xlu0 %1166
  %1168 = vrot.lane.b32.xlu0 %v46, 32
  %v1169 = vpop.permute.xlu0 %1168
  %1170 = vrot.lane.b32.xlu0 %v47, 32
  %v1171 = vpop.permute.xlu0 %1170
  %1172 = vrot.lane.b32.xlu0 %v48, 32
  %v1173 = vpop.permute.xlu0 %1172
  %1174 = vrot.lane.b32.xlu0 %v49, 32
  %v1175 = vpop.permute.xlu0 %1174
  %1176 = vrot.lane.b32.xlu0 %v50, 32
  %v1177 = vpop.permute.xlu0 %1176
  %1178 = vrot.lane.b32.xlu0 %v51, 32
  %v1179 = vpop.permute.xlu0 %1178
  %1180 = vrot.lane.b32.xlu0 %v52, 32
  %v1181 = vpop.permute.xlu0 %1180
  %1182 = vrot.lane.b32.xlu0 %v53, 32
  %v1183 = vpop.permute.xlu0 %1182
  %1184 = vrot.lane.b32.xlu0 %v54, 32
  %v1185 = vpop.permute.xlu0 %1184
  %1186 = vrot.lane.b32.xlu0 %v55, 32
  %v1187 = vpop.permute.xlu0 %1186
  %1188 = vrot.lane.b32.xlu0 %v56, 32
  %v1189 = vpop.permute.xlu0 %1188
  %1190 = vrot.lane.b32.xlu0 %v57, 32
  %v1191 = vpop.permute.xlu0 %1190
  %1192 = vrot.lane.b32.xlu0 %v58, 32
  %v1193 = vpop.permute.xlu0 %1192
  %1194 = vrot.lane.b32.xlu0 %v59, 32
  %v1195 = vpop.permute.xlu0 %1194
  %1196 = vrot.lane.b32.xlu0 %v60, 32
  %v1197 = vpop.permute.xlu0 %1196
  %1198 = vrot.lane.b32.xlu0 %v61, 32
  %v1199 = vpop.permute.xlu0 %1198
  %1200 = vrot.lane.b32.xlu0 %v62, 32
  %v1201 = vpop.permute.xlu0 %1200
  %1202 = vrot.lane.b32.xlu0 %v63, 32
  %v1203 = vpop.permute.xlu0 %1202
  %1204 = vrot.lane.b32.xlu0 %v64, 32
  %v1205 = vpop.permute.xlu0 %1204
  %1206 = vrot.lane.b32.xlu0 %v65, 32
  %v1207 = vpop.permute.xlu0 %1206
  %1208 = vrot.lane.b32.xlu0 %v66, 32
  %v1209 = vpop.permute.xlu0 %1208
  %1210 = vrot.lane.b32.xlu0 %v67, 32
  %v1211 = vpop.permute.xlu0 %1210
  %1212 = vrot.lane.b32.xlu0 %v68, 32
  %v1213 = vpop.permute.xlu0 %1212
  %1214 = vrot.lane.b32.xlu0 %v69, 32
  %v1215 = vpop.permute.xlu0 %1214
  %1216 = vrot.lane.b32.xlu0 %v70, 32
  %v1217 = vpop.permute.xlu0 %1216
  %1218 = vrot.lane.b32.xlu0 %v71, 32
  %v1219 = vpop.permute.xlu0 %1218
  %1220 = vrot.lane.b32.xlu0 %v72, 32
  %v1221 = vpop.permute.xlu0 %1220
  %1222 = vrot.lane.b32.xlu0 %v73, 32
  %v1223 = vpop.permute.xlu0 %1222
  %1224 = vrot.lane.b32.xlu0 %v74, 32
  %v1225 = vpop.permute.xlu0 %1224
  %1226 = vrot.lane.b32.xlu0 %v75, 32
  %v1227 = vpop.permute.xlu0 %1226
  %1228 = vrot.lane.b32.xlu0 %v76, 32
  %v1229 = vpop.permute.xlu0 %1228
  %1230 = vrot.lane.b32.xlu0 %v77, 32
  %v1231 = vpop.permute.xlu0 %1230
  %1232 = vrot.lane.b32.xlu0 %v78, 32
  %v1233 = vpop.permute.xlu0 %1232
  %1234 = vrot.lane.b32.xlu0 %v79, 32
  %v1235 = vpop.permute.xlu0 %1234
  %1300 = vrot.lane.b32.xlu0 %v338, 40
  %v1301 = vpop.permute.xlu0 %1300
  %1302 = vrot.lane.b32.xlu0 %v337, 40
  %v1303 = vpop.permute.xlu0 %1302
  %1304 = vrot.lane.b32.xlu0 %v336, 40
  %v1305 = vpop.permute.xlu0 %1304
  %1306 = vrot.lane.b32.xlu0 %v335, 40
  %v1307 = vpop.permute.xlu0 %1306
  %1308 = vrot.lane.b32.xlu0 %v334, 40
  %v1309 = vpop.permute.xlu0 %1308
  %1310 = vrot.lane.b32.xlu0 %v333, 40
  %v1311 = vpop.permute.xlu0 %1310
  %1312 = vrot.lane.b32.xlu0 %v332, 40
  %v1313 = vpop.permute.xlu0 %1312
  %1314 = vrot.lane.b32.xlu0 %v331, 40
  %v1315 = vpop.permute.xlu0 %1314
  %1316 = vrot.lane.b32.xlu0 %v330, 40
  %v1317 = vpop.permute.xlu0 %1316
  %1318 = vrot.lane.b32.xlu0 %v329, 40
  %v1319 = vpop.permute.xlu0 %1318
  %1320 = vrot.lane.b32.xlu0 %v328, 40
  %v1321 = vpop.permute.xlu0 %1320
  %1322 = vrot.lane.b32.xlu0 %v327, 40
  %v1323 = vpop.permute.xlu0 %1322
  %1324 = vrot.lane.b32.xlu0 %v326, 40
  %v1325 = vpop.permute.xlu0 %1324
  %1326 = vrot.lane.b32.xlu0 %v325, 40
  %v1327 = vpop.permute.xlu0 %1326
  %1328 = vrot.lane.b32.xlu0 %v324, 40
  %v1329 = vpop.permute.xlu0 %1328
  %1330 = vrot.lane.b32.xlu0 %v323, 40
  %v1331 = vpop.permute.xlu0 %1330
  %1332 = vrot.lane.b32.xlu0 %v322, 40
  %v1333 = vpop.permute.xlu0 %1332
  %1334 = vrot.lane.b32.xlu0 %v321, 40
  %v1335 = vpop.permute.xlu0 %1334
  %1336 = vrot.lane.b32.xlu0 %v320, 40
  %v1337 = vpop.permute.xlu0 %1336
  %1338 = vrot.lane.b32.xlu0 %v319, 40
  %v1339 = vpop.permute.xlu0 %1338
  %1340 = vrot.lane.b32.xlu0 %v318, 40
  %v1341 = vpop.permute.xlu0 %1340
  %1342 = vrot.lane.b32.xlu0 %v317, 40
  %v1343 = vpop.permute.xlu0 %1342
  %1344 = vrot.lane.b32.xlu0 %v316, 40
  %v1345 = vpop.permute.xlu0 %1344
  %1346 = vrot.lane.b32.xlu0 %v315, 40
  %v1347 = vpop.permute.xlu0 %1346
  %1348 = vrot.lane.b32.xlu0 %v314, 40
  %v1349 = vpop.permute.xlu0 %1348
  %1350 = vrot.lane.b32.xlu0 %v313, 40
  %v1351 = vpop.permute.xlu0 %1350
  %1352 = vrot.lane.b32.xlu0 %v312, 40
  %v1353 = vpop.permute.xlu0 %1352
  %1354 = vrot.lane.b32.xlu0 %v311, 40
  %v1355 = vpop.permute.xlu0 %1354
  %1356 = vrot.lane.b32.xlu0 %v310, 40
  %v1357 = vpop.permute.xlu0 %1356
  %1358 = vrot.lane.b32.xlu0 %v309, 40
  %v1359 = vpop.permute.xlu0 %1358
  %1360 = vrot.lane.b32.xlu0 %v308, 40
  %v1361 = vpop.permute.xlu0 %1360
  %1362 = vrot.lane.b32.xlu0 %v307, 40
  %v1363 = vpop.permute.xlu0 %1362
  %1364 = vrot.lane.b32.xlu0 %v306, 40
  %v1365 = vpop.permute.xlu0 %1364
  %1366 = vrot.lane.b32.xlu0 %v305, 40
  %v1367 = vpop.permute.xlu0 %1366
  %1368 = vrot.lane.b32.xlu0 %v304, 40
  %v1369 = vpop.permute.xlu0 %1368
  %1370 = vrot.lane.b32.xlu0 %v303, 40
  %v1371 = vpop.permute.xlu0 %1370
  %1372 = vrot.lane.b32.xlu0 %v302, 40
  %v1373 = vpop.permute.xlu0 %1372
  %1374 = vrot.lane.b32.xlu0 %v301, 40
  %v1375 = vpop.permute.xlu0 %1374
  %1376 = vrot.lane.b32.xlu0 %v300, 40
  %v1377 = vpop.permute.xlu0 %1376
  %1378 = vrot.lane.b32.xlu0 %v299, 40
  %v1379 = vpop.permute.xlu0 %1378
  %1380 = vrot.lane.b32.xlu0 %v298, 40
  %v1381 = vpop.permute.xlu0 %1380
  %1382 = vrot.lane.b32.xlu0 %v297, 40
  %v1383 = vpop.permute.xlu0 %1382
  %1384 = vrot.lane.b32.xlu0 %v296, 40
  %v1385 = vpop.permute.xlu0 %1384
  %1386 = vrot.lane.b32.xlu0 %v295, 40
  %v1387 = vpop.permute.xlu0 %1386
  %1388 = vrot.lane.b32.xlu0 %v294, 40
  %v1389 = vpop.permute.xlu0 %1388
  %1390 = vrot.lane.b32.xlu0 %v293, 40
  %v1391 = vpop.permute.xlu0 %1390
  %1392 = vrot.lane.b32.xlu0 %v292, 40
  %v1393 = vpop.permute.xlu0 %1392
  %1394 = vrot.lane.b32.xlu0 %v291, 40
  %v1395 = vpop.permute.xlu0 %1394
  %1396 = vrot.lane.b32.xlu0 %v290, 40
  %v1397 = vpop.permute.xlu0 %1396
  %1398 = vrot.lane.b32.xlu0 %v289, 40
  %v1399 = vpop.permute.xlu0 %1398
  %1400 = vrot.lane.b32.xlu0 %v288, 40
  %v1401 = vpop.permute.xlu0 %1400
  %1402 = vrot.lane.b32.xlu0 %v287, 40
  %v1403 = vpop.permute.xlu0 %1402
  %1404 = vrot.lane.b32.xlu0 %v286, 40
  %v1405 = vpop.permute.xlu0 %1404
  %1406 = vrot.lane.b32.xlu0 %v285, 40
  %v1407 = vpop.permute.xlu0 %1406
  %1408 = vrot.lane.b32.xlu0 %v284, 40
  %v1409 = vpop.permute.xlu0 %1408
  %1410 = vrot.lane.b32.xlu0 %v283, 40
  %v1411 = vpop.permute.xlu0 %1410
  %1412 = vrot.lane.b32.xlu0 %v282, 40
  %v1413 = vpop.permute.xlu0 %1412
  %1414 = vrot.lane.b32.xlu0 %v281, 40
  %v1415 = vpop.permute.xlu0 %1414
  %1416 = vrot.lane.b32.xlu0 %v280, 40
  %v1417 = vpop.permute.xlu0 %1416
  %1418 = vrot.lane.b32.xlu0 %v279, 40
  %v1419 = vpop.permute.xlu0 %1418
  %1420 = vrot.lane.b32.xlu0 %v278, 40
  %v1421 = vpop.permute.xlu0 %1420
  %1422 = vrot.lane.b32.xlu0 %v277, 40
  %v1423 = vpop.permute.xlu0 %1422
  %1424 = vrot.lane.b32.xlu0 %v276, 40
  %v1425 = vpop.permute.xlu0 %1424
  %1426 = vrot.lane.b32.xlu0 %v339, 40
  %v1427 = vpop.permute.xlu0 %1426
  %1492 = vrot.lane.b32.xlu0 %v208, 48
  %v1493 = vpop.permute.xlu0 %1492
  %1494 = vrot.lane.b32.xlu0 %v207, 48
  %v1495 = vpop.permute.xlu0 %1494
  %1496 = vrot.lane.b32.xlu0 %v206, 48
  %v1497 = vpop.permute.xlu0 %1496
  %1498 = vrot.lane.b32.xlu0 %v205, 48
  %v1499 = vpop.permute.xlu0 %1498
  %1500 = vrot.lane.b32.xlu0 %v204, 48
  %v1501 = vpop.permute.xlu0 %1500
  %1502 = vrot.lane.b32.xlu0 %v203, 48
  %v1503 = vpop.permute.xlu0 %1502
  %1504 = vrot.lane.b32.xlu0 %v202, 48
  %v1505 = vpop.permute.xlu0 %1504
  %1506 = vrot.lane.b32.xlu0 %v201, 48
  %v1507 = vpop.permute.xlu0 %1506
  %1508 = vrot.lane.b32.xlu0 %v200, 48
  %v1509 = vpop.permute.xlu0 %1508
  %1510 = vrot.lane.b32.xlu0 %v199, 48
  %v1511 = vpop.permute.xlu0 %1510
  %1512 = vrot.lane.b32.xlu0 %v198, 48
  %v1513 = vpop.permute.xlu0 %1512
  %1514 = vrot.lane.b32.xlu0 %v197, 48
  %v1515 = vpop.permute.xlu0 %1514
  %1516 = vrot.lane.b32.xlu0 %v196, 48
  %v1517 = vpop.permute.xlu0 %1516
  %1518 = vrot.lane.b32.xlu0 %v195, 48
  %v1519 = vpop.permute.xlu0 %1518
  %1520 = vrot.lane.b32.xlu0 %v194, 48
  %v1521 = vpop.permute.xlu0 %1520
  %1522 = vrot.lane.b32.xlu0 %v193, 48
  %v1523 = vpop.permute.xlu0 %1522
  %1524 = vrot.lane.b32.xlu0 %v192, 48
  %v1525 = vpop.permute.xlu0 %1524
  %1526 = vrot.lane.b32.xlu0 %v191, 48
  %v1527 = vpop.permute.xlu0 %1526
  %1528 = vrot.lane.b32.xlu0 %v190, 48
  %v1529 = vpop.permute.xlu0 %1528
  %1530 = vrot.lane.b32.xlu0 %v189, 48
  %v1531 = vpop.permute.xlu0 %1530
  %1532 = vrot.lane.b32.xlu0 %v188, 48
  %v1533 = vpop.permute.xlu0 %1532
  %1534 = vrot.lane.b32.xlu0 %v187, 48
  %v1535 = vpop.permute.xlu0 %1534
  %1536 = vrot.lane.b32.xlu0 %v186, 48
  %v1537 = vpop.permute.xlu0 %1536
  %1538 = vrot.lane.b32.xlu0 %v185, 48
  %v1539 = vpop.permute.xlu0 %1538
  %1540 = vrot.lane.b32.xlu0 %v184, 48
  %v1541 = vpop.permute.xlu0 %1540
  %1542 = vrot.lane.b32.xlu0 %v183, 48
  %v1543 = vpop.permute.xlu0 %1542
  %1544 = vrot.lane.b32.xlu0 %v182, 48
  %v1545 = vpop.permute.xlu0 %1544
  %1546 = vrot.lane.b32.xlu0 %v181, 48
  %v1547 = vpop.permute.xlu0 %1546
  %1548 = vrot.lane.b32.xlu0 %v180, 48
  %v1549 = vpop.permute.xlu0 %1548
  %1550 = vrot.lane.b32.xlu0 %v179, 48
  %v1551 = vpop.permute.xlu0 %1550
  %1552 = vrot.lane.b32.xlu0 %v178, 48
  %v1553 = vpop.permute.xlu0 %1552
  %1554 = vrot.lane.b32.xlu0 %v177, 48
  %v1555 = vpop.permute.xlu0 %1554
  %1556 = vrot.lane.b32.xlu0 %v176, 48
  %v1557 = vpop.permute.xlu0 %1556
  %1558 = vrot.lane.b32.xlu0 %v175, 48
  %v1559 = vpop.permute.xlu0 %1558
  %1560 = vrot.lane.b32.xlu0 %v174, 48
  %v1561 = vpop.permute.xlu0 %1560
  %1562 = vrot.lane.b32.xlu0 %v173, 48
  %v1563 = vpop.permute.xlu0 %1562
  %1564 = vrot.lane.b32.xlu0 %v172, 48
  %v1565 = vpop.permute.xlu0 %1564
  %1566 = vrot.lane.b32.xlu0 %v171, 48
  %v1567 = vpop.permute.xlu0 %1566
  %1568 = vrot.lane.b32.xlu0 %v170, 48
  %v1569 = vpop.permute.xlu0 %1568
  %1570 = vrot.lane.b32.xlu0 %v169, 48
  %v1571 = vpop.permute.xlu0 %1570
  %1572 = vrot.lane.b32.xlu0 %v168, 48
  %v1573 = vpop.permute.xlu0 %1572
  %1574 = vrot.lane.b32.xlu0 %v167, 48
  %v1575 = vpop.permute.xlu0 %1574
  %1576 = vrot.lane.b32.xlu0 %v166, 48
  %v1577 = vpop.permute.xlu0 %1576
  %1578 = vrot.lane.b32.xlu0 %v165, 48
  %v1579 = vpop.permute.xlu0 %1578
  %1580 = vrot.lane.b32.xlu0 %v164, 48
  %v1581 = vpop.permute.xlu0 %1580
  %1582 = vrot.lane.b32.xlu0 %v163, 48
  %v1583 = vpop.permute.xlu0 %1582
  %1584 = vrot.lane.b32.xlu0 %v162, 48
  %v1585 = vpop.permute.xlu0 %1584
  %1586 = vrot.lane.b32.xlu0 %v161, 48
  %v1587 = vpop.permute.xlu0 %1586
  %1588 = vrot.lane.b32.xlu0 %v160, 48
  %v1589 = vpop.permute.xlu0 %1588
  %1590 = vrot.lane.b32.xlu0 %v159, 48
  %v1591 = vpop.permute.xlu0 %1590
  %1592 = vrot.lane.b32.xlu0 %v158, 48
  %v1593 = vpop.permute.xlu0 %1592
  %1594 = vrot.lane.b32.xlu0 %v157, 48
  %v1595 = vpop.permute.xlu0 %1594
  %1596 = vrot.lane.b32.xlu0 %v156, 48
  %v1597 = vpop.permute.xlu0 %1596
  %1598 = vrot.lane.b32.xlu0 %v155, 48
  %v1599 = vpop.permute.xlu0 %1598
  %1600 = vrot.lane.b32.xlu0 %v154, 48
  %v1601 = vpop.permute.xlu0 %1600
  %1602 = vrot.lane.b32.xlu0 %v153, 48
  %v1603 = vpop.permute.xlu0 %1602
  %1604 = vrot.lane.b32.xlu0 %v152, 48
  %v1605 = vpop.permute.xlu0 %1604
  %1606 = vrot.lane.b32.xlu0 %v151, 48
  %v1607 = vpop.permute.xlu0 %1606
  %1608 = vrot.lane.b32.xlu0 %v150, 48
  %v1609 = vpop.permute.xlu0 %1608
  %1610 = vrot.lane.b32.xlu0 %v149, 48
  %v1611 = vpop.permute.xlu0 %1610
  %1612 = vrot.lane.b32.xlu0 %v148, 48
  %v1613 = vpop.permute.xlu0 %1612
  %1614 = vrot.lane.b32.xlu0 %v147, 48
  %v1615 = vpop.permute.xlu0 %1614
  %1616 = vrot.lane.b32.xlu0 %v210, 48
  %v1617 = vpop.permute.xlu0 %1616
  %1618 = vrot.lane.b32.xlu0 %v209, 48
  %v1619 = vpop.permute.xlu0 %1618
  %1684 = vrot.lane.b32.xlu0 %v18, 56
  %v1685 = vpop.permute.xlu0 %1684
  %1686 = vrot.lane.b32.xlu0 %v19, 56
  %v1687 = vpop.permute.xlu0 %1686
  %1688 = vrot.lane.b32.xlu0 %v20, 56
  %v1689 = vpop.permute.xlu0 %1688
  %1690 = vrot.lane.b32.xlu0 %v21, 56
  %v1691 = vpop.permute.xlu0 %1690
  %1692 = vrot.lane.b32.xlu0 %v22, 56
  %v1693 = vpop.permute.xlu0 %1692
  %1694 = vrot.lane.b32.xlu0 %v23, 56
  %v1695 = vpop.permute.xlu0 %1694
  %1696 = vrot.lane.b32.xlu0 %v24, 56
  %v1697 = vpop.permute.xlu0 %1696
  %1698 = vrot.lane.b32.xlu0 %v25, 56
  %v1699 = vpop.permute.xlu0 %1698
  %1700 = vrot.lane.b32.xlu0 %v26, 56
  %v1701 = vpop.permute.xlu0 %1700
  %1702 = vrot.lane.b32.xlu0 %v27, 56
  %v1703 = vpop.permute.xlu0 %1702
  %1704 = vrot.lane.b32.xlu0 %v28, 56
  %v1705 = vpop.permute.xlu0 %1704
  %1706 = vrot.lane.b32.xlu0 %v29, 56
  %v1707 = vpop.permute.xlu0 %1706
  %1708 = vrot.lane.b32.xlu0 %v30, 56
  %v1709 = vpop.permute.xlu0 %1708
  %1710 = vrot.lane.b32.xlu0 %v31, 56
  %v1711 = vpop.permute.xlu0 %1710
  %1712 = vrot.lane.b32.xlu0 %v32, 56
  %v1713 = vpop.permute.xlu0 %1712
  %1714 = vrot.lane.b32.xlu0 %v33, 56
  %v1715 = vpop.permute.xlu0 %1714
  %1716 = vrot.lane.b32.xlu0 %v34, 56
  %v1717 = vpop.permute.xlu0 %1716
  %1718 = vrot.lane.b32.xlu0 %v35, 56
  %v1719 = vpop.permute.xlu0 %1718
  %1720 = vrot.lane.b32.xlu0 %v36, 56
  %v1721 = vpop.permute.xlu0 %1720
  %1722 = vrot.lane.b32.xlu0 %v37, 56
  %v1723 = vpop.permute.xlu0 %1722
  %1724 = vrot.lane.b32.xlu0 %v38, 56
  %v1725 = vpop.permute.xlu0 %1724
  %1726 = vrot.lane.b32.xlu0 %v39, 56
  %v1727 = vpop.permute.xlu0 %1726
  %1728 = vrot.lane.b32.xlu0 %v40, 56
  %v1729 = vpop.permute.xlu0 %1728
  %1730 = vrot.lane.b32.xlu0 %v41, 56
  %v1731 = vpop.permute.xlu0 %1730
  %1732 = vrot.lane.b32.xlu0 %v42, 56
  %v1733 = vpop.permute.xlu0 %1732
  %1734 = vrot.lane.b32.xlu0 %v43, 56
  %v1735 = vpop.permute.xlu0 %1734
  %1736 = vrot.lane.b32.xlu0 %v44, 56
  %v1737 = vpop.permute.xlu0 %1736
  %1738 = vrot.lane.b32.xlu0 %v45, 56
  %v1739 = vpop.permute.xlu0 %1738
  %1740 = vrot.lane.b32.xlu0 %v46, 56
  %v1741 = vpop.permute.xlu0 %1740
  %1742 = vrot.lane.b32.xlu0 %v47, 56
  %v1743 = vpop.permute.xlu0 %1742
  %1744 = vrot.lane.b32.xlu0 %v48, 56
  %v1745 = vpop.permute.xlu0 %1744
  %1746 = vrot.lane.b32.xlu0 %v49, 56
  %v1747 = vpop.permute.xlu0 %1746
  %1748 = vrot.lane.b32.xlu0 %v50, 56
  %v1749 = vpop.permute.xlu0 %1748
  %1750 = vrot.lane.b32.xlu0 %v51, 56
  %v1751 = vpop.permute.xlu0 %1750
  %1752 = vrot.lane.b32.xlu0 %v52, 56
  %v1753 = vpop.permute.xlu0 %1752
  %1754 = vrot.lane.b32.xlu0 %v53, 56
  %v1755 = vpop.permute.xlu0 %1754
  %1756 = vrot.lane.b32.xlu0 %v54, 56
  %v1757 = vpop.permute.xlu0 %1756
  %1758 = vrot.lane.b32.xlu0 %v55, 56
  %v1759 = vpop.permute.xlu0 %1758
  %1760 = vrot.lane.b32.xlu0 %v56, 56
  %v1761 = vpop.permute.xlu0 %1760
  %1762 = vrot.lane.b32.xlu0 %v57, 56
  %v1763 = vpop.permute.xlu0 %1762
  %1764 = vrot.lane.b32.xlu0 %v58, 56
  %v1765 = vpop.permute.xlu0 %1764
  %1766 = vrot.lane.b32.xlu0 %v59, 56
  %v1767 = vpop.permute.xlu0 %1766
  %1768 = vrot.lane.b32.xlu0 %v60, 56
  %v1769 = vpop.permute.xlu0 %1768
  %1770 = vrot.lane.b32.xlu0 %v61, 56
  %v1771 = vpop.permute.xlu0 %1770
  %1772 = vrot.lane.b32.xlu0 %v62, 56
  %v1773 = vpop.permute.xlu0 %1772
  %1774 = vrot.lane.b32.xlu0 %v63, 56
  %v1775 = vpop.permute.xlu0 %1774
  %1776 = vrot.lane.b32.xlu0 %v64, 56
  %v1777 = vpop.permute.xlu0 %1776
  %1778 = vrot.lane.b32.xlu0 %v65, 56
  %v1779 = vpop.permute.xlu0 %1778
  %1780 = vrot.lane.b32.xlu0 %v66, 56
  %v1781 = vpop.permute.xlu0 %1780
  %1782 = vrot.lane.b32.xlu0 %v67, 56
  %v1783 = vpop.permute.xlu0 %1782
  %1784 = vrot.lane.b32.xlu0 %v68, 56
  %v1785 = vpop.permute.xlu0 %1784
  %1786 = vrot.lane.b32.xlu0 %v69, 56
  %v1787 = vpop.permute.xlu0 %1786
  %1788 = vrot.lane.b32.xlu0 %v70, 56
  %v1789 = vpop.permute.xlu0 %1788
  %1790 = vrot.lane.b32.xlu0 %v71, 56
  %v1791 = vpop.permute.xlu0 %1790
  %1792 = vrot.lane.b32.xlu0 %v72, 56
  %v1793 = vpop.permute.xlu0 %1792
  %1794 = vrot.lane.b32.xlu0 %v73, 56
  %v1795 = vpop.permute.xlu0 %1794
  %1796 = vrot.lane.b32.xlu0 %v74, 56
  %v1797 = vpop.permute.xlu0 %1796
  %1798 = vrot.lane.b32.xlu0 %v75, 56
  %v1799 = vpop.permute.xlu0 %1798
  %1800 = vrot.lane.b32.xlu0 %v76, 56
  %v1801 = vpop.permute.xlu0 %1800
  %1802 = vrot.lane.b32.xlu0 %v77, 56
  %v1803 = vpop.permute.xlu0 %1802
  %1804 = vrot.lane.b32.xlu0 %v78, 56
  %v1805 = vpop.permute.xlu0 %1804
  %1806 = vrot.lane.b32.xlu0 %v79, 56
  %v1807 = vpop.permute.xlu0 %1806
  %1808 = vrot.lane.b32.xlu0 %v16, 56
  %v1809 = vpop.permute.xlu0 %1808
  %1810 = vrot.lane.b32.xlu0 %v17, 56
  %v1811 = vpop.permute.xlu0 %1810
  %1876 = vrot.lane.b32.xlu0 %v336, 64
  %v1877 = vpop.permute.xlu0 %1876
  %1878 = vrot.lane.b32.xlu0 %v335, 64
  %v1879 = vpop.permute.xlu0 %1878
  %1880 = vrot.lane.b32.xlu0 %v334, 64
  %v1881 = vpop.permute.xlu0 %1880
  %1882 = vrot.lane.b32.xlu0 %v333, 64
  %v1883 = vpop.permute.xlu0 %1882
  %1884 = vrot.lane.b32.xlu0 %v332, 64
  %v1885 = vpop.permute.xlu0 %1884
  %1886 = vrot.lane.b32.xlu0 %v331, 64
  %v1887 = vpop.permute.xlu0 %1886
  %1888 = vrot.lane.b32.xlu0 %v330, 64
  %v1889 = vpop.permute.xlu0 %1888
  %1890 = vrot.lane.b32.xlu0 %v329, 64
  %v1891 = vpop.permute.xlu0 %1890
  %1892 = vrot.lane.b32.xlu0 %v328, 64
  %v1893 = vpop.permute.xlu0 %1892
  %1894 = vrot.lane.b32.xlu0 %v327, 64
  %v1895 = vpop.permute.xlu0 %1894
  %1896 = vrot.lane.b32.xlu0 %v326, 64
  %v1897 = vpop.permute.xlu0 %1896
  %1898 = vrot.lane.b32.xlu0 %v325, 64
  %v1899 = vpop.permute.xlu0 %1898
  %1900 = vrot.lane.b32.xlu0 %v324, 64
  %v1901 = vpop.permute.xlu0 %1900
  %1902 = vrot.lane.b32.xlu0 %v323, 64
  %v1903 = vpop.permute.xlu0 %1902
  %1904 = vrot.lane.b32.xlu0 %v322, 64
  %v1905 = vpop.permute.xlu0 %1904
  %1906 = vrot.lane.b32.xlu0 %v321, 64
  %v1907 = vpop.permute.xlu0 %1906
  %1908 = vrot.lane.b32.xlu0 %v320, 64
  %v1909 = vpop.permute.xlu0 %1908
  %1910 = vrot.lane.b32.xlu0 %v319, 64
  %v1911 = vpop.permute.xlu0 %1910
  %1912 = vrot.lane.b32.xlu0 %v318, 64
  %v1913 = vpop.permute.xlu0 %1912
  %1914 = vrot.lane.b32.xlu0 %v317, 64
  %v1915 = vpop.permute.xlu0 %1914
  %1916 = vrot.lane.b32.xlu0 %v316, 64
  %v1917 = vpop.permute.xlu0 %1916
  %1918 = vrot.lane.b32.xlu0 %v315, 64
  %v1919 = vpop.permute.xlu0 %1918
  %1920 = vrot.lane.b32.xlu0 %v314, 64
  %v1921 = vpop.permute.xlu0 %1920
  %1922 = vrot.lane.b32.xlu0 %v313, 64
  %v1923 = vpop.permute.xlu0 %1922
  %1924 = vrot.lane.b32.xlu0 %v312, 64
  %v1925 = vpop.permute.xlu0 %1924
  %1926 = vrot.lane.b32.xlu0 %v311, 64
  %v1927 = vpop.permute.xlu0 %1926
  %1928 = vrot.lane.b32.xlu0 %v310, 64
  %v1929 = vpop.permute.xlu0 %1928
  %1930 = vrot.lane.b32.xlu0 %v309, 64
  %v1931 = vpop.permute.xlu0 %1930
  %1932 = vrot.lane.b32.xlu0 %v308, 64
  %v1933 = vpop.permute.xlu0 %1932
  %1934 = vrot.lane.b32.xlu0 %v307, 64
  %v1935 = vpop.permute.xlu0 %1934
  %1936 = vrot.lane.b32.xlu0 %v306, 64
  %v1937 = vpop.permute.xlu0 %1936
  %1938 = vrot.lane.b32.xlu0 %v305, 64
  %v1939 = vpop.permute.xlu0 %1938
  %1940 = vrot.lane.b32.xlu0 %v304, 64
  %v1941 = vpop.permute.xlu0 %1940
  %1942 = vrot.lane.b32.xlu0 %v303, 64
  %v1943 = vpop.permute.xlu0 %1942
  %1944 = vrot.lane.b32.xlu0 %v302, 64
  %v1945 = vpop.permute.xlu0 %1944
  %1946 = vrot.lane.b32.xlu0 %v301, 64
  %v1947 = vpop.permute.xlu0 %1946
  %1948 = vrot.lane.b32.xlu0 %v300, 64
  %v1949 = vpop.permute.xlu0 %1948
  %1950 = vrot.lane.b32.xlu0 %v299, 64
  %v1951 = vpop.permute.xlu0 %1950
  %1952 = vrot.lane.b32.xlu0 %v298, 64
  %v1953 = vpop.permute.xlu0 %1952
  %1954 = vrot.lane.b32.xlu0 %v297, 64
  %v1955 = vpop.permute.xlu0 %1954
  %1956 = vrot.lane.b32.xlu0 %v296, 64
  %v1957 = vpop.permute.xlu0 %1956
  %1958 = vrot.lane.b32.xlu0 %v295, 64
  %v1959 = vpop.permute.xlu0 %1958
  %1960 = vrot.lane.b32.xlu0 %v294, 64
  %v1961 = vpop.permute.xlu0 %1960
  %1962 = vrot.lane.b32.xlu0 %v293, 64
  %v1963 = vpop.permute.xlu0 %1962
  %1964 = vrot.lane.b32.xlu0 %v292, 64
  %v1965 = vpop.permute.xlu0 %1964
  %1966 = vrot.lane.b32.xlu0 %v291, 64
  %v1967 = vpop.permute.xlu0 %1966
  %1968 = vrot.lane.b32.xlu0 %v290, 64
  %v1969 = vpop.permute.xlu0 %1968
  %1970 = vrot.lane.b32.xlu0 %v289, 64
  %v1971 = vpop.permute.xlu0 %1970
  %1972 = vrot.lane.b32.xlu0 %v288, 64
  %v1973 = vpop.permute.xlu0 %1972
  %1974 = vrot.lane.b32.xlu0 %v287, 64
  %v1975 = vpop.permute.xlu0 %1974
  %1976 = vrot.lane.b32.xlu0 %v286, 64
  %v1977 = vpop.permute.xlu0 %1976
  %1978 = vrot.lane.b32.xlu0 %v285, 64
  %v1979 = vpop.permute.xlu0 %1978
  %1980 = vrot.lane.b32.xlu0 %v284, 64
  %v1981 = vpop.permute.xlu0 %1980
  %1982 = vrot.lane.b32.xlu0 %v283, 64
  %v1983 = vpop.permute.xlu0 %1982
  %1984 = vrot.lane.b32.xlu0 %v282, 64
  %v1985 = vpop.permute.xlu0 %1984
  %1986 = vrot.lane.b32.xlu0 %v281, 64
  %v1987 = vpop.permute.xlu0 %1986
  %1988 = vrot.lane.b32.xlu0 %v280, 64
  %v1989 = vpop.permute.xlu0 %1988
  %1990 = vrot.lane.b32.xlu0 %v279, 64
  %v1991 = vpop.permute.xlu0 %1990
  %1992 = vrot.lane.b32.xlu0 %v278, 64
  %v1993 = vpop.permute.xlu0 %1992
  %1994 = vrot.lane.b32.xlu0 %v277, 64
  %v1995 = vpop.permute.xlu0 %1994
  %1996 = vrot.lane.b32.xlu0 %v276, 64
  %v1997 = vpop.permute.xlu0 %1996
  %1998 = vrot.lane.b32.xlu0 %v339, 64
  %v1999 = vpop.permute.xlu0 %1998
  %2000 = vrot.lane.b32.xlu0 %v338, 64
  %v2001 = vpop.permute.xlu0 %2000
  %2002 = vrot.lane.b32.xlu0 %v337, 64
  %v2003 = vpop.permute.xlu0 %2002
  %vm2068 = vcmask 64512
  %v2069 = vsel %vm2068, %v148, %v405
  %v2070 = vsel %vm2068, %v147, %v407
  %v2071 = vsel %vm2068, %v210, %v409
  %v2072 = vsel %vm2068, %v209, %v411
  %v2073 = vsel %vm2068, %v208, %v413
  %v2074 = vsel %vm2068, %v207, %v415
  %v2075 = vsel %vm2068, %v206, %v417
  %v2076 = vsel %vm2068, %v205, %v419
  %v2077 = vsel %vm2068, %v204, %v421
  %v2078 = vsel %vm2068, %v203, %v423
  %v2079 = vsel %vm2068, %v202, %v425
  %v2080 = vsel %vm2068, %v201, %v427
  %v2081 = vsel %vm2068, %v200, %v429
  %v2082 = vsel %vm2068, %v199, %v431
  %v2083 = vsel %vm2068, %v198, %v433
  %v2084 = vsel %vm2068, %v197, %v435
  %v2085 = vsel %vm2068, %v196, %v437
  %v2086 = vsel %vm2068, %v195, %v439
  %v2087 = vsel %vm2068, %v194, %v441
  %v2088 = vsel %vm2068, %v193, %v443
  %v2089 = vsel %vm2068, %v192, %v445
  %v2090 = vsel %vm2068, %v191, %v447
  %v2091 = vsel %vm2068, %v190, %v449
  %v2092 = vsel %vm2068, %v189, %v451
  %v2093 = vsel %vm2068, %v188, %v453
  %v2094 = vsel %vm2068, %v187, %v455
  %v2095 = vsel %vm2068, %v186, %v457
  %v2096 = vsel %vm2068, %v185, %v459
  %v2097 = vsel %vm2068, %v184, %v461
  %v2098 = vsel %vm2068, %v183, %v463
  %v2099 = vsel %vm2068, %v182, %v465
  %v2100 = vsel %vm2068, %v181, %v467
  %v2101 = vsel %vm2068, %v180, %v469
  %v2102 = vsel %vm2068, %v179, %v471
  %v2103 = vsel %vm2068, %v178, %v473
  %v2104 = vsel %vm2068, %v177, %v475
  %v2105 = vsel %vm2068, %v176, %v477
  %v2106 = vsel %vm2068, %v175, %v479
  %v2107 = vsel %vm2068, %v174, %v481
  %v2108 = vsel %vm2068, %v173, %v483
  %v2109 = vsel %vm2068, %v172, %v485
  %v2110 = vsel %vm2068, %v171, %v487
  %v2111 = vsel %vm2068, %v170, %v489
  %v2112 = vsel %vm2068, %v169, %v491
  %v2113 = vsel %vm2068, %v168, %v493
  %v2114 = vsel %vm2068, %v167, %v495
  %v2115 = vsel %vm2068, %v166, %v497
  %v2116 = vsel %vm2068, %v165, %v499
  %v2117 = vsel %vm2068, %v164, %v501
  %v2118 = vsel %vm2068, %v163, %v503
  %v2119 = vsel %vm2068, %v162, %v505
  %v2120 = vsel %vm2068, %v161, %v507
  %v2121 = vsel %vm2068, %v160, %v509
  %v2122 = vsel %vm2068, %v159, %v511
  %v2123 = vsel %vm2068, %v158, %v513
  %v2124 = vsel %vm2068, %v157, %v515
  %v2125 = vsel %vm2068, %v156, %v517
  %v2126 = vsel %vm2068, %v155, %v519
  %v2127 = vsel %vm2068, %v154, %v521
  %v2128 = vsel %vm2068, %v153, %v523
  %v2129 = vsel %vm2068, %v152, %v525
  %v2130 = vsel %vm2068, %v151, %v527
  %v2131 = vsel %vm2068, %v150, %v529
  %v2132 = vsel %vm2068, %v149, %v531
  %vm2133 = vcmask 130048
  %v2134 = vsel %vm2133, %v2069, %v661
  %v2135 = vsel %vm2133, %v2070, %v663
  %v2136 = vsel %vm2133, %v2071, %v665
  %v2137 = vsel %vm2133, %v2072, %v667
  %v2138 = vsel %vm2133, %v2073, %v669
  %v2139 = vsel %vm2133, %v2074, %v671
  %v2140 = vsel %vm2133, %v2075, %v673
  %v2141 = vsel %vm2133, %v2076, %v675
  %v2142 = vsel %vm2133, %v2077, %v677
  %v2143 = vsel %vm2133, %v2078, %v679
  %v2144 = vsel %vm2133, %v2079, %v681
  %v2145 = vsel %vm2133, %v2080, %v683
  %v2146 = vsel %vm2133, %v2081, %v685
  %v2147 = vsel %vm2133, %v2082, %v687
  %v2148 = vsel %vm2133, %v2083, %v689
  %v2149 = vsel %vm2133, %v2084, %v691
  %v2150 = vsel %vm2133, %v2085, %v693
  %v2151 = vsel %vm2133, %v2086, %v695
  %v2152 = vsel %vm2133, %v2087, %v697
  %v2153 = vsel %vm2133, %v2088, %v699
  %v2154 = vsel %vm2133, %v2089, %v701
  %v2155 = vsel %vm2133, %v2090, %v703
  %v2156 = vsel %vm2133, %v2091, %v705
  %v2157 = vsel %vm2133, %v2092, %v707
  %v2158 = vsel %vm2133, %v2093, %v709
  %v2159 = vsel %vm2133, %v2094, %v711
  %v2160 = vsel %vm2133, %v2095, %v713
  %v2161 = vsel %vm2133, %v2096, %v715
  %v2162 = vsel %vm2133, %v2097, %v717
  %v2163 = vsel %vm2133, %v2098, %v719
  %v2164 = vsel %vm2133, %v2099, %v721
  %v2165 = vsel %vm2133, %v2100, %v723
  %v2166 = vsel %vm2133, %v2101, %v725
  %v2167 = vsel %vm2133, %v2102, %v727
  %v2168 = vsel %vm2133, %v2103, %v729
  %v2169 = vsel %vm2133, %v2104, %v731
  %v2170 = vsel %vm2133, %v2105, %v733
  %v2171 = vsel %vm2133, %v2106, %v735
  %v2172 = vsel %vm2133, %v2107, %v737
  %v2173 = vsel %vm2133, %v2108, %v739
  %v2174 = vsel %vm2133, %v2109, %v741
  %v2175 = vsel %vm2133, %v2110, %v743
  %v2176 = vsel %vm2133, %v2111, %v745
  %v2177 = vsel %vm2133, %v2112, %v747
  %v2178 = vsel %vm2133, %v2113, %v749
  %v2179 = vsel %vm2133, %v2114, %v751
  %v2180 = vsel %vm2133, %v2115, %v753
  %v2181 = vsel %vm2133, %v2116, %v755
  %v2182 = vsel %vm2133, %v2117, %v757
  %v2183 = vsel %vm2133, %v2118, %v759
  %v2184 = vsel %vm2133, %v2119, %v761
  %v2185 = vsel %vm2133, %v2120, %v763
  %v2186 = vsel %vm2133, %v2121, %v765
  %v2187 = vsel %vm2133, %v2122, %v767
  %v2188 = vsel %vm2133, %v2123, %v769
  %v2189 = vsel %vm2133, %v2124, %v771
  %v2190 = vsel %vm2133, %v2125, %v773
  %v2191 = vsel %vm2133, %v2126, %v775
  %v2192 = vsel %vm2133, %v2127, %v777
  %v2193 = vsel %vm2133, %v2128, %v779
  %v2194 = vsel %vm2133, %v2129, %v781
  %v2195 = vsel %vm2133, %v2130, %v783
  %v2196 = vsel %vm2133, %v2131, %v785
  %v2197 = vsel %vm2133, %v2132, %v787
  %vm2198 = vcmask 195584
  %v2199 = vsel %vm2198, %v2134, %v917
  %v2200 = vsel %vm2198, %v2135, %v919
  %v2201 = vsel %vm2198, %v2136, %v921
  %v2202 = vsel %vm2198, %v2137, %v923
  %v2203 = vsel %vm2198, %v2138, %v925
  %v2204 = vsel %vm2198, %v2139, %v927
  %v2205 = vsel %vm2198, %v2140, %v929
  %v2206 = vsel %vm2198, %v2141, %v931
  %v2207 = vsel %vm2198, %v2142, %v933
  %v2208 = vsel %vm2198, %v2143, %v935
  %v2209 = vsel %vm2198, %v2144, %v937
  %v2210 = vsel %vm2198, %v2145, %v939
  %v2211 = vsel %vm2198, %v2146, %v941
  %v2212 = vsel %vm2198, %v2147, %v943
  %v2213 = vsel %vm2198, %v2148, %v945
  %v2214 = vsel %vm2198, %v2149, %v947
  %v2215 = vsel %vm2198, %v2150, %v949
  %v2216 = vsel %vm2198, %v2151, %v951
  %v2217 = vsel %vm2198, %v2152, %v953
  %v2218 = vsel %vm2198, %v2153, %v955
  %v2219 = vsel %vm2198, %v2154, %v957
  %v2220 = vsel %vm2198, %v2155, %v959
  %v2221 = vsel %vm2198, %v2156, %v961
  %v2222 = vsel %vm2198, %v2157, %v963
  %v2223 = vsel %vm2198, %v2158, %v965
  %v2224 = vsel %vm2198, %v2159, %v967
  %v2225 = vsel %vm2198, %v2160, %v969
  %v2226 = vsel %vm2198, %v2161, %v971
  %v2227 = vsel %vm2198, %v2162, %v973
  %v2228 = vsel %vm2198, %v2163, %v975
  %v2229 = vsel %vm2198, %v2164, %v977
  %v2230 = vsel %vm2198, %v2165, %v979
  %v2231 = vsel %vm2198, %v2166, %v981
  %v2232 = vsel %vm2198, %v2167, %v983
  %v2233 = vsel %vm2198, %v2168, %v985
  %v2234 = vsel %vm2198, %v2169, %v987
  %v2235 = vsel %vm2198, %v2170, %v989
  %v2236 = vsel %vm2198, %v2171, %v991
  %v2237 = vsel %vm2198, %v2172, %v993
  %v2238 = vsel %vm2198, %v2173, %v995
  %v2239 = vsel %vm2198, %v2174, %v997
  %v2240 = vsel %vm2198, %v2175, %v999
  %v2241 = vsel %vm2198, %v2176, %v1001
  %v2242 = vsel %vm2198, %v2177, %v1003
  %v2243 = vsel %vm2198, %v2178, %v1005
  %v2244 = vsel %vm2198, %v2179, %v1007
  %v2245 = vsel %vm2198, %v2180, %v1009
  %v2246 = vsel %vm2198, %v2181, %v1011
  %v2247 = vsel %vm2198, %v2182, %v1013
  %v2248 = vsel %vm2198, %v2183, %v1015
  %v2249 = vsel %vm2198, %v2184, %v1017
  %v2250 = vsel %vm2198, %v2185, %v1019
  %v2251 = vsel %vm2198, %v2186, %v1021
  %v2252 = vsel %vm2198, %v2187, %v1023
  %v2253 = vsel %vm2198, %v2188, %v1025
  %v2254 = vsel %vm2198, %v2189, %v1027
  %v2255 = vsel %vm2198, %v2190, %v1029
  %v2256 = vsel %vm2198, %v2191, %v1031
  %v2257 = vsel %vm2198, %v2192, %v1033
  %v2258 = vsel %vm2198, %v2193, %v1035
  %v2259 = vsel %vm2198, %v2194, %v1037
  %v2260 = vsel %vm2198, %v2195, %v1039
  %v2261 = vsel %vm2198, %v2196, %v1041
  %v2262 = vsel %vm2198, %v2197, %v1043
  %vm2263 = vcmask 261120
  %v2264 = vsel %vm2263, %v2199, %v1109
  %v2265 = vsel %vm2263, %v2200, %v1111
  %v2266 = vsel %vm2263, %v2201, %v1113
  %v2267 = vsel %vm2263, %v2202, %v1115
  %v2268 = vsel %vm2263, %v2203, %v1117
  %v2269 = vsel %vm2263, %v2204, %v1119
  %v2270 = vsel %vm2263, %v2205, %v1121
  %v2271 = vsel %vm2263, %v2206, %v1123
  %v2272 = vsel %vm2263, %v2207, %v1125
  %v2273 = vsel %vm2263, %v2208, %v1127
  %v2274 = vsel %vm2263, %v2209, %v1129
  %v2275 = vsel %vm2263, %v2210, %v1131
  %v2276 = vsel %vm2263, %v2211, %v1133
  %v2277 = vsel %vm2263, %v2212, %v1135
  %v2278 = vsel %vm2263, %v2213, %v1137
  %v2279 = vsel %vm2263, %v2214, %v1139
  %v2280 = vsel %vm2263, %v2215, %v1141
  %v2281 = vsel %vm2263, %v2216, %v1143
  %v2282 = vsel %vm2263, %v2217, %v1145
  %v2283 = vsel %vm2263, %v2218, %v1147
  %v2284 = vsel %vm2263, %v2219, %v1149
  %v2285 = vsel %vm2263, %v2220, %v1151
  %v2286 = vsel %vm2263, %v2221, %v1153
  %v2287 = vsel %vm2263, %v2222, %v1155
  %v2288 = vsel %vm2263, %v2223, %v1157
  %v2289 = vsel %vm2263, %v2224, %v1159
  %v2290 = vsel %vm2263, %v2225, %v1161
  %v2291 = vsel %vm2263, %v2226, %v1163
  %v2292 = vsel %vm2263, %v2227, %v1165
  %v2293 = vsel %vm2263, %v2228, %v1167
  %v2294 = vsel %vm2263, %v2229, %v1169
  %v2295 = vsel %vm2263, %v2230, %v1171
  %v2296 = vsel %vm2263, %v2231, %v1173
  %v2297 = vsel %vm2263, %v2232, %v1175
  %v2298 = vsel %vm2263, %v2233, %v1177
  %v2299 = vsel %vm2263, %v2234, %v1179
  %v2300 = vsel %vm2263, %v2235, %v1181
  %v2301 = vsel %vm2263, %v2236, %v1183
  %v2302 = vsel %vm2263, %v2237, %v1185
  %v2303 = vsel %vm2263, %v2238, %v1187
  %v2304 = vsel %vm2263, %v2239, %v1189
  %v2305 = vsel %vm2263, %v2240, %v1191
  %v2306 = vsel %vm2263, %v2241, %v1193
  %v2307 = vsel %vm2263, %v2242, %v1195
  %v2308 = vsel %vm2263, %v2243, %v1197
  %v2309 = vsel %vm2263, %v2244, %v1199
  %v2310 = vsel %vm2263, %v2245, %v1201
  %v2311 = vsel %vm2263, %v2246, %v1203
  %v2312 = vsel %vm2263, %v2247, %v1205
  %v2313 = vsel %vm2263, %v2248, %v1207
  %v2314 = vsel %vm2263, %v2249, %v1209
  %v2315 = vsel %vm2263, %v2250, %v1211
  %v2316 = vsel %vm2263, %v2251, %v1213
  %v2317 = vsel %vm2263, %v2252, %v1215
  %v2318 = vsel %vm2263, %v2253, %v1217
  %v2319 = vsel %vm2263, %v2254, %v1219
  %v2320 = vsel %vm2263, %v2255, %v1221
  %v2321 = vsel %vm2263, %v2256, %v1223
  %v2322 = vsel %vm2263, %v2257, %v1225
  %v2323 = vsel %vm2263, %v2258, %v1227
  %v2324 = vsel %vm2263, %v2259, %v1229
  %v2325 = vsel %vm2263, %v2260, %v1231
  %v2326 = vsel %vm2263, %v2261, %v1233
  %v2327 = vsel %vm2263, %v2262, %v1235
  %vm2328 = vcmask 326656
  %v2329 = vsel %vm2328, %v2264, %v1301
  %v2330 = vsel %vm2328, %v2265, %v1303
  %v2331 = vsel %vm2328, %v2266, %v1305
  %v2332 = vsel %vm2328, %v2267, %v1307
  %v2333 = vsel %vm2328, %v2268, %v1309
  %v2334 = vsel %vm2328, %v2269, %v1311
  %v2335 = vsel %vm2328, %v2270, %v1313
  %v2336 = vsel %vm2328, %v2271, %v1315
  %v2337 = vsel %vm2328, %v2272, %v1317
  %v2338 = vsel %vm2328, %v2273, %v1319
  %v2339 = vsel %vm2328, %v2274, %v1321
  %v2340 = vsel %vm2328, %v2275, %v1323
  %v2341 = vsel %vm2328, %v2276, %v1325
  %v2342 = vsel %vm2328, %v2277, %v1327
  %v2343 = vsel %vm2328, %v2278, %v1329
  %v2344 = vsel %vm2328, %v2279, %v1331
  %v2345 = vsel %vm2328, %v2280, %v1333
  %v2346 = vsel %vm2328, %v2281, %v1335
  %v2347 = vsel %vm2328, %v2282, %v1337
  %v2348 = vsel %vm2328, %v2283, %v1339
  %v2349 = vsel %vm2328, %v2284, %v1341
  %v2350 = vsel %vm2328, %v2285, %v1343
  %v2351 = vsel %vm2328, %v2286, %v1345
  %v2352 = vsel %vm2328, %v2287, %v1347
  %v2353 = vsel %vm2328, %v2288, %v1349
  %v2354 = vsel %vm2328, %v2289, %v1351
  %v2355 = vsel %vm2328, %v2290, %v1353
  %v2356 = vsel %vm2328, %v2291, %v1355
  %v2357 = vsel %vm2328, %v2292, %v1357
  %v2358 = vsel %vm2328, %v2293, %v1359
  %v2359 = vsel %vm2328, %v2294, %v1361
  %v2360 = vsel %vm2328, %v2295, %v1363
  %v2361 = vsel %vm2328, %v2296, %v1365
  %v2362 = vsel %vm2328, %v2297, %v1367
  %v2363 = vsel %vm2328, %v2298, %v1369
  %v2364 = vsel %vm2328, %v2299, %v1371
  %v2365 = vsel %vm2328, %v2300, %v1373
  %v2366 = vsel %vm2328, %v2301, %v1375
  %v2367 = vsel %vm2328, %v2302, %v1377
  %v2368 = vsel %vm2328, %v2303, %v1379
  %v2369 = vsel %vm2328, %v2304, %v1381
  %v2370 = vsel %vm2328, %v2305, %v1383
  %v2371 = vsel %vm2328, %v2306, %v1385
  %v2372 = vsel %vm2328, %v2307, %v1387
  %v2373 = vsel %vm2328, %v2308, %v1389
  %v2374 = vsel %vm2328, %v2309, %v1391
  %v2375 = vsel %vm2328, %v2310, %v1393
  %v2376 = vsel %vm2328, %v2311, %v1395
  %v2377 = vsel %vm2328, %v2312, %v1397
  %v2378 = vsel %vm2328, %v2313, %v1399
  %v2379 = vsel %vm2328, %v2314, %v1401
  %v2380 = vsel %vm2328, %v2315, %v1403
  %v2381 = vsel %vm2328, %v2316, %v1405
  %v2382 = vsel %vm2328, %v2317, %v1407
  %v2383 = vsel %vm2328, %v2318, %v1409
  %v2384 = vsel %vm2328, %v2319, %v1411
  %v2385 = vsel %vm2328, %v2320, %v1413
  %v2386 = vsel %vm2328, %v2321, %v1415
  %v2387 = vsel %vm2328, %v2322, %v1417
  %v2388 = vsel %vm2328, %v2323, %v1419
  %v2389 = vsel %vm2328, %v2324, %v1421
  %v2390 = vsel %vm2328, %v2325, %v1423
  %v2391 = vsel %vm2328, %v2326, %v1425
  %v2392 = vsel %vm2328, %v2327, %v1427
  %vm2393 = vcmask 392192
  %v2394 = vsel %vm2393, %v2329, %v1493
  %v2395 = vsel %vm2393, %v2330, %v1495
  %v2396 = vsel %vm2393, %v2331, %v1497
  %v2397 = vsel %vm2393, %v2332, %v1499
  %v2398 = vsel %vm2393, %v2333, %v1501
  %v2399 = vsel %vm2393, %v2334, %v1503
  %v2400 = vsel %vm2393, %v2335, %v1505
  %v2401 = vsel %vm2393, %v2336, %v1507
  %v2402 = vsel %vm2393, %v2337, %v1509
  %v2403 = vsel %vm2393, %v2338, %v1511
  %v2404 = vsel %vm2393, %v2339, %v1513
  %v2405 = vsel %vm2393, %v2340, %v1515
  %v2406 = vsel %vm2393, %v2341, %v1517
  %v2407 = vsel %vm2393, %v2342, %v1519
  %v2408 = vsel %vm2393, %v2343, %v1521
  %v2409 = vsel %vm2393, %v2344, %v1523
  %v2410 = vsel %vm2393, %v2345, %v1525
  %v2411 = vsel %vm2393, %v2346, %v1527
  %v2412 = vsel %vm2393, %v2347, %v1529
  %v2413 = vsel %vm2393, %v2348, %v1531
  %v2414 = vsel %vm2393, %v2349, %v1533
  %v2415 = vsel %vm2393, %v2350, %v1535
  %v2416 = vsel %vm2393, %v2351, %v1537
  %v2417 = vsel %vm2393, %v2352, %v1539
  %v2418 = vsel %vm2393, %v2353, %v1541
  %v2419 = vsel %vm2393, %v2354, %v1543
  %v2420 = vsel %vm2393, %v2355, %v1545
  %v2421 = vsel %vm2393, %v2356, %v1547
  %v2422 = vsel %vm2393, %v2357, %v1549
  %v2423 = vsel %vm2393, %v2358, %v1551
  %v2424 = vsel %vm2393, %v2359, %v1553
  %v2425 = vsel %vm2393, %v2360, %v1555
  %v2426 = vsel %vm2393, %v2361, %v1557
  %v2427 = vsel %vm2393, %v2362, %v1559
  %v2428 = vsel %vm2393, %v2363, %v1561
  %v2429 = vsel %vm2393, %v2364, %v1563
  %v2430 = vsel %vm2393, %v2365, %v1565
  %v2431 = vsel %vm2393, %v2366, %v1567
  %v2432 = vsel %vm2393, %v2367, %v1569
  %v2433 = vsel %vm2393, %v2368, %v1571
  %v2434 = vsel %vm2393, %v2369, %v1573
  %v2435 = vsel %vm2393, %v2370, %v1575
  %v2436 = vsel %vm2393, %v2371, %v1577
  %v2437 = vsel %vm2393, %v2372, %v1579
  %v2438 = vsel %vm2393, %v2373, %v1581
  %v2439 = vsel %vm2393, %v2374, %v1583
  %v2440 = vsel %vm2393, %v2375, %v1585
  %v2441 = vsel %vm2393, %v2376, %v1587
  %v2442 = vsel %vm2393, %v2377, %v1589
  %v2443 = vsel %vm2393, %v2378, %v1591
  %v2444 = vsel %vm2393, %v2379, %v1593
  %v2445 = vsel %vm2393, %v2380, %v1595
  %v2446 = vsel %vm2393, %v2381, %v1597
  %v2447 = vsel %vm2393, %v2382, %v1599
  %v2448 = vsel %vm2393, %v2383, %v1601
  %v2449 = vsel %vm2393, %v2384, %v1603
  %v2450 = vsel %vm2393, %v2385, %v1605
  %v2451 = vsel %vm2393, %v2386, %v1607
  %v2452 = vsel %vm2393, %v2387, %v1609
  %v2453 = vsel %vm2393, %v2388, %v1611
  %v2454 = vsel %vm2393, %v2389, %v1613
  %v2455 = vsel %vm2393, %v2390, %v1615
  %v2456 = vsel %vm2393, %v2391, %v1617
  %v2457 = vsel %vm2393, %v2392, %v1619
  %vm2458 = vcmask 457728
  %v2459 = vsel %vm2458, %v2394, %v1685
  %v2460 = vsel %vm2458, %v2395, %v1687
  %v2461 = vsel %vm2458, %v2396, %v1689
  %v2462 = vsel %vm2458, %v2397, %v1691
  %v2463 = vsel %vm2458, %v2398, %v1693
  %v2464 = vsel %vm2458, %v2399, %v1695
  %v2465 = vsel %vm2458, %v2400, %v1697
  %v2466 = vsel %vm2458, %v2401, %v1699
  %v2467 = vsel %vm2458, %v2402, %v1701
  %v2468 = vsel %vm2458, %v2403, %v1703
  %v2469 = vsel %vm2458, %v2404, %v1705
  %v2470 = vsel %vm2458, %v2405, %v1707
  %v2471 = vsel %vm2458, %v2406, %v1709
  %v2472 = vsel %vm2458, %v2407, %v1711
  %v2473 = vsel %vm2458, %v2408, %v1713
  %v2474 = vsel %vm2458, %v2409, %v1715
  %v2475 = vsel %vm2458, %v2410, %v1717
  %v2476 = vsel %vm2458, %v2411, %v1719
  %v2477 = vsel %vm2458, %v2412, %v1721
  %v2478 = vsel %vm2458, %v2413, %v1723
  %v2479 = vsel %vm2458, %v2414, %v1725
  %v2480 = vsel %vm2458, %v2415, %v1727
  %v2481 = vsel %vm2458, %v2416, %v1729
  %v2482 = vsel %vm2458, %v2417, %v1731
  %v2483 = vsel %vm2458, %v2418, %v1733
  %v2484 = vsel %vm2458, %v2419, %v1735
  %v2485 = vsel %vm2458, %v2420, %v1737
  %v2486 = vsel %vm2458, %v2421, %v1739
  %v2487 = vsel %vm2458, %v2422, %v1741
  %v2488 = vsel %vm2458, %v2423, %v1743
  %v2489 = vsel %vm2458, %v2424, %v1745
  %v2490 = vsel %vm2458, %v2425, %v1747
  %v2491 = vsel %vm2458, %v2426, %v1749
  %v2492 = vsel %vm2458, %v2427, %v1751
  %v2493 = vsel %vm2458, %v2428, %v1753
  %v2494 = vsel %vm2458, %v2429, %v1755
  %v2495 = vsel %vm2458, %v2430, %v1757
  %v2496 = vsel %vm2458, %v2431, %v1759
  %v2497 = vsel %vm2458, %v2432, %v1761
  %v2498 = vsel %vm2458, %v2433, %v1763
  %v2499 = vsel %vm2458, %v2434, %v1765
  %v2500 = vsel %vm2458, %v2435, %v1767
  %v2501 = vsel %vm2458, %v2436, %v1769
  %v2502 = vsel %vm2458, %v2437, %v1771
  %v2503 = vsel %vm2458, %v2438, %v1773
  %v2504 = vsel %vm2458, %v2439, %v1775
  %v2505 = vsel %vm2458, %v2440, %v1777
  %v2506 = vsel %vm2458, %v2441, %v1779
  %v2507 = vsel %vm2458, %v2442, %v1781
  %v2508 = vsel %vm2458, %v2443, %v1783
  %v2509 = vsel %vm2458, %v2444, %v1785
  %v2510 = vsel %vm2458, %v2445, %v1787
  %v2511 = vsel %vm2458, %v2446, %v1789
  %v2512 = vsel %vm2458, %v2447, %v1791
  %v2513 = vsel %vm2458, %v2448, %v1793
  %v2514 = vsel %vm2458, %v2449, %v1795
  %v2515 = vsel %vm2458, %v2450, %v1797
  %v2516 = vsel %vm2458, %v2451, %v1799
  %v2517 = vsel %vm2458, %v2452, %v1801
  %v2518 = vsel %vm2458, %v2453, %v1803
  %v2519 = vsel %vm2458, %v2454, %v1805
  %v2520 = vsel %vm2458, %v2455, %v1807
  %v2521 = vsel %vm2458, %v2456, %v1809
  %v2522 = vsel %vm2458, %v2457, %v1811
  %vm2523 = vcmask 523264
  %v2524 = vsel %vm2523, %v2459, %v1877
  %v2525 = vsel %vm2523, %v2460, %v1879
  %v2526 = vsel %vm2523, %v2461, %v1881
  %v2527 = vsel %vm2523, %v2462, %v1883
  %v2528 = vsel %vm2523, %v2463, %v1885
  %v2529 = vsel %vm2523, %v2464, %v1887
  %v2530 = vsel %vm2523, %v2465, %v1889
  %v2531 = vsel %vm2523, %v2466, %v1891
  %v2532 = vsel %vm2523, %v2467, %v1893
  %v2533 = vsel %vm2523, %v2468, %v1895
  %v2534 = vsel %vm2523, %v2469, %v1897
  %v2535 = vsel %vm2523, %v2470, %v1899
  %v2536 = vsel %vm2523, %v2471, %v1901
  %v2537 = vsel %vm2523, %v2472, %v1903
  %v2538 = vsel %vm2523, %v2473, %v1905
  %v2539 = vsel %vm2523, %v2474, %v1907
  %v2540 = vsel %vm2523, %v2475, %v1909
  %v2541 = vsel %vm2523, %v2476, %v1911
  %v2542 = vsel %vm2523, %v2477, %v1913
  %v2543 = vsel %vm2523, %v2478, %v1915
  %v2544 = vsel %vm2523, %v2479, %v1917
  %v2545 = vsel %vm2523, %v2480, %v1919
  %v2546 = vsel %vm2523, %v2481, %v1921
  %v2547 = vsel %vm2523, %v2482, %v1923
  %v2548 = vsel %vm2523, %v2483, %v1925
  %v2549 = vsel %vm2523, %v2484, %v1927
  %v2550 = vsel %vm2523, %v2485, %v1929
  %v2551 = vsel %vm2523, %v2486, %v1931
  %v2552 = vsel %vm2523, %v2487, %v1933
  %v2553 = vsel %vm2523, %v2488, %v1935
  %v2554 = vsel %vm2523, %v2489, %v1937
  %v2555 = vsel %vm2523, %v2490, %v1939
  %v2556 = vsel %vm2523, %v2491, %v1941
  %v2557 = vsel %vm2523, %v2492, %v1943
  %v2558 = vsel %vm2523, %v2493, %v1945
  %v2559 = vsel %vm2523, %v2494, %v1947
  %v2560 = vsel %vm2523, %v2495, %v1949
  %v2561 = vsel %vm2523, %v2496, %v1951
  %v2562 = vsel %vm2523, %v2497, %v1953
  %v2563 = vsel %vm2523, %v2498, %v1955
  %v2564 = vsel %vm2523, %v2499, %v1957
  %v2565 = vsel %vm2523, %v2500, %v1959
  %v2566 = vsel %vm2523, %v2501, %v1961
  %v2567 = vsel %vm2523, %v2502, %v1963
  %v2568 = vsel %vm2523, %v2503, %v1965
  %v2569 = vsel %vm2523, %v2504, %v1967
  %v2570 = vsel %vm2523, %v2505, %v1969
  %v2571 = vsel %vm2523, %v2506, %v1971
  %v2572 = vsel %vm2523, %v2507, %v1973
  %v2573 = vsel %vm2523, %v2508, %v1975
  %v2574 = vsel %vm2523, %v2509, %v1977
  %v2575 = vsel %vm2523, %v2510, %v1979
  %v2576 = vsel %vm2523, %v2511, %v1981
  %v2577 = vsel %vm2523, %v2512, %v1983
  %v2578 = vsel %vm2523, %v2513, %v1985
  %v2579 = vsel %vm2523, %v2514, %v1987
  %v2580 = vsel %vm2523, %v2515, %v1989
  %v2581 = vsel %vm2523, %v2516, %v1991
  %v2582 = vsel %vm2523, %v2517, %v1993
  %v2583 = vsel %vm2523, %v2518, %v1995
  %v2584 = vsel %vm2523, %v2519, %v1997
  %v2585 = vsel %vm2523, %v2520, %v1999
  %v2586 = vsel %vm2523, %v2521, %v2001
  %v2587 = vsel %vm2523, %v2522, %v2003
  %v2588 = vld [vmem:[%s2] sm:$0xff]
  %v2589 = vld [vmem:[%s2 + $0x8] sm:$0xff]
  %v2590 = vld [vmem:[%s2 + $0x10] sm:$0xff]
  %v2591 = vld [vmem:[%s2 + $0x18] sm:$0xff]
  %v2592 = vld [vmem:[%s2 + $0x20] sm:$0xff]
  %v2593 = vld [vmem:[%s2 + $0x28] sm:$0xff]
  %v2594 = vld [vmem:[%s2 + $0x30] sm:$0xff]
  %v2595 = vld [vmem:[%s2 + $0x38] sm:$0xff]
  %v2596 = vld [vmem:[%s2 + $0x40] sm:$0xff]
  %v2597 = vld [vmem:[%s2 + $0x48] sm:$0xff]
  %v2598 = vld [vmem:[%s2 + $0x50] sm:$0xff]
  %v2599 = vld [vmem:[%s2 + $0x58] sm:$0xff]
  %v2600 = vld [vmem:[%s2 + $0x60] sm:$0xff]
  %v2601 = vld [vmem:[%s2 + $0x68] sm:$0xff]
  %v2602 = vld [vmem:[%s2 + $0x70] sm:$0xff]
  %v2603 = vld [vmem:[%s2 + $0x78] sm:$0xff]
  %v2604 = vld [vmem:[%s2 + $0x80] sm:$0xff]
  %v2605 = vld [vmem:[%s2 + $0x88] sm:$0xff]
  %v2606 = vld [vmem:[%s2 + $0x90] sm:$0xff]
  %v2607 = vld [vmem:[%s2 + $0x98] sm:$0xff]
  %v2608 = vld [vmem:[%s2 + $0xa0] sm:$0xff]
  %v2609 = vld [vmem:[%s2 + $0xa8] sm:$0xff]
  %v2610 = vld [vmem:[%s2 + $0xb0] sm:$0xff]
  %v2611 = vld [vmem:[%s2 + $0xb8] sm:$0xff]
  %v2612 = vld [vmem:[%s2 + $0xc0] sm:$0xff]
  %v2613 = vld [vmem:[%s2 + $0xc8] sm:$0xff]
  %v2614 = vld [vmem:[%s2 + $0xd0] sm:$0xff]
  %v2615 = vld [vmem:[%s2 + $0xd8] sm:$0xff]
  %v2616 = vld [vmem:[%s2 + $0xe0] sm:$0xff]
  %v2617 = vld [vmem:[%s2 + $0xe8] sm:$0xff]
  %v2618 = vld [vmem:[%s2 + $0xf0] sm:$0xff]
  %v2619 = vld [vmem:[%s2 + $0xf8] sm:$0xff]
  %v2620 = vld [vmem:[%s2 + $0x100] sm:$0xff]
  %v2621 = vld [vmem:[%s2 + $0x108] sm:$0xff]
  %v2622 = vld [vmem:[%s2 + $0x110] sm:$0xff]
  %v2623 = vld [vmem:[%s2 + $0x118] sm:$0xff]
  %v2624 = vld [vmem:[%s2 + $0x120] sm:$0xff]
  %v2625 = vld [vmem:[%s2 + $0x128] sm:$0xff]
  %v2626 = vld [vmem:[%s2 + $0x130] sm:$0xff]
  %v2627 = vld [vmem:[%s2 + $0x138] sm:$0xff]
  %v2628 = vld [vmem:[%s2 + $0x140] sm:$0xff]
  %v2629 = vld [vmem:[%s2 + $0x148] sm:$0xff]
  %v2630 = vld [vmem:[%s2 + $0x150] sm:$0xff]
  %v2631 = vld [vmem:[%s2 + $0x158] sm:$0xff]
  %v2632 = vld [vmem:[%s2 + $0x160] sm:$0xff]
  %v2633 = vld [vmem:[%s2 + $0x168] sm:$0xff]
  %v2634 = vld [vmem:[%s2 + $0x170] sm:$0xff]
  %v2635 = vld [vmem:[%s2 + $0x178] sm:$0xff]
  %v2636 = vld [vmem:[%s2 + $0x180] sm:$0xff]
  %v2637 = vld [vmem:[%s2 + $0x188] sm:$0xff]
  %v2638 = vld [vmem:[%s2 + $0x190] sm:$0xff]
  %v2639 = vld [vmem:[%s2 + $0x198] sm:$0xff]
  %v2640 = vld [vmem:[%s2 + $0x1a0] sm:$0xff]
  %v2641 = vld [vmem:[%s2 + $0x1a8] sm:$0xff]
  %v2642 = vld [vmem:[%s2 + $0x1b0] sm:$0xff]
  %v2643 = vld [vmem:[%s2 + $0x1b8] sm:$0xff]
  %v2644 = vld [vmem:[%s2 + $0x1c0] sm:$0xff]
  %v2645 = vld [vmem:[%s2 + $0x1c8] sm:$0xff]
  %v2646 = vld [vmem:[%s2 + $0x1d0] sm:$0xff]
  %v2647 = vld [vmem:[%s2 + $0x1d8] sm:$0xff]
  %v2648 = vld [vmem:[%s2 + $0x1e0] sm:$0xff]
  %v2649 = vld [vmem:[%s2 + $0x1e8] sm:$0xff]
  %v2650 = vld [vmem:[%s2 + $0x1f0] sm:$0xff]
  %v2651 = vld [vmem:[%s2 + $0x1f8] sm:$0xff]
  %v2652 = vmul.f32 %v2524, %v2588
  %v2653 = vmul.f32 %v2525, %v2589
  %v2654 = vmul.f32 %v2526, %v2590
  %v2655 = vmul.f32 %v2527, %v2591
  %v2656 = vmul.f32 %v2528, %v2592
  %v2657 = vmul.f32 %v2529, %v2593
  %v2658 = vmul.f32 %v2530, %v2594
  %v2659 = vmul.f32 %v2531, %v2595
  %v2660 = vmul.f32 %v2532, %v2596
  %v2661 = vmul.f32 %v2533, %v2597
  %v2662 = vmul.f32 %v2534, %v2598
  %v2663 = vmul.f32 %v2535, %v2599
  %v2664 = vmul.f32 %v2536, %v2600
  %v2665 = vmul.f32 %v2537, %v2601
  %v2666 = vmul.f32 %v2538, %v2602
  %v2667 = vmul.f32 %v2539, %v2603
  %v2668 = vmul.f32 %v2540, %v2604
  %v2669 = vmul.f32 %v2541, %v2605
  %v2670 = vmul.f32 %v2542, %v2606
  %v2671 = vmul.f32 %v2543, %v2607
  %v2672 = vmul.f32 %v2544, %v2608
  %v2673 = vmul.f32 %v2545, %v2609
  %v2674 = vmul.f32 %v2546, %v2610
  %v2675 = vmul.f32 %v2547, %v2611
  %v2676 = vmul.f32 %v2548, %v2612
  %v2677 = vmul.f32 %v2549, %v2613
  %v2678 = vmul.f32 %v2550, %v2614
  %v2679 = vmul.f32 %v2551, %v2615
  %v2680 = vmul.f32 %v2552, %v2616
  %v2681 = vmul.f32 %v2553, %v2617
  %v2682 = vmul.f32 %v2554, %v2618
  %v2683 = vmul.f32 %v2555, %v2619
  %v2684 = vmul.f32 %v2556, %v2620
  %v2685 = vmul.f32 %v2557, %v2621
  %v2686 = vmul.f32 %v2558, %v2622
  %v2687 = vmul.f32 %v2559, %v2623
  %v2688 = vmul.f32 %v2560, %v2624
  %v2689 = vmul.f32 %v2561, %v2625
  %v2690 = vmul.f32 %v2562, %v2626
  %v2691 = vmul.f32 %v2563, %v2627
  %v2692 = vmul.f32 %v2564, %v2628
  %v2693 = vmul.f32 %v2565, %v2629
  %v2694 = vmul.f32 %v2566, %v2630
  %v2695 = vmul.f32 %v2567, %v2631
  %v2696 = vmul.f32 %v2568, %v2632
  %v2697 = vmul.f32 %v2569, %v2633
  %v2698 = vmul.f32 %v2570, %v2634
  %v2699 = vmul.f32 %v2571, %v2635
  %v2700 = vmul.f32 %v2572, %v2636
  %v2701 = vmul.f32 %v2573, %v2637
  %v2702 = vmul.f32 %v2574, %v2638
  %v2703 = vmul.f32 %v2575, %v2639
  %v2704 = vmul.f32 %v2576, %v2640
  %v2705 = vmul.f32 %v2577, %v2641
  %v2706 = vmul.f32 %v2578, %v2642
  %v2707 = vmul.f32 %v2579, %v2643
  %v2708 = vmul.f32 %v2580, %v2644
  %v2709 = vmul.f32 %v2581, %v2645
  %v2710 = vmul.f32 %v2582, %v2646
  %v2711 = vmul.f32 %v2583, %v2647
  %v2712 = vmul.f32 %v2584, %v2648
  %v2713 = vmul.f32 %v2585, %v2649
  %v2714 = vmul.f32 %v2586, %v2650
  %v2715 = vmul.f32 %v2587, %v2651
  %v2716 = vld [vmem:[%s1] sm:$0xff]
  %v2717 = vld [vmem:[%s1 + $0x8] sm:$0xff]
  %v2718 = vld [vmem:[%s1 + $0x10] sm:$0xff]
  %v2719 = vld [vmem:[%s1 + $0x18] sm:$0xff]
  %v2720 = vld [vmem:[%s1 + $0x20] sm:$0xff]
  %v2721 = vld [vmem:[%s1 + $0x28] sm:$0xff]
  %v2722 = vld [vmem:[%s1 + $0x30] sm:$0xff]
  %v2723 = vld [vmem:[%s1 + $0x38] sm:$0xff]
  %v2724 = vld [vmem:[%s1 + $0x40] sm:$0xff]
  %vm2725 = vcmask 588800
  %v2727 = vsel %vm2725, %v2652, 0
  %v2730 = vsel %vm2725, %v2653, 0
  %v2733 = vsel %vm2725, %v2654, 0
  %v2736 = vsel %vm2725, %v2655, 0
  %v2739 = vsel %vm2725, %v2656, 0
  %v2742 = vsel %vm2725, %v2657, 0
  %v2745 = vsel %vm2725, %v2658, 0
  %v2748 = vsel %vm2725, %v2659, 0
  %v2751 = vsel %vm2725, %v2660, 0
  %v2754 = vsel %vm2725, %v2661, 0
  %v2757 = vsel %vm2725, %v2662, 0
  %v2760 = vsel %vm2725, %v2663, 0
  %v2763 = vsel %vm2725, %v2664, 0
  %v2766 = vsel %vm2725, %v2665, 0
  %v2769 = vsel %vm2725, %v2666, 0
  %v2772 = vsel %vm2725, %v2667, 0
  %v2775 = vsel %vm2725, %v2668, 0
  %v2778 = vsel %vm2725, %v2669, 0
  %v2781 = vsel %vm2725, %v2670, 0
  %v2784 = vsel %vm2725, %v2671, 0
  %v2787 = vsel %vm2725, %v2672, 0
  %v2790 = vsel %vm2725, %v2673, 0
  %v2793 = vsel %vm2725, %v2674, 0
  %v2796 = vsel %vm2725, %v2675, 0
  %v2799 = vsel %vm2725, %v2676, 0
  %v2802 = vsel %vm2725, %v2677, 0
  %v2805 = vsel %vm2725, %v2678, 0
  %v2808 = vsel %vm2725, %v2679, 0
  %v2811 = vsel %vm2725, %v2680, 0
  %v2814 = vsel %vm2725, %v2681, 0
  %v2817 = vsel %vm2725, %v2682, 0
  %v2820 = vsel %vm2725, %v2683, 0
  %v2823 = vsel %vm2725, %v2684, 0
  %v2826 = vsel %vm2725, %v2685, 0
  %v2829 = vsel %vm2725, %v2686, 0
  %v2832 = vsel %vm2725, %v2687, 0
  %v2835 = vsel %vm2725, %v2688, 0
  %v2838 = vsel %vm2725, %v2689, 0
  %v2841 = vsel %vm2725, %v2690, 0
  %v2844 = vsel %vm2725, %v2691, 0
  %v2847 = vsel %vm2725, %v2692, 0
  %v2850 = vsel %vm2725, %v2693, 0
  %v2853 = vsel %vm2725, %v2694, 0
  %v2856 = vsel %vm2725, %v2695, 0
  %v2859 = vsel %vm2725, %v2696, 0
  %v2862 = vsel %vm2725, %v2697, 0
  %v2865 = vsel %vm2725, %v2698, 0
  %v2868 = vsel %vm2725, %v2699, 0
  %v2871 = vsel %vm2725, %v2700, 0
  %v2874 = vsel %vm2725, %v2701, 0
  %v2877 = vsel %vm2725, %v2702, 0
  %v2880 = vsel %vm2725, %v2703, 0
  %v2883 = vsel %vm2725, %v2704, 0
  %v2886 = vsel %vm2725, %v2705, 0
  %v2889 = vsel %vm2725, %v2706, 0
  %v2892 = vsel %vm2725, %v2707, 0
  %v2895 = vsel %vm2725, %v2708, 0
  %v2898 = vsel %vm2725, %v2709, 0
  %v2901 = vsel %vm2725, %v2710, 0
  %v2904 = vsel %vm2725, %v2711, 0
  %v2907 = vsel %vm2725, %v2712, 0
  %v2910 = vsel %vm2725, %v2713, 0
  %v2913 = vsel %vm2725, %v2714, 0
  %v2916 = vsel %vm2725, %v2715, 0
  %2918 = vmatpush.msra.mxu0 0.0
  %2919 = vmatpush.msra.mxu0 0.0
  %2920 = vmatpush.msra.mxu0 0.0
  %2921 = vmatpush.msra.mxu0 0.0
  %2922 = vmatpush.msra.mxu0 0.0
  %2923 = vmatpush.msra.mxu0 0.0
  %2924 = vmatpush.msra.mxu0 0.0
  %2925 = vmatpush.msra.mxu0 %v2724
  %2926 = vmatpush.msra.mxu0 %v2723
  %2927 = vmatpush.msra.mxu0 %v2722
  %2928 = vmatpush.msra.mxu0 %v2721
  %2929 = vmatpush.msra.mxu0 %v2720
  %2930 = vmatpush.msra.mxu0 %v2719
  %2931 = vmatpush.msra.mxu0 %v2718
  %2932 = vmatpush.msra.mxu0 %v2717
  %2933 = vmatpush.msra.mxu0 %v2716
  %2934 = vmatmul.f32.gmra.mxu0 %v2727
  %v2935 = vpop.f32.mrf.mxu0
  %v2936 = vadd.f32 0.0, %v2935
  %2937 = vmatmul.f32.gmra.mxu0 %v2730
  %v2938 = vpop.f32.mrf.mxu0
  %v2939 = vadd.f32 0.0, %v2938
  %2940 = vmatmul.f32.gmra.mxu0 %v2733
  %v2941 = vpop.f32.mrf.mxu0
  %v2942 = vadd.f32 0.0, %v2941
  %2943 = vmatmul.f32.gmra.mxu0 %v2736
  %v2944 = vpop.f32.mrf.mxu0
  %v2945 = vadd.f32 0.0, %v2944
  %2946 = vmatmul.f32.gmra.mxu0 %v2739
  %v2947 = vpop.f32.mrf.mxu0
  %v2948 = vadd.f32 0.0, %v2947
  %2949 = vmatmul.f32.gmra.mxu0 %v2742
  %v2950 = vpop.f32.mrf.mxu0
  %v2951 = vadd.f32 0.0, %v2950
  %2952 = vmatmul.f32.gmra.mxu0 %v2745
  %v2953 = vpop.f32.mrf.mxu0
  %v2954 = vadd.f32 0.0, %v2953
  %2955 = vmatmul.f32.gmra.mxu0 %v2748
  %v2956 = vpop.f32.mrf.mxu0
  %v2957 = vadd.f32 0.0, %v2956
  %2958 = vmatmul.f32.gmra.mxu0 %v2751
  %v2959 = vpop.f32.mrf.mxu0
  %v2960 = vadd.f32 0.0, %v2959
  %2961 = vmatmul.f32.gmra.mxu0 %v2754
  %v2962 = vpop.f32.mrf.mxu0
  %v2963 = vadd.f32 0.0, %v2962
  %2964 = vmatmul.f32.gmra.mxu0 %v2757
  %v2965 = vpop.f32.mrf.mxu0
  %v2966 = vadd.f32 0.0, %v2965
  %2967 = vmatmul.f32.gmra.mxu0 %v2760
  %v2968 = vpop.f32.mrf.mxu0
  %v2969 = vadd.f32 0.0, %v2968
  %2970 = vmatmul.f32.gmra.mxu0 %v2763
  %v2971 = vpop.f32.mrf.mxu0
  %v2972 = vadd.f32 0.0, %v2971
  %2973 = vmatmul.f32.gmra.mxu0 %v2766
  %v2974 = vpop.f32.mrf.mxu0
  %v2975 = vadd.f32 0.0, %v2974
  %2976 = vmatmul.f32.gmra.mxu0 %v2769
  %v2977 = vpop.f32.mrf.mxu0
  %v2978 = vadd.f32 0.0, %v2977
  %2979 = vmatmul.f32.gmra.mxu0 %v2772
  %v2980 = vpop.f32.mrf.mxu0
  %v2981 = vadd.f32 0.0, %v2980
  %2982 = vmatmul.f32.gmra.mxu0 %v2775
  %v2983 = vpop.f32.mrf.mxu0
  %v2984 = vadd.f32 0.0, %v2983
  %2985 = vmatmul.f32.gmra.mxu0 %v2778
  %v2986 = vpop.f32.mrf.mxu0
  %v2987 = vadd.f32 0.0, %v2986
  %2988 = vmatmul.f32.gmra.mxu0 %v2781
  %v2989 = vpop.f32.mrf.mxu0
  %v2990 = vadd.f32 0.0, %v2989
  %2991 = vmatmul.f32.gmra.mxu0 %v2784
  %v2992 = vpop.f32.mrf.mxu0
  %v2993 = vadd.f32 0.0, %v2992
  %2994 = vmatmul.f32.gmra.mxu0 %v2787
  %v2995 = vpop.f32.mrf.mxu0
  %v2996 = vadd.f32 0.0, %v2995
  %2997 = vmatmul.f32.gmra.mxu0 %v2790
  %v2998 = vpop.f32.mrf.mxu0
  %v2999 = vadd.f32 0.0, %v2998
  %3000 = vmatmul.f32.gmra.mxu0 %v2793
  %v3001 = vpop.f32.mrf.mxu0
  %v3002 = vadd.f32 0.0, %v3001
  %3003 = vmatmul.f32.gmra.mxu0 %v2796
  %v3004 = vpop.f32.mrf.mxu0
  %v3005 = vadd.f32 0.0, %v3004
  %3006 = vmatmul.f32.gmra.mxu0 %v2799
  %v3007 = vpop.f32.mrf.mxu0
  %v3008 = vadd.f32 0.0, %v3007
  %3009 = vmatmul.f32.gmra.mxu0 %v2802
  %v3010 = vpop.f32.mrf.mxu0
  %v3011 = vadd.f32 0.0, %v3010
  %3012 = vmatmul.f32.gmra.mxu0 %v2805
  %v3013 = vpop.f32.mrf.mxu0
  %v3014 = vadd.f32 0.0, %v3013
  %3015 = vmatmul.f32.gmra.mxu0 %v2808
  %v3016 = vpop.f32.mrf.mxu0
  %v3017 = vadd.f32 0.0, %v3016
  %3018 = vmatmul.f32.gmra.mxu0 %v2811
  %v3019 = vpop.f32.mrf.mxu0
  %v3020 = vadd.f32 0.0, %v3019
  %3021 = vmatmul.f32.gmra.mxu0 %v2814
  %v3022 = vpop.f32.mrf.mxu0
  %v3023 = vadd.f32 0.0, %v3022
  %3024 = vmatmul.f32.gmra.mxu0 %v2817
  %v3025 = vpop.f32.mrf.mxu0
  %v3026 = vadd.f32 0.0, %v3025
  %3027 = vmatmul.f32.gmra.mxu0 %v2820
  %v3028 = vpop.f32.mrf.mxu0
  %v3029 = vadd.f32 0.0, %v3028
  %3030 = vmatmul.f32.gmra.mxu0 %v2823
  %v3031 = vpop.f32.mrf.mxu0
  %v3032 = vadd.f32 0.0, %v3031
  %3033 = vmatmul.f32.gmra.mxu0 %v2826
  %v3034 = vpop.f32.mrf.mxu0
  %v3035 = vadd.f32 0.0, %v3034
  %3036 = vmatmul.f32.gmra.mxu0 %v2829
  %v3037 = vpop.f32.mrf.mxu0
  %v3038 = vadd.f32 0.0, %v3037
  %3039 = vmatmul.f32.gmra.mxu0 %v2832
  %v3040 = vpop.f32.mrf.mxu0
  %v3041 = vadd.f32 0.0, %v3040
  %3042 = vmatmul.f32.gmra.mxu0 %v2835
  %v3043 = vpop.f32.mrf.mxu0
  %v3044 = vadd.f32 0.0, %v3043
  %3045 = vmatmul.f32.gmra.mxu0 %v2838
  %v3046 = vpop.f32.mrf.mxu0
  %v3047 = vadd.f32 0.0, %v3046
  %3048 = vmatmul.f32.gmra.mxu0 %v2841
  %v3049 = vpop.f32.mrf.mxu0
  %v3050 = vadd.f32 0.0, %v3049
  %3051 = vmatmul.f32.gmra.mxu0 %v2844
  %v3052 = vpop.f32.mrf.mxu0
  %v3053 = vadd.f32 0.0, %v3052
  %3054 = vmatmul.f32.gmra.mxu0 %v2847
  %v3055 = vpop.f32.mrf.mxu0
  %v3056 = vadd.f32 0.0, %v3055
  %3057 = vmatmul.f32.gmra.mxu0 %v2850
  %v3058 = vpop.f32.mrf.mxu0
  %v3059 = vadd.f32 0.0, %v3058
  %3060 = vmatmul.f32.gmra.mxu0 %v2853
  %v3061 = vpop.f32.mrf.mxu0
  %v3062 = vadd.f32 0.0, %v3061
  %3063 = vmatmul.f32.gmra.mxu0 %v2856
  %v3064 = vpop.f32.mrf.mxu0
  %v3065 = vadd.f32 0.0, %v3064
  %3066 = vmatmul.f32.gmra.mxu0 %v2859
  %v3067 = vpop.f32.mrf.mxu0
  %v3068 = vadd.f32 0.0, %v3067
  %3069 = vmatmul.f32.gmra.mxu0 %v2862
  %v3070 = vpop.f32.mrf.mxu0
  %v3071 = vadd.f32 0.0, %v3070
  %3072 = vmatmul.f32.gmra.mxu0 %v2865
  %v3073 = vpop.f32.mrf.mxu0
  %v3074 = vadd.f32 0.0, %v3073
  %3075 = vmatmul.f32.gmra.mxu0 %v2868
  %v3076 = vpop.f32.mrf.mxu0
  %v3077 = vadd.f32 0.0, %v3076
  %3078 = vmatmul.f32.gmra.mxu0 %v2871
  %v3079 = vpop.f32.mrf.mxu0
  %v3080 = vadd.f32 0.0, %v3079
  %3081 = vmatmul.f32.gmra.mxu0 %v2874
  %v3082 = vpop.f32.mrf.mxu0
  %v3083 = vadd.f32 0.0, %v3082
  %3084 = vmatmul.f32.gmra.mxu0 %v2877
  %v3085 = vpop.f32.mrf.mxu0
  %v3086 = vadd.f32 0.0, %v3085
  %3087 = vmatmul.f32.gmra.mxu0 %v2880
  %v3088 = vpop.f32.mrf.mxu0
  %v3089 = vadd.f32 0.0, %v3088
  %3090 = vmatmul.f32.gmra.mxu0 %v2883
  %v3091 = vpop.f32.mrf.mxu0
  %v3092 = vadd.f32 0.0, %v3091
  %3093 = vmatmul.f32.gmra.mxu0 %v2886
  %v3094 = vpop.f32.mrf.mxu0
  %v3095 = vadd.f32 0.0, %v3094
  %3096 = vmatmul.f32.gmra.mxu0 %v2889
  %v3097 = vpop.f32.mrf.mxu0
  %v3098 = vadd.f32 0.0, %v3097
  %3099 = vmatmul.f32.gmra.mxu0 %v2892
  %v3100 = vpop.f32.mrf.mxu0
  %v3101 = vadd.f32 0.0, %v3100
  %3102 = vmatmul.f32.gmra.mxu0 %v2895
  %v3103 = vpop.f32.mrf.mxu0
  %v3104 = vadd.f32 0.0, %v3103
  %3105 = vmatmul.f32.gmra.mxu0 %v2898
  %v3106 = vpop.f32.mrf.mxu0
  %v3107 = vadd.f32 0.0, %v3106
  %3108 = vmatmul.f32.gmra.mxu0 %v2901
  %v3109 = vpop.f32.mrf.mxu0
  %v3110 = vadd.f32 0.0, %v3109
  %3111 = vmatmul.f32.gmra.mxu0 %v2904
  %v3112 = vpop.f32.mrf.mxu0
  %v3113 = vadd.f32 0.0, %v3112
  %3114 = vmatmul.f32.gmra.mxu0 %v2907
  %v3115 = vpop.f32.mrf.mxu0
  %v3116 = vadd.f32 0.0, %v3115
  %3117 = vmatmul.f32.gmra.mxu0 %v2910
  %v3118 = vpop.f32.mrf.mxu0
  %v3119 = vadd.f32 0.0, %v3118
  %3120 = vmatmul.f32.gmra.mxu0 %v2913
  %v3121 = vpop.f32.mrf.mxu0
  %v3122 = vadd.f32 0.0, %v3121
  %3123 = vmatmul.f32.gmra.mxu0 %v2916
  %v3124 = vpop.f32.mrf.mxu0
  %v3125 = vadd.f32 0.0, %v3124
  %3126 = vdwg.mxu0
  %3127 = vst.msk [vmem:[%s3] sm:$0xff] %vm2068, %v2936
  %3128 = vst.msk [vmem:[%s3 + $0x8] sm:$0xff] %vm2068, %v2939
  %3129 = vst.msk [vmem:[%s3 + $0x10] sm:$0xff] %vm2068, %v2942
  %3130 = vst.msk [vmem:[%s3 + $0x18] sm:$0xff] %vm2068, %v2945
  %3131 = vst.msk [vmem:[%s3 + $0x20] sm:$0xff] %vm2068, %v2948
  %3132 = vst.msk [vmem:[%s3 + $0x28] sm:$0xff] %vm2068, %v2951
  %3133 = vst.msk [vmem:[%s3 + $0x30] sm:$0xff] %vm2068, %v2954
  %3134 = vst.msk [vmem:[%s3 + $0x38] sm:$0xff] %vm2068, %v2957
  %3135 = vst.msk [vmem:[%s3 + $0x40] sm:$0xff] %vm2068, %v2960
  %3136 = vst.msk [vmem:[%s3 + $0x48] sm:$0xff] %vm2068, %v2963
  %3137 = vst.msk [vmem:[%s3 + $0x50] sm:$0xff] %vm2068, %v2966
  %3138 = vst.msk [vmem:[%s3 + $0x58] sm:$0xff] %vm2068, %v2969
  %3139 = vst.msk [vmem:[%s3 + $0x60] sm:$0xff] %vm2068, %v2972
  %3140 = vst.msk [vmem:[%s3 + $0x68] sm:$0xff] %vm2068, %v2975
  %3141 = vst.msk [vmem:[%s3 + $0x70] sm:$0xff] %vm2068, %v2978
  %3142 = vst.msk [vmem:[%s3 + $0x78] sm:$0xff] %vm2068, %v2981
  %3143 = vst.msk [vmem:[%s3 + $0x80] sm:$0xff] %vm2068, %v2984
  %3144 = vst.msk [vmem:[%s3 + $0x88] sm:$0xff] %vm2068, %v2987
  %3145 = vst.msk [vmem:[%s3 + $0x90] sm:$0xff] %vm2068, %v2990
  %3146 = vst.msk [vmem:[%s3 + $0x98] sm:$0xff] %vm2068, %v2993
  %3147 = vst.msk [vmem:[%s3 + $0xa0] sm:$0xff] %vm2068, %v2996
  %3148 = vst.msk [vmem:[%s3 + $0xa8] sm:$0xff] %vm2068, %v2999
  %3149 = vst.msk [vmem:[%s3 + $0xb0] sm:$0xff] %vm2068, %v3002
  %3150 = vst.msk [vmem:[%s3 + $0xb8] sm:$0xff] %vm2068, %v3005
  %3151 = vst.msk [vmem:[%s3 + $0xc0] sm:$0xff] %vm2068, %v3008
  %3152 = vst.msk [vmem:[%s3 + $0xc8] sm:$0xff] %vm2068, %v3011
  %3153 = vst.msk [vmem:[%s3 + $0xd0] sm:$0xff] %vm2068, %v3014
  %3154 = vst.msk [vmem:[%s3 + $0xd8] sm:$0xff] %vm2068, %v3017
  %3155 = vst.msk [vmem:[%s3 + $0xe0] sm:$0xff] %vm2068, %v3020
  %3156 = vst.msk [vmem:[%s3 + $0xe8] sm:$0xff] %vm2068, %v3023
  %3157 = vst.msk [vmem:[%s3 + $0xf0] sm:$0xff] %vm2068, %v3026
  %3158 = vst.msk [vmem:[%s3 + $0xf8] sm:$0xff] %vm2068, %v3029
  %3159 = vst.msk [vmem:[%s3 + $0x100] sm:$0xff] %vm2068, %v3032
  %3160 = vst.msk [vmem:[%s3 + $0x108] sm:$0xff] %vm2068, %v3035
  %3161 = vst.msk [vmem:[%s3 + $0x110] sm:$0xff] %vm2068, %v3038
  %3162 = vst.msk [vmem:[%s3 + $0x118] sm:$0xff] %vm2068, %v3041
  %3163 = vst.msk [vmem:[%s3 + $0x120] sm:$0xff] %vm2068, %v3044
  %3164 = vst.msk [vmem:[%s3 + $0x128] sm:$0xff] %vm2068, %v3047
  %3165 = vst.msk [vmem:[%s3 + $0x130] sm:$0xff] %vm2068, %v3050
  %3166 = vst.msk [vmem:[%s3 + $0x138] sm:$0xff] %vm2068, %v3053
  %3167 = vst.msk [vmem:[%s3 + $0x140] sm:$0xff] %vm2068, %v3056
  %3168 = vst.msk [vmem:[%s3 + $0x148] sm:$0xff] %vm2068, %v3059
  %3169 = vst.msk [vmem:[%s3 + $0x150] sm:$0xff] %vm2068, %v3062
  %3170 = vst.msk [vmem:[%s3 + $0x158] sm:$0xff] %vm2068, %v3065
  %3171 = vst.msk [vmem:[%s3 + $0x160] sm:$0xff] %vm2068, %v3068
  %3172 = vst.msk [vmem:[%s3 + $0x168] sm:$0xff] %vm2068, %v3071
  %3173 = vst.msk [vmem:[%s3 + $0x170] sm:$0xff] %vm2068, %v3074
  %3174 = vst.msk [vmem:[%s3 + $0x178] sm:$0xff] %vm2068, %v3077
  %3175 = vst.msk [vmem:[%s3 + $0x180] sm:$0xff] %vm2068, %v3080
  %3176 = vst.msk [vmem:[%s3 + $0x188] sm:$0xff] %vm2068, %v3083
  %3177 = vst.msk [vmem:[%s3 + $0x190] sm:$0xff] %vm2068, %v3086
  %3178 = vst.msk [vmem:[%s3 + $0x198] sm:$0xff] %vm2068, %v3089
  %3179 = vst.msk [vmem:[%s3 + $0x1a0] sm:$0xff] %vm2068, %v3092
  %3180 = vst.msk [vmem:[%s3 + $0x1a8] sm:$0xff] %vm2068, %v3095
  %3181 = vst.msk [vmem:[%s3 + $0x1b0] sm:$0xff] %vm2068, %v3098
  %3182 = vst.msk [vmem:[%s3 + $0x1b8] sm:$0xff] %vm2068, %v3101
  %3183 = vst.msk [vmem:[%s3 + $0x1c0] sm:$0xff] %vm2068, %v3104
  %3184 = vst.msk [vmem:[%s3 + $0x1c8] sm:$0xff] %vm2068, %v3107
  %3185 = vst.msk [vmem:[%s3 + $0x1d0] sm:$0xff] %vm2068, %v3110
  %3186 = vst.msk [vmem:[%s3 + $0x1d8] sm:$0xff] %vm2068, %v3113
  %3187 = vst.msk [vmem:[%s3 + $0x1e0] sm:$0xff] %vm2068, %v3116
  %3188 = vst.msk [vmem:[%s3 + $0x1e8] sm:$0xff] %vm2068, %v3119
  %3189 = vst.msk [vmem:[%s3 + $0x1f0] sm:$0xff] %vm2068, %v3122
  %3190 = vst.msk [vmem:[%s3 + $0x1f8] sm:$0xff] %vm2068, %v3125
  %v3191 = vsel %vm2068, %v2936, 0.0
  %v3192 = vsel %vm2068, %v2939, 0.0
  %v3193 = vadd.f32 %v3191, %v3192
  %v3194 = vsel %vm2068, %v2942, 0.0
  %v3195 = vadd.f32 %v3193, %v3194
  %v3196 = vsel %vm2068, %v2945, 0.0
  %v3197 = vadd.f32 %v3195, %v3196
  %v3198 = vsel %vm2068, %v2948, 0.0
  %v3199 = vadd.f32 %v3197, %v3198
  %v3200 = vsel %vm2068, %v2951, 0.0
  %v3201 = vadd.f32 %v3199, %v3200
  %v3202 = vsel %vm2068, %v2954, 0.0
  %v3203 = vadd.f32 %v3201, %v3202
  %v3204 = vsel %vm2068, %v2957, 0.0
  %v3205 = vadd.f32 %v3203, %v3204
  %v3206 = vsel %vm2068, %v2960, 0.0
  %v3207 = vadd.f32 %v3205, %v3206
  %v3208 = vsel %vm2068, %v2963, 0.0
  %v3209 = vadd.f32 %v3207, %v3208
  %v3210 = vsel %vm2068, %v2966, 0.0
  %v3211 = vadd.f32 %v3209, %v3210
  %v3212 = vsel %vm2068, %v2969, 0.0
  %v3213 = vadd.f32 %v3211, %v3212
  %v3214 = vsel %vm2068, %v2972, 0.0
  %v3215 = vadd.f32 %v3213, %v3214
  %v3216 = vsel %vm2068, %v2975, 0.0
  %v3217 = vadd.f32 %v3215, %v3216
  %v3218 = vsel %vm2068, %v2978, 0.0
  %v3219 = vadd.f32 %v3217, %v3218
  %v3220 = vsel %vm2068, %v2981, 0.0
  %v3221 = vadd.f32 %v3219, %v3220
  %v3222 = vsel %vm2068, %v2984, 0.0
  %v3223 = vadd.f32 %v3221, %v3222
  %v3224 = vsel %vm2068, %v2987, 0.0
  %v3225 = vadd.f32 %v3223, %v3224
  %v3226 = vsel %vm2068, %v2990, 0.0
  %v3227 = vadd.f32 %v3225, %v3226
  %v3228 = vsel %vm2068, %v2993, 0.0
  %v3229 = vadd.f32 %v3227, %v3228
  %v3230 = vsel %vm2068, %v2996, 0.0
  %v3231 = vadd.f32 %v3229, %v3230
  %v3232 = vsel %vm2068, %v2999, 0.0
  %v3233 = vadd.f32 %v3231, %v3232
  %v3234 = vsel %vm2068, %v3002, 0.0
  %v3235 = vadd.f32 %v3233, %v3234
  %v3236 = vsel %vm2068, %v3005, 0.0
  %v3237 = vadd.f32 %v3235, %v3236
  %v3238 = vsel %vm2068, %v3008, 0.0
  %v3239 = vadd.f32 %v3237, %v3238
  %v3240 = vsel %vm2068, %v3011, 0.0
  %v3241 = vadd.f32 %v3239, %v3240
  %v3242 = vsel %vm2068, %v3014, 0.0
  %v3243 = vadd.f32 %v3241, %v3242
  %v3244 = vsel %vm2068, %v3017, 0.0
  %v3245 = vadd.f32 %v3243, %v3244
  %v3246 = vsel %vm2068, %v3020, 0.0
  %v3247 = vadd.f32 %v3245, %v3246
  %v3248 = vsel %vm2068, %v3023, 0.0
  %v3249 = vadd.f32 %v3247, %v3248
  %v3250 = vsel %vm2068, %v3026, 0.0
  %v3251 = vadd.f32 %v3249, %v3250
  %v3252 = vsel %vm2068, %v3029, 0.0
  %v3253 = vadd.f32 %v3251, %v3252
  %v3254 = vsel %vm2068, %v3032, 0.0
  %v3255 = vadd.f32 %v3253, %v3254
  %v3256 = vsel %vm2068, %v3035, 0.0
  %v3257 = vadd.f32 %v3255, %v3256
  %v3258 = vsel %vm2068, %v3038, 0.0
  %v3259 = vadd.f32 %v3257, %v3258
  %v3260 = vsel %vm2068, %v3041, 0.0
  %v3261 = vadd.f32 %v3259, %v3260
  %v3262 = vsel %vm2068, %v3044, 0.0
  %v3263 = vadd.f32 %v3261, %v3262
  %v3264 = vsel %vm2068, %v3047, 0.0
  %v3265 = vadd.f32 %v3263, %v3264
  %v3266 = vsel %vm2068, %v3050, 0.0
  %v3267 = vadd.f32 %v3265, %v3266
  %v3268 = vsel %vm2068, %v3053, 0.0
  %v3269 = vadd.f32 %v3267, %v3268
  %v3270 = vsel %vm2068, %v3056, 0.0
  %v3271 = vadd.f32 %v3269, %v3270
  %v3272 = vsel %vm2068, %v3059, 0.0
  %v3273 = vadd.f32 %v3271, %v3272
  %v3274 = vsel %vm2068, %v3062, 0.0
  %v3275 = vadd.f32 %v3273, %v3274
  %v3276 = vsel %vm2068, %v3065, 0.0
  %v3277 = vadd.f32 %v3275, %v3276
  %v3278 = vsel %vm2068, %v3068, 0.0
  %v3279 = vadd.f32 %v3277, %v3278
  %v3280 = vsel %vm2068, %v3071, 0.0
  %v3281 = vadd.f32 %v3279, %v3280
  %v3282 = vsel %vm2068, %v3074, 0.0
  %v3283 = vadd.f32 %v3281, %v3282
  %v3284 = vsel %vm2068, %v3077, 0.0
  %v3285 = vadd.f32 %v3283, %v3284
  %v3286 = vsel %vm2068, %v3080, 0.0
  %v3287 = vadd.f32 %v3285, %v3286
  %v3288 = vsel %vm2068, %v3083, 0.0
  %v3289 = vadd.f32 %v3287, %v3288
  %v3290 = vsel %vm2068, %v3086, 0.0
  %v3291 = vadd.f32 %v3289, %v3290
  %v3292 = vsel %vm2068, %v3089, 0.0
  %v3293 = vadd.f32 %v3291, %v3292
  %v3294 = vsel %vm2068, %v3092, 0.0
  %v3295 = vadd.f32 %v3293, %v3294
  %v3296 = vsel %vm2068, %v3095, 0.0
  %v3297 = vadd.f32 %v3295, %v3296
  %v3298 = vsel %vm2068, %v3098, 0.0
  %v3299 = vadd.f32 %v3297, %v3298
  %v3300 = vsel %vm2068, %v3101, 0.0
  %v3301 = vadd.f32 %v3299, %v3300
  %v3302 = vsel %vm2068, %v3104, 0.0
  %v3303 = vadd.f32 %v3301, %v3302
  %v3304 = vsel %vm2068, %v3107, 0.0
  %v3305 = vadd.f32 %v3303, %v3304
  %v3306 = vsel %vm2068, %v3110, 0.0
  %v3307 = vadd.f32 %v3305, %v3306
  %v3308 = vsel %vm2068, %v3113, 0.0
  %v3309 = vadd.f32 %v3307, %v3308
  %v3310 = vsel %vm2068, %v3116, 0.0
  %v3311 = vadd.f32 %v3309, %v3310
  %v3312 = vsel %vm2068, %v3119, 0.0
  %v3313 = vadd.f32 %v3311, %v3312
  %v3314 = vsel %vm2068, %v3122, 0.0
  %v3315 = vadd.f32 %v3313, %v3314
  %v3316 = vsel %vm2068, %v3125, 0.0
  %v3317 = vadd.f32 %v3315, %v3316
  %v3318 = vrot.slane %v3317, 4
  %v3319 = vadd.f32 %v3317, %v3318
  %v3320 = vrot.slane %v3319, 2
  %v3321 = vadd.f32 %v3319, %v3320
  %v3322 = vrot.slane %v3321, 1
  %v3323 = vadd.f32 %v3321, %v3322
  %v3324 = vmul.f32 %v2936, %v2936
  %v3325 = vmul.f32 %v2939, %v2939
  %v3326 = vmul.f32 %v2942, %v2942
  %v3327 = vmul.f32 %v2945, %v2945
  %v3328 = vmul.f32 %v2948, %v2948
  %v3329 = vmul.f32 %v2951, %v2951
  %v3330 = vmul.f32 %v2954, %v2954
  %v3331 = vmul.f32 %v2957, %v2957
  %v3332 = vmul.f32 %v2960, %v2960
  %v3333 = vmul.f32 %v2963, %v2963
  %v3334 = vmul.f32 %v2966, %v2966
  %v3335 = vmul.f32 %v2969, %v2969
  %v3336 = vmul.f32 %v2972, %v2972
  %v3337 = vmul.f32 %v2975, %v2975
  %v3338 = vmul.f32 %v2978, %v2978
  %v3339 = vmul.f32 %v2981, %v2981
  %v3340 = vmul.f32 %v2984, %v2984
  %v3341 = vmul.f32 %v2987, %v2987
  %v3342 = vmul.f32 %v2990, %v2990
  %v3343 = vmul.f32 %v2993, %v2993
  %v3344 = vmul.f32 %v2996, %v2996
  %v3345 = vmul.f32 %v2999, %v2999
  %v3346 = vmul.f32 %v3002, %v3002
  %v3347 = vmul.f32 %v3005, %v3005
  %v3348 = vmul.f32 %v3008, %v3008
  %v3349 = vmul.f32 %v3011, %v3011
  %v3350 = vmul.f32 %v3014, %v3014
  %v3351 = vmul.f32 %v3017, %v3017
  %v3352 = vmul.f32 %v3020, %v3020
  %v3353 = vmul.f32 %v3023, %v3023
  %v3354 = vmul.f32 %v3026, %v3026
  %v3355 = vmul.f32 %v3029, %v3029
  %v3356 = vmul.f32 %v3032, %v3032
  %v3357 = vmul.f32 %v3035, %v3035
  %v3358 = vmul.f32 %v3038, %v3038
  %v3359 = vmul.f32 %v3041, %v3041
  %v3360 = vmul.f32 %v3044, %v3044
  %v3361 = vmul.f32 %v3047, %v3047
  %v3362 = vmul.f32 %v3050, %v3050
  %v3363 = vmul.f32 %v3053, %v3053
  %v3364 = vmul.f32 %v3056, %v3056
  %v3365 = vmul.f32 %v3059, %v3059
  %v3366 = vmul.f32 %v3062, %v3062
  %v3367 = vmul.f32 %v3065, %v3065
  %v3368 = vmul.f32 %v3068, %v3068
  %v3369 = vmul.f32 %v3071, %v3071
  %v3370 = vmul.f32 %v3074, %v3074
  %v3371 = vmul.f32 %v3077, %v3077
  %v3372 = vmul.f32 %v3080, %v3080
  %v3373 = vmul.f32 %v3083, %v3083
  %v3374 = vmul.f32 %v3086, %v3086
  %v3375 = vmul.f32 %v3089, %v3089
  %v3376 = vmul.f32 %v3092, %v3092
  %v3377 = vmul.f32 %v3095, %v3095
  %v3378 = vmul.f32 %v3098, %v3098
  %v3379 = vmul.f32 %v3101, %v3101
  %v3380 = vmul.f32 %v3104, %v3104
  %v3381 = vmul.f32 %v3107, %v3107
  %v3382 = vmul.f32 %v3110, %v3110
  %v3383 = vmul.f32 %v3113, %v3113
  %v3384 = vmul.f32 %v3116, %v3116
  %v3385 = vmul.f32 %v3119, %v3119
  %v3386 = vmul.f32 %v3122, %v3122
  %v3387 = vmul.f32 %v3125, %v3125
  %v3388 = vsel %vm2068, %v3324, 0.0
  %v3389 = vsel %vm2068, %v3325, 0.0
  %v3390 = vadd.f32 %v3388, %v3389
  %v3391 = vsel %vm2068, %v3326, 0.0
  %v3392 = vadd.f32 %v3390, %v3391
  %v3393 = vsel %vm2068, %v3327, 0.0
  %v3394 = vadd.f32 %v3392, %v3393
  %v3395 = vsel %vm2068, %v3328, 0.0
  %v3396 = vadd.f32 %v3394, %v3395
  %v3397 = vsel %vm2068, %v3329, 0.0
  %v3398 = vadd.f32 %v3396, %v3397
  %v3399 = vsel %vm2068, %v3330, 0.0
  %v3400 = vadd.f32 %v3398, %v3399
  %v3401 = vsel %vm2068, %v3331, 0.0
  %v3402 = vadd.f32 %v3400, %v3401
  %v3403 = vsel %vm2068, %v3332, 0.0
  %v3404 = vadd.f32 %v3402, %v3403
  %v3405 = vsel %vm2068, %v3333, 0.0
  %v3406 = vadd.f32 %v3404, %v3405
  %v3407 = vsel %vm2068, %v3334, 0.0
  %v3408 = vadd.f32 %v3406, %v3407
  %v3409 = vsel %vm2068, %v3335, 0.0
  %v3410 = vadd.f32 %v3408, %v3409
  %v3411 = vsel %vm2068, %v3336, 0.0
  %v3412 = vadd.f32 %v3410, %v3411
  %v3413 = vsel %vm2068, %v3337, 0.0
  %v3414 = vadd.f32 %v3412, %v3413
  %v3415 = vsel %vm2068, %v3338, 0.0
  %v3416 = vadd.f32 %v3414, %v3415
  %v3417 = vsel %vm2068, %v3339, 0.0
  %v3418 = vadd.f32 %v3416, %v3417
  %v3419 = vsel %vm2068, %v3340, 0.0
  %v3420 = vadd.f32 %v3418, %v3419
  %v3421 = vsel %vm2068, %v3341, 0.0
  %v3422 = vadd.f32 %v3420, %v3421
  %v3423 = vsel %vm2068, %v3342, 0.0
  %v3424 = vadd.f32 %v3422, %v3423
  %v3425 = vsel %vm2068, %v3343, 0.0
  %v3426 = vadd.f32 %v3424, %v3425
  %v3427 = vsel %vm2068, %v3344, 0.0
  %v3428 = vadd.f32 %v3426, %v3427
  %v3429 = vsel %vm2068, %v3345, 0.0
  %v3430 = vadd.f32 %v3428, %v3429
  %v3431 = vsel %vm2068, %v3346, 0.0
  %v3432 = vadd.f32 %v3430, %v3431
  %v3433 = vsel %vm2068, %v3347, 0.0
  %v3434 = vadd.f32 %v3432, %v3433
  %v3435 = vsel %vm2068, %v3348, 0.0
  %v3436 = vadd.f32 %v3434, %v3435
  %v3437 = vsel %vm2068, %v3349, 0.0
  %v3438 = vadd.f32 %v3436, %v3437
  %v3439 = vsel %vm2068, %v3350, 0.0
  %v3440 = vadd.f32 %v3438, %v3439
  %v3441 = vsel %vm2068, %v3351, 0.0
  %v3442 = vadd.f32 %v3440, %v3441
  %v3443 = vsel %vm2068, %v3352, 0.0
  %v3444 = vadd.f32 %v3442, %v3443
  %v3445 = vsel %vm2068, %v3353, 0.0
  %v3446 = vadd.f32 %v3444, %v3445
  %v3447 = vsel %vm2068, %v3354, 0.0
  %v3448 = vadd.f32 %v3446, %v3447
  %v3449 = vsel %vm2068, %v3355, 0.0
  %v3450 = vadd.f32 %v3448, %v3449
  %v3451 = vsel %vm2068, %v3356, 0.0
  %v3452 = vadd.f32 %v3450, %v3451
  %v3453 = vsel %vm2068, %v3357, 0.0
  %v3454 = vadd.f32 %v3452, %v3453
  %v3455 = vsel %vm2068, %v3358, 0.0
  %v3456 = vadd.f32 %v3454, %v3455
  %v3457 = vsel %vm2068, %v3359, 0.0
  %v3458 = vadd.f32 %v3456, %v3457
  %v3459 = vsel %vm2068, %v3360, 0.0
  %v3460 = vadd.f32 %v3458, %v3459
  %v3461 = vsel %vm2068, %v3361, 0.0
  %v3462 = vadd.f32 %v3460, %v3461
  %v3463 = vsel %vm2068, %v3362, 0.0
  %v3464 = vadd.f32 %v3462, %v3463
  %v3465 = vsel %vm2068, %v3363, 0.0
  %v3466 = vadd.f32 %v3464, %v3465
  %v3467 = vsel %vm2068, %v3364, 0.0
  %v3468 = vadd.f32 %v3466, %v3467
  %v3469 = vsel %vm2068, %v3365, 0.0
  %v3470 = vadd.f32 %v3468, %v3469
  %v3471 = vsel %vm2068, %v3366, 0.0
  %v3472 = vadd.f32 %v3470, %v3471
  %v3473 = vsel %vm2068, %v3367, 0.0
  %v3474 = vadd.f32 %v3472, %v3473
  %v3475 = vsel %vm2068, %v3368, 0.0
  %v3476 = vadd.f32 %v3474, %v3475
  %v3477 = vsel %vm2068, %v3369, 0.0
  %v3478 = vadd.f32 %v3476, %v3477
  %v3479 = vsel %vm2068, %v3370, 0.0
  %v3480 = vadd.f32 %v3478, %v3479
  %v3481 = vsel %vm2068, %v3371, 0.0
  %v3482 = vadd.f32 %v3480, %v3481
  %v3483 = vsel %vm2068, %v3372, 0.0
  %v3484 = vadd.f32 %v3482, %v3483
  %v3485 = vsel %vm2068, %v3373, 0.0
  %v3486 = vadd.f32 %v3484, %v3485
  %v3487 = vsel %vm2068, %v3374, 0.0
  %v3488 = vadd.f32 %v3486, %v3487
  %v3489 = vsel %vm2068, %v3375, 0.0
  %v3490 = vadd.f32 %v3488, %v3489
  %v3491 = vsel %vm2068, %v3376, 0.0
  %v3492 = vadd.f32 %v3490, %v3491
  %v3493 = vsel %vm2068, %v3377, 0.0
  %v3494 = vadd.f32 %v3492, %v3493
  %v3495 = vsel %vm2068, %v3378, 0.0
  %v3496 = vadd.f32 %v3494, %v3495
  %v3497 = vsel %vm2068, %v3379, 0.0
  %v3498 = vadd.f32 %v3496, %v3497
  %v3499 = vsel %vm2068, %v3380, 0.0
  %v3500 = vadd.f32 %v3498, %v3499
  %v3501 = vsel %vm2068, %v3381, 0.0
  %v3502 = vadd.f32 %v3500, %v3501
  %v3503 = vsel %vm2068, %v3382, 0.0
  %v3504 = vadd.f32 %v3502, %v3503
  %v3505 = vsel %vm2068, %v3383, 0.0
  %v3506 = vadd.f32 %v3504, %v3505
  %v3507 = vsel %vm2068, %v3384, 0.0
  %v3508 = vadd.f32 %v3506, %v3507
  %v3509 = vsel %vm2068, %v3385, 0.0
  %v3510 = vadd.f32 %v3508, %v3509
  %v3511 = vsel %vm2068, %v3386, 0.0
  %v3512 = vadd.f32 %v3510, %v3511
  %v3513 = vsel %vm2068, %v3387, 0.0
  %v3514 = vadd.f32 %v3512, %v3513
  %v3515 = vrot.slane %v3514, 4
  %v3516 = vadd.f32 %v3514, %v3515
  %v3517 = vrot.slane %v3516, 2
  %v3518 = vadd.f32 %v3516, %v3517
  %v3519 = vrot.slane %v3518, 1
  %v3520 = vadd.f32 %v3518, %v3519
  %vm3521 = vcmask 1040384
  %v3522 = vsel %vm3521, %v3323, %v3520
  %vm3523 = vcmask 58368
  %3524 = vst.msk [vmem:[%s4] sm:$0x3] %vm3523, %v3522
  // Predicated region
  $region14: #{basic_block_pallas.3} parent=0 // pred_check
    _
  $region15: #{basic_block_pallas.3} parent=0 // pred_check_branch
    %3526 = sbr.rel (0) target = $region17
  $region16: #{basic_block_pallas.3} parent=0 // pred_region
    _
  $region17: #{basic_block_pallas.3} parent=0 // pred_fallthru
    _
  // Predicated region
  $region18: #{basic_block_pallas.3} parent=0 // pred_check
    _
  $region19: #{basic_block_pallas.3} parent=0 // pred_check_branch
    %3528 = sbr.rel (0) target = $region21
  $region20: #{basic_block_pallas.3} parent=0 // pred_region
    _
  $region21: #{basic_block_pallas.3} parent=0 // pred_fallthru
    _
  // Predicated region
  $region22: #{basic_block_pallas.3} parent=0 // pred_check
    _
  $region23: #{basic_block_pallas.3} parent=0 // pred_check_branch
    %3530 = sbr.rel (0) target = $region25
  $region24: #{basic_block_pallas.3} parent=0 // pred_region
    _
  $region25: #{basic_block_pallas.3} parent=0 // pred_fallthru
    _
  // Predicated region
  $region26: #{basic_block_pallas.3} parent=0 // pred_check
    _
  $region27: #{basic_block_pallas.3} parent=0 // pred_check_branch
    %3532 = sbr.rel (0) target = $region29
  $region28: #{basic_block_pallas.3} parent=0 // pred_region
    _
  $region29: #{basic_block_pallas.3} parent=0 // pred_fallthru
    _

</llo_original>
